<compile_context>
chip_gen: v7x
topology: tpu7x:2x2x1
jax: 0.10.0
libtpu: 0.0.40
codegen_flags: <defaults>
</compile_context>

<pallas_src>
import functools

import jax
import jax.numpy as jnp
from jax.experimental import pallas as pl
from jax.experimental.pallas import tpu as pltpu


# --------------------------- Per-layer kernel --------------------------------

def _decoder_layer_kernel(tgt_ref, mem_ref, tpos_ref, mpos_ref,
                          sa_wqk_ref, sa_bqk_ref, sa_wv_ref, sa_bv_ref,
                          sa_wo_ref, sa_bo_ref,
                          ca_w_ref, ca_b_ref,
                          w1_ref, b1_ref, w2_ref, b2_ref,
                          ln_g_ref, ln_b_ref, fg_ref, fb_ref,
                          out_ref, x_scr,
                          *, nhead, eps, apply_final_norm, compute_dtype):
    """One decoder layer per grid step; activation carry lives in x_scr."""
    B, St, D = tgt_ref.shape
    Sm = mem_ref.shape[1]
    dh = D // nhead
    f32 = jnp.float32
    cdt = compute_dtype
    approx_recip = jnp.dtype(cdt) != jnp.dtype(jnp.float32)

    l = pl.program_id(0)
    last = pl.num_programs(0) - 1

    def mm(x, w):                                   # bf16/f32 MXU, f32 accumulate
        return jnp.dot(x.astype(cdt), w, preferred_element_type=f32)

    def layer_norm(z, g, b):                        # z: (M, D); g, b: (1, D) f32
        mu = jnp.mean(z, axis=-1, keepdims=True)
        zc = z - mu
        var = jnp.mean(zc * zc, axis=-1, keepdims=True)
        return zc * jax.lax.rsqrt(var + eps) * g + b

    def heads_attention(q2, k2, v2, Sq, Sk):
        """q2: (B*Sq, D), k2/v2: (B*Sk, D) -> (B*Sq, D). Scale baked into Q."""
        q3 = q2.astype(cdt).reshape(B, Sq, D)
        k3 = k2.astype(cdt).reshape(B, Sk, D)
        v3 = v2.astype(cdt).reshape(B, Sk, D)
        outs = []
        for h in range(nhead):                      # static loop (see header note)
            lo = h * dh
            qh = q3[:, :, lo:lo + dh]
            kh = k3[:, :, lo:lo + dh]
            vh = v3[:, :, lo:lo + dh]
            s = jnp.einsum('bqd,bkd->bqk', qh, kh, preferred_element_type=f32)
            s = s - jnp.max(s, axis=-1, keepdims=True)
            p = jnp.exp(s)
            p = p * pl.reciprocal(jnp.sum(p, axis=-1, keepdims=True),
                                  approx=approx_recip)
            outs.append(jnp.einsum('bqk,bkd->bqd', p.astype(cdt), vh,
                                   preferred_element_type=f32))
        return jnp.concatenate(outs, axis=-1).reshape(B * Sq, D)

    # ---- initialize the activation carry on the first layer ----
    @pl.when(l == 0)
    def _init():
        x_scr[...] = tgt_ref[...].reshape(B * St, D)

    x = x_scr[...]                                   # (B*St, D) f32 carry
    tpos2 = tpos_ref[...].reshape(B * St, D)
    mem2 = mem_ref[...].reshape(B * Sm, D)
    memk2 = mem2 + mpos_ref[...].reshape(B * Sm, D)  # memory + memory_pos

    ln_g = ln_g_ref[0]                               # (3, D)
    ln_b = ln_b_ref[0]

    # ---------------- self attention ----------------
    q_in = x + tpos2
    qk = mm(q_in, sa_wqk_ref[0]) + sa_bqk_ref[0]     # fused (D, 2D) Q|K projection
    q2 = qk[:, :D]                                   # scale already folded in
    k2 = qk[:, D:]
    v2 = mm(x, sa_wv_ref[0]) + sa_bv_ref[0]
    att = heads_attention(q2, k2, v2, St, St)
    sa = mm(att, sa_wo_ref[0]) + sa_bo_ref[0]
    x = layer_norm(x + sa, ln_g[0:1], ln_b[0:1])

    # ---------------- cross attention ----------------
    ca_b = ca_b_ref[0]                               # (4, D)
    q2 = mm(x + tpos2, ca_w_ref[0, 0]) + ca_b[0:1]
    k2 = mm(memk2, ca_w_ref[0, 1]) + ca_b[1:2]
    v2 = mm(mem2, ca_w_ref[0, 2]) + ca_b[2:3]
    att = heads_attention(q2, k2, v2, St, Sm)
    ca = mm(att, ca_w_ref[0, 3]) + ca_b[3:4]
    x = layer_norm(x + ca, ln_g[1:2], ln_b[1:2])

    # ---------------- feed forward ----------------
    h1 = jnp.maximum(mm(x, w1_ref[0]) + b1_ref[0], 0.0)
    ff = mm(h1, w2_ref[0]) + b2_ref[0]
    x = layer_norm(x + ff, ln_g[2:3], ln_b[2:3])

    x_scr[...] = x                                   # carry to next layer

    @pl.when(l == last)
    def _finalize():
        y = x
        if apply_final_norm:
            y = layer_norm(y, fg_ref[...], fb_ref[...])
        out_ref[...] = y.reshape(B, St, D)


# --------------------------- One-time parameter packing ----------------------

def pack_decoder_params(layer_params, norm_params, nhead,
                        compute_dtype=jnp.bfloat16):
    """Pack per-layer dicts into stacked arrays with a leading layer axis.

    Done once at init (not per forward).  Weight matrices are stored in
    `compute_dtype` (bf16 for the MXU path); biases / LN params stay f32.
    The 1/sqrt(d_head) attention scale is folded into wq / bq here.
    """
    D = layer_params[0]["w1"].shape[0]
    dh = D // nhead
    scale = 1.0 / float(dh) ** 0.5
    wdt = compute_dtype

    def stack(fn, dt=None):
        a = jnp.stack([fn(p) for p in layer_params], axis=0)
        return a.astype(dt) if dt is not None else a.astype(jnp.float32)

    P = {
        "sa_wqk": stack(lambda p: jnp.concatenate(
            [p["self_attn"]["wq"] * scale, p["self_attn"]["wk"]], axis=1), wdt),
        "sa_bqk": stack(lambda p: jnp.concatenate(
            [p["self_attn"]["bq"] * scale, p["self_attn"]["bk"]], 0)[None, :]),
        "sa_wv": stack(lambda p: p["self_attn"]["wv"], wdt),
        "sa_bv": stack(lambda p: p["self_attn"]["bv"][None, :]),
        "sa_wo": stack(lambda p: p["self_attn"]["wo"], wdt),
        "sa_bo": stack(lambda p: p["self_attn"]["bo"][None, :]),
        "ca_w": stack(lambda p: jnp.stack(
            [p["cross_attn"]["wq"] * scale, p["cross_attn"]["wk"],
             p["cross_attn"]["wv"], p["cross_attn"]["wo"]], 0), wdt),
        "ca_b": stack(lambda p: jnp.stack(
            [p["cross_attn"]["bq"] * scale, p["cross_attn"]["bk"],
             p["cross_attn"]["bv"], p["cross_attn"]["bo"]], 0)),
        "w1": stack(lambda p: p["w1"], wdt),
        "b1": stack(lambda p: p["b1"][None, :]),
        "w2": stack(lambda p: p["w2"], wdt),
        "b2": stack(lambda p: p["b2"][None, :]),
        "ln_g": stack(lambda p: jnp.stack([p["ln1_g"], p["ln2_g"], p["ln3_g"]], 0)),
        "ln_b": stack(lambda p: jnp.stack([p["ln1_b"], p["ln2_b"], p["ln3_b"]], 0)),
    }
    if norm_params is not None:
        P["fg"] = norm_params["g"].reshape(1, D).astype(jnp.float32)
        P["fb"] = norm_params["b"].reshape(1, D).astype(jnp.float32)
        P["apply_final_norm"] = True
    else:
        P["fg"] = jnp.ones((1, D), jnp.float32)
        P["fb"] = jnp.zeros((1, D), jnp.float32)
        P["apply_final_norm"] = False
    P["compute_dtype"] = compute_dtype
    P["nhead"] = nhead
    return P


# --------------------------- Forward wrapper ----------------------------------

_WEIGHT_KEYS = ("sa_wqk", "sa_bqk", "sa_wv", "sa_bv", "sa_wo", "sa_bo",
                "ca_w", "ca_b", "w1", "b1", "w2", "b2", "ln_g", "ln_b")


def transformer_decoder_forward(tgt, memory, packed, tgt_pos=None, memory_pos=None):
    B, St, D = tgt.shape
    Sm = memory.shape[1]
    nhead = packed["nhead"]
    L = packed["sa_wqk"].shape[0]
    FF = packed["w1"].shape[2]
    if tgt_pos is None:
        tgt_pos = jnp.zeros_like(tgt)
    if memory_pos is None:
        memory_pos = jnp.zeros_like(memory)

    weight_arrays = [packed[k] for k in _WEIGHT_KEYS]

    def const_spec(arr):                       # whole array, same block every step
        z = (0,) * arr.ndim
        return pl.BlockSpec(arr.shape, lambda l, z=z: z)

    def layer_spec(arr):                       # layer-l slab of a (L, ...) array
        z = (0,) * (arr.ndim - 1)
        return pl.BlockSpec((1,) + arr.shape[1:], lambda l, z=z: (l,) + z)

    in_specs = ([const_spec(a) for a in (tgt, memory, tgt_pos, memory_pos)]
                + [layer_spec(a) for a in weight_arrays]
                + [const_spec(packed["fg"]), const_spec(packed["fb"])])
    out_spec = pl.BlockSpec((B, St, D), lambda l: (0, 0, 0))

    # VMEM budget from actual block footprint (double-buffered) + headroom.
    out_bytes = B * St * D * 4
    block_bytes = (sum(int(a.nbytes) for a in (tgt, memory, tgt_pos, memory_pos))
                   + sum(int(a.nbytes) // L for a in weight_arrays)
                   + int(packed["fg"].nbytes) + int(packed["fb"].nbytes)
                   + 2 * out_bytes)                       # out block + f32 carry
    need = 2 * block_bytes + (8 << 20)
    vmem_limit = int(min(max(need, 32 << 20), 64 << 20))  # safe on v5e/v6e/v7x
    try:
        cap = pltpu.get_tpu_info().vmem_capacity_bytes
        vmem_limit = int(min(max(need, 32 << 20), int(cap * 0.9)))
    except Exception:
        pass

    # Advisory cost estimate so XLA can overlap surrounding ops.
    Mt, Mm = B * St, B * Sm
    flops_layer = (2 * Mt * D * 2 * D + 4 * Mt * D * D      # self-attn projections
                   + 4 * B * St * St * D                    # self-attn scores + PV
                   + 4 * Mt * D * D + 4 * Mm * D * D        # cross projections
                   + 4 * B * St * Sm * D                    # cross scores + PV
                   + 4 * Mt * D * FF)                       # FFN
    io_bytes = (sum(int(a.nbytes) for a in (tgt, memory, tgt_pos, memory_pos))
                + sum(int(a.nbytes) for a in weight_arrays)
                + int(packed["fg"].nbytes) + int(packed["fb"].nbytes) + out_bytes)
    cost = pl.CostEstimate(flops=int(L * flops_layer),
                           transcendentals=int(L * B * nhead * St * (St + Sm)),
                           bytes_accessed=int(io_bytes))

    kernel = functools.partial(
        _decoder_layer_kernel, nhead=nhead, eps=1e-5,
        apply_final_norm=packed["apply_final_norm"],
        compute_dtype=packed["compute_dtype"])

    return pl.pallas_call(
        kernel,
        out_shape=jax.ShapeDtypeStruct((B, St, D), jnp.float32),
        grid=(L,),
        in_specs=in_specs,
        out_specs=out_spec,
        scratch_shapes=[pltpu.VMEM((B * St, D), jnp.float32)],   # activation carry
        compiler_params=pltpu.CompilerParams(
            dimension_semantics=("arbitrary",),                  # layer carry axis
            vmem_limit_bytes=vmem_limit),
        cost_estimate=cost,
    )(tgt, memory, tgt_pos, memory_pos, *weight_arrays,
      packed["fg"], packed["fb"])


# --------------------------- Parameter init ----------------------------------

def init_attn_params(key, d_model):
    ks = jax.random.split(key, 4)
    s = 1.0 / jnp.sqrt(d_model)
    return {
        "wq": jax.random.normal(ks[0], (d_model, d_model), jnp.float32) * s,
        "wk": jax.random.normal(ks[1], (d_model, d_model), jnp.float32) * s,
        "wv": jax.random.normal(ks[2], (d_model, d_model), jnp.float32) * s,
        "wo": jax.random.normal(ks[3], (d_model, d_model), jnp.float32) * s,
        "bq": jnp.zeros((d_model,), jnp.float32),
        "bk": jnp.zeros((d_model,), jnp.float32),
        "bv": jnp.zeros((d_model,), jnp.float32),
        "bo": jnp.zeros((d_model,), jnp.float32),
    }


def init_layer_params(key, d_model, dim_ff):
    ks = jax.random.split(key, 4)
    return {
        "self_attn": init_attn_params(ks[0], d_model),
        "cross_attn": init_attn_params(ks[1], d_model),
        "w1": jax.random.normal(ks[2], (d_model, dim_ff), jnp.float32) / jnp.sqrt(d_model),
        "b1": jnp.zeros((dim_ff,), jnp.float32),
        "w2": jax.random.normal(ks[3], (dim_ff, d_model), jnp.float32) / jnp.sqrt(dim_ff),
        "b2": jnp.zeros((d_model,), jnp.float32),
        "ln1_g": jnp.ones((d_model,), jnp.float32),
        "ln1_b": jnp.zeros((d_model,), jnp.float32),
        "ln2_g": jnp.ones((d_model,), jnp.float32),
        "ln2_b": jnp.zeros((d_model,), jnp.float32),
        "ln3_g": jnp.ones((d_model,), jnp.float32),
        "ln3_b": jnp.zeros((d_model,), jnp.float32),
    }


# --------------------------- Pure-JAX reference ------------------------------

def _ref_mha(query, key, value, p, nhead):
    B, Sq, D = query.shape
    Sk = key.shape[1]
    dh = D // nhead
    q = (query @ p["wq"] + p["bq"]).reshape(B, Sq, nhead, dh).transpose(0, 2, 1, 3)
    k = (key @ p["wk"] + p["bk"]).reshape(B, Sk, nhead, dh).transpose(0, 2, 1, 3)
    v = (value @ p["wv"] + p["bv"]).reshape(B, Sk, nhead, dh).transpose(0, 2, 1, 3)
    s = jnp.einsum("bhqd,bhkd->bhqk", q, k) / jnp.sqrt(dh)
    a = jax.nn.softmax(s, axis=-1)
    o = jnp.einsum("bhqk,bhkd->bhqd", a, v).transpose(0, 2, 1, 3).reshape(B, Sq, D)
    return o @ p["wo"] + p["bo"]


def _ref_ln(z, g, b, eps=1e-5):
    mu = jnp.mean(z, axis=-1, keepdims=True)
    var = jnp.mean((z - mu) ** 2, axis=-1, keepdims=True)
    return (z - mu) * jax.lax.rsqrt(var + eps) * g + b


def _ref_decoder(tgt, memory, layer_params, norm_params, nhead, tgt_pos, memory_pos):
    out = tgt
    for p in layer_params:
        q = out + tgt_pos
        out = _ref_ln(out + _ref_mha(q, q, out, p["self_attn"], nhead),
                      p["ln1_g"], p["ln1_b"])
        q = out + tgt_pos
        k = memory + memory_pos
        out = _ref_ln(out + _ref_mha(q, k, memory, p["cross_attn"], nhead),
                      p["ln2_g"], p["ln2_b"])
        ff = jnp.maximum(out @ p["w1"] + p["b1"], 0.0) @ p["w2"] + p["b2"]
        out = _ref_ln(out + ff, p["ln3_g"], p["ln3_b"])
    return _ref_ln(out, norm_params["g"], norm_params["b"])


# --------------------------- Main ---------------------------------------------

if __name__ == "__main__":
    B, S_TGT, S_MEM = 2, 8, 16
    D_MODEL, NHEAD, DIM_FF, NUM_LAYERS = 32, 4, 64, 2

    root = jax.random.PRNGKey(0)
    k_tgt, k_mem, k_tpos, k_mpos, k_param = jax.random.split(root, 5)

    tgt = jax.random.normal(k_tgt, (B, S_TGT, D_MODEL), jnp.float32)
    memory = jax.random.normal(k_mem, (B, S_MEM, D_MODEL), jnp.float32)
    tgt_pos = jax.random.normal(k_tpos, (B, S_TGT, D_MODEL), jnp.float32)
    memory_pos = jax.random.normal(k_mpos, (B, S_MEM, D_MODEL), jnp.float32)

    # _get_clones deep-copies one layer -> all layers share identical init weights.
    layer_p = init_layer_params(k_param, D_MODEL, DIM_FF)
    layer_params = [layer_p] * NUM_LAYERS
    norm_params = {"g": jnp.ones((D_MODEL,), jnp.float32),
                   "b": jnp.zeros((D_MODEL,), jnp.float32)}

    ref = _ref_decoder(tgt, memory, layer_params, norm_params, NHEAD,
                       tgt_pos, memory_pos)

    # 1) f32 configuration: exact parity check against the f32 reference.
    packed_f32 = pack_decoder_params(layer_params, norm_params, NHEAD,
                                     compute_dtype=jnp.float32)
    out_f32 = jax.block_until_ready(
        transformer_decoder_forward(tgt, memory, packed_f32,
                                    tgt_pos=tgt_pos, memory_pos=memory_pos))
    assert out_f32.shape == (B, S_TGT, D_MODEL)
    assert jnp.allclose(out_f32, ref, rtol=1e-4, atol=1e-4), "f32 mismatch vs reference"

    # 2) bf16 MXU configuration (production path): loose tolerance (bf16 inputs,
    #    f32 accumulation, approx reciprocal in softmax).
    packed_bf16 = pack_decoder_params(layer_params, norm_params, NHEAD,
                                      compute_dtype=jnp.bfloat16)
    out_bf16 = jax.block_until_ready(
        transformer_decoder_forward(tgt, memory, packed_bf16,
                                    tgt_pos=tgt_pos, memory_pos=memory_pos))
    assert out_bf16.shape == (B, S_TGT, D_MODEL)
    assert jnp.allclose(out_bf16, ref, rtol=1e-1, atol=1e-1), "bf16 mismatch vs reference"

    print("KERNEL_OK")
</pallas_src>

<mosaic_0001>
module attributes {stable_mosaic.version = 11 : i64} {
  func.func @_decoder_layer_kernel(%arg0: i32, %arg1: memref<2x8x32xf32, #tpu.memory_space<vmem>>, %arg2: memref<2x16x32xf32, #tpu.memory_space<vmem>>, %arg3: memref<2x8x32xf32, #tpu.memory_space<vmem>>, %arg4: memref<2x16x32xf32, #tpu.memory_space<vmem>>, %arg5: memref<1x32x64xf32, #tpu.memory_space<vmem>>, %arg6: memref<1x1x64xf32, #tpu.memory_space<vmem>>, %arg7: memref<1x32x32xf32, #tpu.memory_space<vmem>>, %arg8: memref<1x1x32xf32, #tpu.memory_space<vmem>>, %arg9: memref<1x32x32xf32, #tpu.memory_space<vmem>>, %arg10: memref<1x1x32xf32, #tpu.memory_space<vmem>>, %arg11: memref<1x4x32x32xf32, #tpu.memory_space<vmem>>, %arg12: memref<1x4x32xf32, #tpu.memory_space<vmem>>, %arg13: memref<1x32x64xf32, #tpu.memory_space<vmem>>, %arg14: memref<1x1x64xf32, #tpu.memory_space<vmem>>, %arg15: memref<1x64x32xf32, #tpu.memory_space<vmem>>, %arg16: memref<1x1x32xf32, #tpu.memory_space<vmem>>, %arg17: memref<1x3x32xf32, #tpu.memory_space<vmem>>, %arg18: memref<1x3x32xf32, #tpu.memory_space<vmem>>, %arg19: memref<1x32xf32, #tpu.memory_space<vmem>>, %arg20: memref<1x32xf32, #tpu.memory_space<vmem>>, %arg21: memref<2x8x32xf32, #tpu.memory_space<vmem>>, %arg22: memref<16x32xf32, #tpu.memory_space<vmem>>) attributes {dimension_semantics = [#tpu.dimension_semantics<arbitrary>], iteration_bounds = array<i64: 2>, scalar_prefetch = 0 : i64, scratch_operands = 1 : i64, tpu.core_type = #tpu.core_type<tc>, window_params = [{pipeline_mode = #tpu.pipeline_mode<synchronous>, transform_indices = @transform_0, window_bounds = array<i64: 2, 8, 32>}, {pipeline_mode = #tpu.pipeline_mode<synchronous>, transform_indices = @transform_1, window_bounds = array<i64: 2, 16, 32>}, {pipeline_mode = #tpu.pipeline_mode<synchronous>, transform_indices = @transform_2, window_bounds = array<i64: 2, 8, 32>}, {pipeline_mode = #tpu.pipeline_mode<synchronous>, transform_indices = @transform_3, window_bounds = array<i64: 2, 16, 32>}, {transform_indices = @transform_4, window_bounds = array<i64: 1, 32, 64>}, {transform_indices = @transform_5, window_bounds = array<i64: 1, 1, 64>}, {transform_indices = @transform_6, window_bounds = array<i64: 1, 32, 32>}, {transform_indices = @transform_7, window_bounds = array<i64: 1, 1, 32>}, {transform_indices = @transform_8, window_bounds = array<i64: 1, 32, 32>}, {transform_indices = @transform_9, window_bounds = array<i64: 1, 1, 32>}, {transform_indices = @transform_10, window_bounds = array<i64: 1, 4, 32, 32>}, {transform_indices = @transform_11, window_bounds = array<i64: 1, 4, 32>}, {transform_indices = @transform_12, window_bounds = array<i64: 1, 32, 64>}, {transform_indices = @transform_13, window_bounds = array<i64: 1, 1, 64>}, {transform_indices = @transform_14, window_bounds = array<i64: 1, 64, 32>}, {transform_indices = @transform_15, window_bounds = array<i64: 1, 1, 32>}, {transform_indices = @transform_16, window_bounds = array<i64: 1, 3, 32>}, {transform_indices = @transform_17, window_bounds = array<i64: 1, 3, 32>}, {pipeline_mode = #tpu.pipeline_mode<synchronous>, transform_indices = @transform_18, window_bounds = array<i64: 1, 32>}, {pipeline_mode = #tpu.pipeline_mode<synchronous>, transform_indices = @transform_19, window_bounds = array<i64: 1, 32>}, {pipeline_mode = #tpu.pipeline_mode<synchronous>, transform_indices = @transform_20, window_bounds = array<i64: 2, 8, 32>}]} {
    %c0_i32 = arith.constant 0 : i32
    %0 = arith.cmpi eq, %arg0, %c0_i32 : i32
    %1 = arith.extui %0 : i1 to i32
    %c0_i32_0 = arith.constant 0 : i32
    %2 = arith.cmpi ne, %1, %c0_i32_0 : i32
    scf.if %2 {
      %c0_122 = arith.constant 0 : index
      %c0_123 = arith.constant 0 : index
      %c0_124 = arith.constant 0 : index
      %285 = vector.load %arg1[%c0_122, %c0_123, %c0_124] : memref<2x8x32xf32, #tpu.memory_space<vmem>>, vector<2x8x32xf32>
      %286 = vector.shape_cast %285 : vector<2x8x32xf32> to vector<16x32xf32>
      %c0_125 = arith.constant 0 : index
      %c0_126 = arith.constant 0 : index
      %287 = vector.load %arg22[%c0_125, %c0_126] : memref<16x32xf32, #tpu.memory_space<vmem>>, vector<16x32xf32>
      tpu.vector_store %arg22[%c0_125, %c0_126], %286 {strides = array<i32>} : memref<16x32xf32, #tpu.memory_space<vmem>>, vector<16x32xf32>,
    } else {
    }
    %c0 = arith.constant 0 : index
    %c0_1 = arith.constant 0 : index
    %3 = vector.load %arg22[%c0, %c0_1] : memref<16x32xf32, #tpu.memory_space<vmem>>, vector<16x32xf32>
    %c0_2 = arith.constant 0 : index
    %c0_3 = arith.constant 0 : index
    %c0_4 = arith.constant 0 : index
    %4 = vector.load %arg3[%c0_2, %c0_3, %c0_4] : memref<2x8x32xf32, #tpu.memory_space<vmem>>, vector<2x8x32xf32>
    %5 = vector.shape_cast %4 : vector<2x8x32xf32> to vector<16x32xf32>
    %c0_5 = arith.constant 0 : index
    %c0_6 = arith.constant 0 : index
    %c0_7 = arith.constant 0 : index
    %6 = vector.load %arg2[%c0_5, %c0_6, %c0_7] : memref<2x16x32xf32, #tpu.memory_space<vmem>>, vector<2x16x32xf32>
    %7 = vector.shape_cast %6 : vector<2x16x32xf32> to vector<32x32xf32>
    %c0_8 = arith.constant 0 : index
    %c0_9 = arith.constant 0 : index
    %c0_10 = arith.constant 0 : index
    %8 = vector.load %arg4[%c0_8, %c0_9, %c0_10] : memref<2x16x32xf32, #tpu.memory_space<vmem>>, vector<2x16x32xf32>
    %9 = vector.shape_cast %8 : vector<2x16x32xf32> to vector<32x32xf32>
    %10 = arith.addf %7, %9 : vector<32x32xf32>
    %c0_11 = arith.constant 0 : index
    %c0_12 = arith.constant 0 : index
    %c0_13 = arith.constant 0 : index
    %11 = vector.load %arg17[%c0_11, %c0_12, %c0_13] : memref<1x3x32xf32, #tpu.memory_space<vmem>>, vector<1x3x32xf32>
    %12 = vector.shape_cast %11 : vector<1x3x32xf32> to vector<3x32xf32>
    %c0_14 = arith.constant 0 : index
    %c0_15 = arith.constant 0 : index
    %c0_16 = arith.constant 0 : index
    %13 = vector.load %arg18[%c0_14, %c0_15, %c0_16] : memref<1x3x32xf32, #tpu.memory_space<vmem>>, vector<1x3x32xf32>
    %14 = vector.shape_cast %13 : vector<1x3x32xf32> to vector<3x32xf32>
    %15 = arith.addf %3, %5 : vector<16x32xf32>
    %c0_17 = arith.constant 0 : index
    %c0_18 = arith.constant 0 : index
    %c0_19 = arith.constant 0 : index
    %16 = vector.load %arg5[%c0_17, %c0_18, %c0_19] : memref<1x32x64xf32, #tpu.memory_space<vmem>>, vector<1x32x64xf32>
    %17 = vector.shape_cast %16 : vector<1x32x64xf32> to vector<32x64xf32>
    %cst = arith.constant dense<0.000000e+00> : vector<16x64xf32>
    %18 = tpu.matmul %15, %17, %cst {dimension_numbers = #tpu.dot_dimension_numbers<[1], [0], [0], [1], [0, 0, 1, 1], [], []>} : vector<16x32xf32>, vector<32x64xf32>, vector<16x64xf32> -> vector<16x64xf32>
    %c0_20 = arith.constant 0 : index
    %c0_21 = arith.constant 0 : index
    %c0_22 = arith.constant 0 : index
    %19 = vector.load %arg6[%c0_20, %c0_21, %c0_22] : memref<1x1x64xf32, #tpu.memory_space<vmem>>, vector<1x1x64xf32>
    %20 = vector.shape_cast %19 : vector<1x1x64xf32> to vector<1x64xf32>
    %21 = vector.broadcast %20 : vector<1x64xf32> to vector<16x64xf32>
    %22 = arith.addf %18, %21 : vector<16x64xf32>
    %23 = vector.extract_strided_slice %22 {offsets = [0, 0], sizes = [16, 32], strides = [1, 1]} : vector<16x64xf32> to vector<16x32xf32>
    %24 = vector.extract_strided_slice %22 {offsets = [0, 32], sizes = [16, 32], strides = [1, 1]} : vector<16x64xf32> to vector<16x32xf32>
    %c0_23 = arith.constant 0 : index
    %c0_24 = arith.constant 0 : index
    %c0_25 = arith.constant 0 : index
    %25 = vector.load %arg7[%c0_23, %c0_24, %c0_25] : memref<1x32x32xf32, #tpu.memory_space<vmem>>, vector<1x32x32xf32>
    %26 = vector.shape_cast %25 : vector<1x32x32xf32> to vector<32x32xf32>
    %cst_26 = arith.constant dense<0.000000e+00> : vector<16x32xf32>
    %27 = tpu.matmul %3, %26, %cst_26 {dimension_numbers = #tpu.dot_dimension_numbers<[1], [0], [0], [1], [0, 0, 1, 1], [], []>} : vector<16x32xf32>, vector<32x32xf32>, vector<16x32xf32> -> vector<16x32xf32>
    %c0_27 = arith.constant 0 : index
    %c0_28 = arith.constant 0 : index
    %c0_29 = arith.constant 0 : index
    %28 = vector.load %arg8[%c0_27, %c0_28, %c0_29] : memref<1x1x32xf32, #tpu.memory_space<vmem>>, vector<1x1x32xf32>
    %29 = vector.shape_cast %28 : vector<1x1x32xf32> to vector<1x32xf32>
    %30 = vector.broadcast %29 : vector<1x32xf32> to vector<16x32xf32>
    %31 = arith.addf %27, %30 : vector<16x32xf32>
    %32 = vector.shape_cast %23 : vector<16x32xf32> to vector<2x8x32xf32>
    %33 = vector.shape_cast %24 : vector<16x32xf32> to vector<2x8x32xf32>
    %34 = vector.shape_cast %31 : vector<16x32xf32> to vector<2x8x32xf32>
    %35 = vector.extract_strided_slice %32 {offsets = [0, 0, 0], sizes = [2, 8, 8], strides = [1, 1, 1]} : vector<2x8x32xf32> to vector<2x8x8xf32>
    %36 = vector.extract_strided_slice %33 {offsets = [0, 0, 0], sizes = [2, 8, 8], strides = [1, 1, 1]} : vector<2x8x32xf32> to vector<2x8x8xf32>
    %37 = vector.extract_strided_slice %34 {offsets = [0, 0, 0], sizes = [2, 8, 8], strides = [1, 1, 1]} : vector<2x8x32xf32> to vector<2x8x8xf32>
    "tpu.trace_start"() <{level = 10 : i32, message = "bqd,bkd->bqk"}> : () -> ()
    %cst_30 = arith.constant dense<0.000000e+00> : vector<2x8x8xf32>
    %38 = tpu.matmul %35, %36, %cst_30 {dimension_numbers = #tpu.dot_dimension_numbers<[2], [2], [1], [1], [0, 0, 0, 1, 1, 1], [0], [0]>} : vector<2x8x8xf32>, vector<2x8x8xf32>, vector<2x8x8xf32> -> vector<2x8x8xf32>
    "tpu.trace_stop"() : () -> ()
    %cst_31 = arith.constant dense<0xFF800000> : vector<2x8xf32>
    %39 = vector.multi_reduction <maximumf>, %38, %cst_31 [2] : vector<2x8x8xf32> to vector<2x8xf32>
    %40 = vector.shape_cast %39 : vector<2x8xf32> to vector<2x8x1xf32>
    %41 = vector.broadcast %40 : vector<2x8x1xf32> to vector<2x8x8xf32>
    %42 = arith.subf %38, %41 : vector<2x8x8xf32>
    %43 = math.exp %42 : vector<2x8x8xf32>
    %cst_32 = arith.constant dense<0.000000e+00> : vector<2x8xf32>
    %44 = vector.multi_reduction <add>, %43, %cst_32 [2] : vector<2x8x8xf32> to vector<2x8xf32>
    %45 = vector.shape_cast %44 : vector<2x8xf32> to vector<2x8x1xf32>
    %46 = tpu.reciprocal %45 : vector<2x8x1xf32> -> vector<2x8x1xf32>
    %47 = vector.broadcast %46 : vector<2x8x1xf32> to vector<2x8x8xf32>
    %48 = arith.mulf %43, %47 : vector<2x8x8xf32>
    "tpu.trace_start"() <{level = 10 : i32, message = "bqk,bkd->bqd"}> : () -> ()
    %cst_33 = arith.constant dense<0.000000e+00> : vector<2x8x8xf32>
    %49 = tpu.matmul %48, %37, %cst_33 {dimension_numbers = #tpu.dot_dimension_numbers<[2], [1], [1], [2], [0, 0, 0, 1, 1, 2], [0], [0]>} : vector<2x8x8xf32>, vector<2x8x8xf32>, vector<2x8x8xf32> -> vector<2x8x8xf32>
    "tpu.trace_stop"() : () -> ()
    %50 = vector.extract_strided_slice %32 {offsets = [0, 0, 8], sizes = [2, 8, 8], strides = [1, 1, 1]} : vector<2x8x32xf32> to vector<2x8x8xf32>
    %51 = vector.extract_strided_slice %33 {offsets = [0, 0, 8], sizes = [2, 8, 8], strides = [1, 1, 1]} : vector<2x8x32xf32> to vector<2x8x8xf32>
    %52 = vector.extract_strided_slice %34 {offsets = [0, 0, 8], sizes = [2, 8, 8], strides = [1, 1, 1]} : vector<2x8x32xf32> to vector<2x8x8xf32>
    "tpu.trace_start"() <{level = 10 : i32, message = "bqd,bkd->bqk"}> : () -> ()
    %cst_34 = arith.constant dense<0.000000e+00> : vector<2x8x8xf32>
    %53 = tpu.matmul %50, %51, %cst_34 {dimension_numbers = #tpu.dot_dimension_numbers<[2], [2], [1], [1], [0, 0, 0, 1, 1, 1], [0], [0]>} : vector<2x8x8xf32>, vector<2x8x8xf32>, vector<2x8x8xf32> -> vector<2x8x8xf32>
    "tpu.trace_stop"() : () -> ()
    %cst_35 = arith.constant dense<0xFF800000> : vector<2x8xf32>
    %54 = vector.multi_reduction <maximumf>, %53, %cst_35 [2] : vector<2x8x8xf32> to vector<2x8xf32>
    %55 = vector.shape_cast %54 : vector<2x8xf32> to vector<2x8x1xf32>
    %56 = vector.broadcast %55 : vector<2x8x1xf32> to vector<2x8x8xf32>
    %57 = arith.subf %53, %56 : vector<2x8x8xf32>
    %58 = math.exp %57 : vector<2x8x8xf32>
    %cst_36 = arith.constant dense<0.000000e+00> : vector<2x8xf32>
    %59 = vector.multi_reduction <add>, %58, %cst_36 [2] : vector<2x8x8xf32> to vector<2x8xf32>
    %60 = vector.shape_cast %59 : vector<2x8xf32> to vector<2x8x1xf32>
    %61 = tpu.reciprocal %60 : vector<2x8x1xf32> -> vector<2x8x1xf32>
    %62 = vector.broadcast %61 : vector<2x8x1xf32> to vector<2x8x8xf32>
    %63 = arith.mulf %58, %62 : vector<2x8x8xf32>
    "tpu.trace_start"() <{level = 10 : i32, message = "bqk,bkd->bqd"}> : () -> ()
    %cst_37 = arith.constant dense<0.000000e+00> : vector<2x8x8xf32>
    %64 = tpu.matmul %63, %52, %cst_37 {dimension_numbers = #tpu.dot_dimension_numbers<[2], [1], [1], [2], [0, 0, 0, 1, 1, 2], [0], [0]>} : vector<2x8x8xf32>, vector<2x8x8xf32>, vector<2x8x8xf32> -> vector<2x8x8xf32>
    "tpu.trace_stop"() : () -> ()
    %65 = vector.extract_strided_slice %32 {offsets = [0, 0, 16], sizes = [2, 8, 8], strides = [1, 1, 1]} : vector<2x8x32xf32> to vector<2x8x8xf32>
    %66 = vector.extract_strided_slice %33 {offsets = [0, 0, 16], sizes = [2, 8, 8], strides = [1, 1, 1]} : vector<2x8x32xf32> to vector<2x8x8xf32>
    %67 = vector.extract_strided_slice %34 {offsets = [0, 0, 16], sizes = [2, 8, 8], strides = [1, 1, 1]} : vector<2x8x32xf32> to vector<2x8x8xf32>
    "tpu.trace_start"() <{level = 10 : i32, message = "bqd,bkd->bqk"}> : () -> ()
    %cst_38 = arith.constant dense<0.000000e+00> : vector<2x8x8xf32>
    %68 = tpu.matmul %65, %66, %cst_38 {dimension_numbers = #tpu.dot_dimension_numbers<[2], [2], [1], [1], [0, 0, 0, 1, 1, 1], [0], [0]>} : vector<2x8x8xf32>, vector<2x8x8xf32>, vector<2x8x8xf32> -> vector<2x8x8xf32>
    "tpu.trace_stop"() : () -> ()
    %cst_39 = arith.constant dense<0xFF800000> : vector<2x8xf32>
    %69 = vector.multi_reduction <maximumf>, %68, %cst_39 [2] : vector<2x8x8xf32> to vector<2x8xf32>
    %70 = vector.shape_cast %69 : vector<2x8xf32> to vector<2x8x1xf32>
    %71 = vector.broadcast %70 : vector<2x8x1xf32> to vector<2x8x8xf32>
    %72 = arith.subf %68, %71 : vector<2x8x8xf32>
    %73 = math.exp %72 : vector<2x8x8xf32>
    %cst_40 = arith.constant dense<0.000000e+00> : vector<2x8xf32>
    %74 = vector.multi_reduction <add>, %73, %cst_40 [2] : vector<2x8x8xf32> to vector<2x8xf32>
    %75 = vector.shape_cast %74 : vector<2x8xf32> to vector<2x8x1xf32>
    %76 = tpu.reciprocal %75 : vector<2x8x1xf32> -> vector<2x8x1xf32>
    %77 = vector.broadcast %76 : vector<2x8x1xf32> to vector<2x8x8xf32>
    %78 = arith.mulf %73, %77 : vector<2x8x8xf32>
    "tpu.trace_start"() <{level = 10 : i32, message = "bqk,bkd->bqd"}> : () -> ()
    %cst_41 = arith.constant dense<0.000000e+00> : vector<2x8x8xf32>
    %79 = tpu.matmul %78, %67, %cst_41 {dimension_numbers = #tpu.dot_dimension_numbers<[2], [1], [1], [2], [0, 0, 0, 1, 1, 2], [0], [0]>} : vector<2x8x8xf32>, vector<2x8x8xf32>, vector<2x8x8xf32> -> vector<2x8x8xf32>
    "tpu.trace_stop"() : () -> ()
    %80 = vector.extract_strided_slice %32 {offsets = [0, 0, 24], sizes = [2, 8, 8], strides = [1, 1, 1]} : vector<2x8x32xf32> to vector<2x8x8xf32>
    %81 = vector.extract_strided_slice %33 {offsets = [0, 0, 24], sizes = [2, 8, 8], strides = [1, 1, 1]} : vector<2x8x32xf32> to vector<2x8x8xf32>
    %82 = vector.extract_strided_slice %34 {offsets = [0, 0, 24], sizes = [2, 8, 8], strides = [1, 1, 1]} : vector<2x8x32xf32> to vector<2x8x8xf32>
    "tpu.trace_start"() <{level = 10 : i32, message = "bqd,bkd->bqk"}> : () -> ()
    %cst_42 = arith.constant dense<0.000000e+00> : vector<2x8x8xf32>
    %83 = tpu.matmul %80, %81, %cst_42 {dimension_numbers = #tpu.dot_dimension_numbers<[2], [2], [1], [1], [0, 0, 0, 1, 1, 1], [0], [0]>} : vector<2x8x8xf32>, vector<2x8x8xf32>, vector<2x8x8xf32> -> vector<2x8x8xf32>
    "tpu.trace_stop"() : () -> ()
    %cst_43 = arith.constant dense<0xFF800000> : vector<2x8xf32>
    %84 = vector.multi_reduction <maximumf>, %83, %cst_43 [2] : vector<2x8x8xf32> to vector<2x8xf32>
    %85 = vector.shape_cast %84 : vector<2x8xf32> to vector<2x8x1xf32>
    %86 = vector.broadcast %85 : vector<2x8x1xf32> to vector<2x8x8xf32>
    %87 = arith.subf %83, %86 : vector<2x8x8xf32>
    %88 = math.exp %87 : vector<2x8x8xf32>
    %cst_44 = arith.constant dense<0.000000e+00> : vector<2x8xf32>
    %89 = vector.multi_reduction <add>, %88, %cst_44 [2] : vector<2x8x8xf32> to vector<2x8xf32>
    %90 = vector.shape_cast %89 : vector<2x8xf32> to vector<2x8x1xf32>
    %91 = tpu.reciprocal %90 : vector<2x8x1xf32> -> vector<2x8x1xf32>
    %92 = vector.broadcast %91 : vector<2x8x1xf32> to vector<2x8x8xf32>
    %93 = arith.mulf %88, %92 : vector<2x8x8xf32>
    "tpu.trace_start"() <{level = 10 : i32, message = "bqk,bkd->bqd"}> : () -> ()
    %cst_45 = arith.constant dense<0.000000e+00> : vector<2x8x8xf32>
    %94 = tpu.matmul %93, %82, %cst_45 {dimension_numbers = #tpu.dot_dimension_numbers<[2], [1], [1], [2], [0, 0, 0, 1, 1, 2], [0], [0]>} : vector<2x8x8xf32>, vector<2x8x8xf32>, vector<2x8x8xf32> -> vector<2x8x8xf32>
    "tpu.trace_stop"() : () -> ()
    %95 = tpu.concatenate %49, %64, %79, %94 in 2 : vector<2x8x8xf32>, vector<2x8x8xf32>, vector<2x8x8xf32>, vector<2x8x8xf32> -> vector<2x8x32xf32>
    %96 = vector.shape_cast %95 : vector<2x8x32xf32> to vector<16x32xf32>
    %c0_46 = arith.constant 0 : index
    %c0_47 = arith.constant 0 : index
    %c0_48 = arith.constant 0 : index
    %97 = vector.load %arg9[%c0_46, %c0_47, %c0_48] : memref<1x32x32xf32, #tpu.memory_space<vmem>>, vector<1x32x32xf32>
    %98 = vector.shape_cast %97 : vector<1x32x32xf32> to vector<32x32xf32>
    %cst_49 = arith.constant dense<0.000000e+00> : vector<16x32xf32>
    %99 = tpu.matmul %96, %98, %cst_49 {dimension_numbers = #tpu.dot_dimension_numbers<[1], [0], [0], [1], [0, 0, 1, 1], [], []>} : vector<16x32xf32>, vector<32x32xf32>, vector<16x32xf32> -> vector<16x32xf32>
    %c0_50 = arith.constant 0 : index
    %c0_51 = arith.constant 0 : index
    %c0_52 = arith.constant 0 : index
    %100 = vector.load %arg10[%c0_50, %c0_51, %c0_52] : memref<1x1x32xf32, #tpu.memory_space<vmem>>, vector<1x1x32xf32>
    %101 = vector.shape_cast %100 : vector<1x1x32xf32> to vector<1x32xf32>
    %102 = vector.broadcast %101 : vector<1x32xf32> to vector<16x32xf32>
    %103 = arith.addf %99, %102 : vector<16x32xf32>
    %104 = arith.addf %3, %103 : vector<16x32xf32>
    %105 = vector.extract_strided_slice %12 {offsets = [0, 0], sizes = [1, 32], strides = [1, 1]} : vector<3x32xf32> to vector<1x32xf32>
    %106 = vector.extract_strided_slice %14 {offsets = [0, 0], sizes = [1, 32], strides = [1, 1]} : vector<3x32xf32> to vector<1x32xf32>
    %cst_53 = arith.constant dense<0.000000e+00> : vector<16xf32>
    %107 = vector.multi_reduction <add>, %104, %cst_53 [1] : vector<16x32xf32> to vector<16xf32>
    %108 = vector.shape_cast %107 : vector<16xf32> to vector<16x1xf32>
    %cst_54 = arith.constant 3.200000e+01 : f32
    %109 = vector.broadcast %cst_54 : f32 to vector<16x1xf32>
    %110 = arith.divf %108, %109 : vector<16x1xf32>
    %111 = vector.broadcast %110 : vector<16x1xf32> to vector<16x32xf32>
    %112 = arith.subf %104, %111 : vector<16x32xf32>
    %113 = arith.mulf %112, %112 : vector<16x32xf32>
    %cst_55 = arith.constant dense<0.000000e+00> : vector<16xf32>
    %114 = vector.multi_reduction <add>, %113, %cst_55 [1] : vector<16x32xf32> to vector<16xf32>
    %115 = vector.shape_cast %114 : vector<16xf32> to vector<16x1xf32>
    %cst_56 = arith.constant 3.200000e+01 : f32
    %116 = vector.broadcast %cst_56 : f32 to vector<16x1xf32>
    %117 = arith.divf %115, %116 : vector<16x1xf32>
    %cst_57 = arith.constant 9.99999974E-6 : f32
    %118 = vector.broadcast %cst_57 : f32 to vector<16x1xf32>
    %119 = arith.addf %117, %118 : vector<16x1xf32>
    %120 = math.rsqrt %119 : vector<16x1xf32>
    %121 = vector.broadcast %120 : vector<16x1xf32> to vector<16x32xf32>
    %122 = arith.mulf %112, %121 : vector<16x32xf32>
    %123 = vector.broadcast %105 : vector<1x32xf32> to vector<16x32xf32>
    %124 = arith.mulf %122, %123 : vector<16x32xf32>
    %125 = vector.broadcast %106 : vector<1x32xf32> to vector<16x32xf32>
    %126 = arith.addf %124, %125 : vector<16x32xf32>
    %c0_58 = arith.constant 0 : index
    %c0_59 = arith.constant 0 : index
    %c0_60 = arith.constant 0 : index
    %127 = vector.load %arg12[%c0_58, %c0_59, %c0_60] : memref<1x4x32xf32, #tpu.memory_space<vmem>>, vector<1x4x32xf32>
    %128 = vector.shape_cast %127 : vector<1x4x32xf32> to vector<4x32xf32>
    %129 = arith.addf %126, %5 : vector<16x32xf32>
    %c0_61 = arith.constant 0 : index
    %c0_62 = arith.constant 0 : index
    %c0_63 = arith.constant 0 : index
    %c0_64 = arith.constant 0 : index
    %130 = vector.load %arg11[%c0_61, %c0_62, %c0_63, %c0_64] : memref<1x4x32x32xf32, #tpu.memory_space<vmem>>, vector<1x1x32x32xf32>
    %131 = vector.shape_cast %130 : vector<1x1x32x32xf32> to vector<32x32xf32>
    %cst_65 = arith.constant dense<0.000000e+00> : vector<16x32xf32>
    %132 = tpu.matmul %129, %131, %cst_65 {dimension_numbers = #tpu.dot_dimension_numbers<[1], [0], [0], [1], [0, 0, 1, 1], [], []>} : vector<16x32xf32>, vector<32x32xf32>, vector<16x32xf32> -> vector<16x32xf32>
    %133 = vector.extract_strided_slice %128 {offsets = [0, 0], sizes = [1, 32], strides = [1, 1]} : vector<4x32xf32> to vector<1x32xf32>
    %134 = vector.broadcast %133 : vector<1x32xf32> to vector<16x32xf32>
    %135 = arith.addf %132, %134 : vector<16x32xf32>
    %c0_66 = arith.constant 0 : index
    %c1 = arith.constant 1 : index
    %c0_67 = arith.constant 0 : index
    %c0_68 = arith.constant 0 : index
    %136 = vector.load %arg11[%c0_66, %c1, %c0_67, %c0_68] : memref<1x4x32x32xf32, #tpu.memory_space<vmem>>, vector<1x1x32x32xf32>
    %137 = vector.shape_cast %136 : vector<1x1x32x32xf32> to vector<32x32xf32>
    %cst_69 = arith.constant dense<0.000000e+00> : vector<32x32xf32>
    %138 = tpu.matmul %10, %137, %cst_69 {dimension_numbers = #tpu.dot_dimension_numbers<[1], [0], [0], [1], [0, 0, 1, 1], [], []>} : vector<32x32xf32>, vector<32x32xf32>, vector<32x32xf32> -> vector<32x32xf32>
    %139 = vector.extract_strided_slice %128 {offsets = [1, 0], sizes = [1, 32], strides = [1, 1]} : vector<4x32xf32> to vector<1x32xf32>
    %140 = vector.broadcast %139 : vector<1x32xf32> to vector<32x32xf32>
    %141 = arith.addf %138, %140 : vector<32x32xf32>
    %c0_70 = arith.constant 0 : index
    %c2 = arith.constant 2 : index
    %c0_71 = arith.constant 0 : index
    %c0_72 = arith.constant 0 : index
    %142 = vector.load %arg11[%c0_70, %c2, %c0_71, %c0_72] : memref<1x4x32x32xf32, #tpu.memory_space<vmem>>, vector<1x1x32x32xf32>
    %143 = vector.shape_cast %142 : vector<1x1x32x32xf32> to vector<32x32xf32>
    %cst_73 = arith.constant dense<0.000000e+00> : vector<32x32xf32>
    %144 = tpu.matmul %7, %143, %cst_73 {dimension_numbers = #tpu.dot_dimension_numbers<[1], [0], [0], [1], [0, 0, 1, 1], [], []>} : vector<32x32xf32>, vector<32x32xf32>, vector<32x32xf32> -> vector<32x32xf32>
    %145 = vector.extract_strided_slice %128 {offsets = [2, 0], sizes = [1, 32], strides = [1, 1]} : vector<4x32xf32> to vector<1x32xf32>
    %146 = vector.broadcast %145 : vector<1x32xf32> to vector<32x32xf32>
    %147 = arith.addf %144, %146 : vector<32x32xf32>
    %148 = vector.shape_cast %135 : vector<16x32xf32> to vector<2x8x32xf32>
    %149 = vector.shape_cast %141 : vector<32x32xf32> to vector<2x16x32xf32>
    %150 = vector.shape_cast %147 : vector<32x32xf32> to vector<2x16x32xf32>
    %151 = vector.extract_strided_slice %148 {offsets = [0, 0, 0], sizes = [2, 8, 8], strides = [1, 1, 1]} : vector<2x8x32xf32> to vector<2x8x8xf32>
    %152 = vector.extract_strided_slice %149 {offsets = [0, 0, 0], sizes = [2, 16, 8], strides = [1, 1, 1]} : vector<2x16x32xf32> to vector<2x16x8xf32>
    %153 = vector.extract_strided_slice %150 {offsets = [0, 0, 0], sizes = [2, 16, 8], strides = [1, 1, 1]} : vector<2x16x32xf32> to vector<2x16x8xf32>
    "tpu.trace_start"() <{level = 10 : i32, message = "bqd,bkd->bqk"}> : () -> ()
    %cst_74 = arith.constant dense<0.000000e+00> : vector<2x8x16xf32>
    %154 = tpu.matmul %151, %152, %cst_74 {dimension_numbers = #tpu.dot_dimension_numbers<[2], [2], [1], [1], [0, 0, 0, 1, 1, 1], [0], [0]>} : vector<2x8x8xf32>, vector<2x16x8xf32>, vector<2x8x16xf32> -> vector<2x8x16xf32>
    "tpu.trace_stop"() : () -> ()
    %cst_75 = arith.constant dense<0xFF800000> : vector<2x8xf32>
    %155 = vector.multi_reduction <maximumf>, %154, %cst_75 [2] : vector<2x8x16xf32> to vector<2x8xf32>
    %156 = vector.shape_cast %155 : vector<2x8xf32> to vector<2x8x1xf32>
    %157 = vector.broadcast %156 : vector<2x8x1xf32> to vector<2x8x16xf32>
    %158 = arith.subf %154, %157 : vector<2x8x16xf32>
    %159 = math.exp %158 : vector<2x8x16xf32>
    %cst_76 = arith.constant dense<0.000000e+00> : vector<2x8xf32>
    %160 = vector.multi_reduction <add>, %159, %cst_76 [2] : vector<2x8x16xf32> to vector<2x8xf32>
    %161 = vector.shape_cast %160 : vector<2x8xf32> to vector<2x8x1xf32>
    %162 = tpu.reciprocal %161 : vector<2x8x1xf32> -> vector<2x8x1xf32>
    %163 = vector.broadcast %162 : vector<2x8x1xf32> to vector<2x8x16xf32>
    %164 = arith.mulf %159, %163 : vector<2x8x16xf32>
    "tpu.trace_start"() <{level = 10 : i32, message = "bqk,bkd->bqd"}> : () -> ()
    %cst_77 = arith.constant dense<0.000000e+00> : vector<2x8x8xf32>
    %165 = tpu.matmul %164, %153, %cst_77 {dimension_numbers = #tpu.dot_dimension_numbers<[2], [1], [1], [2], [0, 0, 0, 1, 1, 2], [0], [0]>} : vector<2x8x16xf32>, vector<2x16x8xf32>, vector<2x8x8xf32> -> vector<2x8x8xf32>
    "tpu.trace_stop"() : () -> ()
    %166 = vector.extract_strided_slice %148 {offsets = [0, 0, 8], sizes = [2, 8, 8], strides = [1, 1, 1]} : vector<2x8x32xf32> to vector<2x8x8xf32>
    %167 = vector.extract_strided_slice %149 {offsets = [0, 0, 8], sizes = [2, 16, 8], strides = [1, 1, 1]} : vector<2x16x32xf32> to vector<2x16x8xf32>
    %168 = vector.extract_strided_slice %150 {offsets = [0, 0, 8], sizes = [2, 16, 8], strides = [1, 1, 1]} : vector<2x16x32xf32> to vector<2x16x8xf32>
    "tpu.trace_start"() <{level = 10 : i32, message = "bqd,bkd->bqk"}> : () -> ()
    %cst_78 = arith.constant dense<0.000000e+00> : vector<2x8x16xf32>
    %169 = tpu.matmul %166, %167, %cst_78 {dimension_numbers = #tpu.dot_dimension_numbers<[2], [2], [1], [1], [0, 0, 0, 1, 1, 1], [0], [0]>} : vector<2x8x8xf32>, vector<2x16x8xf32>, vector<2x8x16xf32> -> vector<2x8x16xf32>
    "tpu.trace_stop"() : () -> ()
    %cst_79 = arith.constant dense<0xFF800000> : vector<2x8xf32>
    %170 = vector.multi_reduction <maximumf>, %169, %cst_79 [2] : vector<2x8x16xf32> to vector<2x8xf32>
    %171 = vector.shape_cast %170 : vector<2x8xf32> to vector<2x8x1xf32>
    %172 = vector.broadcast %171 : vector<2x8x1xf32> to vector<2x8x16xf32>
    %173 = arith.subf %169, %172 : vector<2x8x16xf32>
    %174 = math.exp %173 : vector<2x8x16xf32>
    %cst_80 = arith.constant dense<0.000000e+00> : vector<2x8xf32>
    %175 = vector.multi_reduction <add>, %174, %cst_80 [2] : vector<2x8x16xf32> to vector<2x8xf32>
    %176 = vector.shape_cast %175 : vector<2x8xf32> to vector<2x8x1xf32>
    %177 = tpu.reciprocal %176 : vector<2x8x1xf32> -> vector<2x8x1xf32>
    %178 = vector.broadcast %177 : vector<2x8x1xf32> to vector<2x8x16xf32>
    %179 = arith.mulf %174, %178 : vector<2x8x16xf32>
    "tpu.trace_start"() <{level = 10 : i32, message = "bqk,bkd->bqd"}> : () -> ()
    %cst_81 = arith.constant dense<0.000000e+00> : vector<2x8x8xf32>
    %180 = tpu.matmul %179, %168, %cst_81 {dimension_numbers = #tpu.dot_dimension_numbers<[2], [1], [1], [2], [0, 0, 0, 1, 1, 2], [0], [0]>} : vector<2x8x16xf32>, vector<2x16x8xf32>, vector<2x8x8xf32> -> vector<2x8x8xf32>
    "tpu.trace_stop"() : () -> ()
    %181 = vector.extract_strided_slice %148 {offsets = [0, 0, 16], sizes = [2, 8, 8], strides = [1, 1, 1]} : vector<2x8x32xf32> to vector<2x8x8xf32>
    %182 = vector.extract_strided_slice %149 {offsets = [0, 0, 16], sizes = [2, 16, 8], strides = [1, 1, 1]} : vector<2x16x32xf32> to vector<2x16x8xf32>
    %183 = vector.extract_strided_slice %150 {offsets = [0, 0, 16], sizes = [2, 16, 8], strides = [1, 1, 1]} : vector<2x16x32xf32> to vector<2x16x8xf32>
    "tpu.trace_start"() <{level = 10 : i32, message = "bqd,bkd->bqk"}> : () -> ()
    %cst_82 = arith.constant dense<0.000000e+00> : vector<2x8x16xf32>
    %184 = tpu.matmul %181, %182, %cst_82 {dimension_numbers = #tpu.dot_dimension_numbers<[2], [2], [1], [1], [0, 0, 0, 1, 1, 1], [0], [0]>} : vector<2x8x8xf32>, vector<2x16x8xf32>, vector<2x8x16xf32> -> vector<2x8x16xf32>
    "tpu.trace_stop"() : () -> ()
    %cst_83 = arith.constant dense<0xFF800000> : vector<2x8xf32>
    %185 = vector.multi_reduction <maximumf>, %184, %cst_83 [2] : vector<2x8x16xf32> to vector<2x8xf32>
    %186 = vector.shape_cast %185 : vector<2x8xf32> to vector<2x8x1xf32>
    %187 = vector.broadcast %186 : vector<2x8x1xf32> to vector<2x8x16xf32>
    %188 = arith.subf %184, %187 : vector<2x8x16xf32>
    %189 = math.exp %188 : vector<2x8x16xf32>
    %cst_84 = arith.constant dense<0.000000e+00> : vector<2x8xf32>
    %190 = vector.multi_reduction <add>, %189, %cst_84 [2] : vector<2x8x16xf32> to vector<2x8xf32>
    %191 = vector.shape_cast %190 : vector<2x8xf32> to vector<2x8x1xf32>
    %192 = tpu.reciprocal %191 : vector<2x8x1xf32> -> vector<2x8x1xf32>
    %193 = vector.broadcast %192 : vector<2x8x1xf32> to vector<2x8x16xf32>
    %194 = arith.mulf %189, %193 : vector<2x8x16xf32>
    "tpu.trace_start"() <{level = 10 : i32, message = "bqk,bkd->bqd"}> : () -> ()
    %cst_85 = arith.constant dense<0.000000e+00> : vector<2x8x8xf32>
    %195 = tpu.matmul %194, %183, %cst_85 {dimension_numbers = #tpu.dot_dimension_numbers<[2], [1], [1], [2], [0, 0, 0, 1, 1, 2], [0], [0]>} : vector<2x8x16xf32>, vector<2x16x8xf32>, vector<2x8x8xf32> -> vector<2x8x8xf32>
    "tpu.trace_stop"() : () -> ()
    %196 = vector.extract_strided_slice %148 {offsets = [0, 0, 24], sizes = [2, 8, 8], strides = [1, 1, 1]} : vector<2x8x32xf32> to vector<2x8x8xf32>
    %197 = vector.extract_strided_slice %149 {offsets = [0, 0, 24], sizes = [2, 16, 8], strides = [1, 1, 1]} : vector<2x16x32xf32> to vector<2x16x8xf32>
    %198 = vector.extract_strided_slice %150 {offsets = [0, 0, 24], sizes = [2, 16, 8], strides = [1, 1, 1]} : vector<2x16x32xf32> to vector<2x16x8xf32>
    "tpu.trace_start"() <{level = 10 : i32, message = "bqd,bkd->bqk"}> : () -> ()
    %cst_86 = arith.constant dense<0.000000e+00> : vector<2x8x16xf32>
    %199 = tpu.matmul %196, %197, %cst_86 {dimension_numbers = #tpu.dot_dimension_numbers<[2], [2], [1], [1], [0, 0, 0, 1, 1, 1], [0], [0]>} : vector<2x8x8xf32>, vector<2x16x8xf32>, vector<2x8x16xf32> -> vector<2x8x16xf32>
    "tpu.trace_stop"() : () -> ()
    %cst_87 = arith.constant dense<0xFF800000> : vector<2x8xf32>
    %200 = vector.multi_reduction <maximumf>, %199, %cst_87 [2] : vector<2x8x16xf32> to vector<2x8xf32>
    %201 = vector.shape_cast %200 : vector<2x8xf32> to vector<2x8x1xf32>
    %202 = vector.broadcast %201 : vector<2x8x1xf32> to vector<2x8x16xf32>
    %203 = arith.subf %199, %202 : vector<2x8x16xf32>
    %204 = math.exp %203 : vector<2x8x16xf32>
    %cst_88 = arith.constant dense<0.000000e+00> : vector<2x8xf32>
    %205 = vector.multi_reduction <add>, %204, %cst_88 [2] : vector<2x8x16xf32> to vector<2x8xf32>
    %206 = vector.shape_cast %205 : vector<2x8xf32> to vector<2x8x1xf32>
    %207 = tpu.reciprocal %206 : vector<2x8x1xf32> -> vector<2x8x1xf32>
    %208 = vector.broadcast %207 : vector<2x8x1xf32> to vector<2x8x16xf32>
    %209 = arith.mulf %204, %208 : vector<2x8x16xf32>
    "tpu.trace_start"() <{level = 10 : i32, message = "bqk,bkd->bqd"}> : () -> ()
    %cst_89 = arith.constant dense<0.000000e+00> : vector<2x8x8xf32>
    %210 = tpu.matmul %209, %198, %cst_89 {dimension_numbers = #tpu.dot_dimension_numbers<[2], [1], [1], [2], [0, 0, 0, 1, 1, 2], [0], [0]>} : vector<2x8x16xf32>, vector<2x16x8xf32>, vector<2x8x8xf32> -> vector<2x8x8xf32>
    "tpu.trace_stop"() : () -> ()
    %211 = tpu.concatenate %165, %180, %195, %210 in 2 : vector<2x8x8xf32>, vector<2x8x8xf32>, vector<2x8x8xf32>, vector<2x8x8xf32> -> vector<2x8x32xf32>
    %212 = vector.shape_cast %211 : vector<2x8x32xf32> to vector<16x32xf32>
    %c0_90 = arith.constant 0 : index
    %c3 = arith.constant 3 : index
    %c0_91 = arith.constant 0 : index
    %c0_92 = arith.constant 0 : index
    %213 = vector.load %arg11[%c0_90, %c3, %c0_91, %c0_92] : memref<1x4x32x32xf32, #tpu.memory_space<vmem>>, vector<1x1x32x32xf32>
    %214 = vector.shape_cast %213 : vector<1x1x32x32xf32> to vector<32x32xf32>
    %cst_93 = arith.constant dense<0.000000e+00> : vector<16x32xf32>
    %215 = tpu.matmul %212, %214, %cst_93 {dimension_numbers = #tpu.dot_dimension_numbers<[1], [0], [0], [1], [0, 0, 1, 1], [], []>} : vector<16x32xf32>, vector<32x32xf32>, vector<16x32xf32> -> vector<16x32xf32>
    %216 = vector.extract_strided_slice %128 {offsets = [3, 0], sizes = [1, 32], strides = [1, 1]} : vector<4x32xf32> to vector<1x32xf32>
    %217 = vector.broadcast %216 : vector<1x32xf32> to vector<16x32xf32>
    %218 = arith.addf %215, %217 : vector<16x32xf32>
    %219 = arith.addf %126, %218 : vector<16x32xf32>
    %220 = vector.extract_strided_slice %12 {offsets = [1, 0], sizes = [1, 32], strides = [1, 1]} : vector<3x32xf32> to vector<1x32xf32>
    %221 = vector.extract_strided_slice %14 {offsets = [1, 0], sizes = [1, 32], strides = [1, 1]} : vector<3x32xf32> to vector<1x32xf32>
    %cst_94 = arith.constant dense<0.000000e+00> : vector<16xf32>
    %222 = vector.multi_reduction <add>, %219, %cst_94 [1] : vector<16x32xf32> to vector<16xf32>
    %223 = vector.shape_cast %222 : vector<16xf32> to vector<16x1xf32>
    %cst_95 = arith.constant 3.200000e+01 : f32
    %224 = vector.broadcast %cst_95 : f32 to vector<16x1xf32>
    %225 = arith.divf %223, %224 : vector<16x1xf32>
    %226 = vector.broadcast %225 : vector<16x1xf32> to vector<16x32xf32>
    %227 = arith.subf %219, %226 : vector<16x32xf32>
    %228 = arith.mulf %227, %227 : vector<16x32xf32>
    %cst_96 = arith.constant dense<0.000000e+00> : vector<16xf32>
    %229 = vector.multi_reduction <add>, %228, %cst_96 [1] : vector<16x32xf32> to vector<16xf32>
    %230 = vector.shape_cast %229 : vector<16xf32> to vector<16x1xf32>
    %cst_97 = arith.constant 3.200000e+01 : f32
    %231 = vector.broadcast %cst_97 : f32 to vector<16x1xf32>
    %232 = arith.divf %230, %231 : vector<16x1xf32>
    %cst_98 = arith.constant 9.99999974E-6 : f32
    %233 = vector.broadcast %cst_98 : f32 to vector<16x1xf32>
    %234 = arith.addf %232, %233 : vector<16x1xf32>
    %235 = math.rsqrt %234 : vector<16x1xf32>
    %236 = vector.broadcast %235 : vector<16x1xf32> to vector<16x32xf32>
    %237 = arith.mulf %227, %236 : vector<16x32xf32>
    %238 = vector.broadcast %220 : vector<1x32xf32> to vector<16x32xf32>
    %239 = arith.mulf %237, %238 : vector<16x32xf32>
    %240 = vector.broadcast %221 : vector<1x32xf32> to vector<16x32xf32>
    %241 = arith.addf %239, %240 : vector<16x32xf32>
    %c0_99 = arith.constant 0 : index
    %c0_100 = arith.constant 0 : index
    %c0_101 = arith.constant 0 : index
    %242 = vector.load %arg13[%c0_99, %c0_100, %c0_101] : memref<1x32x64xf32, #tpu.memory_space<vmem>>, vector<1x32x64xf32>
    %243 = vector.shape_cast %242 : vector<1x32x64xf32> to vector<32x64xf32>
    %cst_102 = arith.constant dense<0.000000e+00> : vector<16x64xf32>
    %244 = tpu.matmul %241, %243, %cst_102 {dimension_numbers = #tpu.dot_dimension_numbers<[1], [0], [0], [1], [0, 0, 1, 1], [], []>} : vector<16x32xf32>, vector<32x64xf32>, vector<16x64xf32> -> vector<16x64xf32>
    %c0_103 = arith.constant 0 : index
    %c0_104 = arith.constant 0 : index
    %c0_105 = arith.constant 0 : index
    %245 = vector.load %arg14[%c0_103, %c0_104, %c0_105] : memref<1x1x64xf32, #tpu.memory_space<vmem>>, vector<1x1x64xf32>
    %246 = vector.shape_cast %245 : vector<1x1x64xf32> to vector<1x64xf32>
    %247 = vector.broadcast %246 : vector<1x64xf32> to vector<16x64xf32>
    %248 = arith.addf %244, %247 : vector<16x64xf32>
    %cst_106 = arith.constant 0.000000e+00 : f32
    %249 = vector.broadcast %cst_106 : f32 to vector<16x64xf32>
    %250 = arith.maximumf %248, %249 : vector<16x64xf32>
    %c0_107 = arith.constant 0 : index
    %c0_108 = arith.constant 0 : index
    %c0_109 = arith.constant 0 : index
    %251 = vector.load %arg15[%c0_107, %c0_108, %c0_109] : memref<1x64x32xf32, #tpu.memory_space<vmem>>, vector<1x64x32xf32>
    %252 = vector.shape_cast %251 : vector<1x64x32xf32> to vector<64x32xf32>
    %cst_110 = arith.constant dense<0.000000e+00> : vector<16x32xf32>
    %253 = tpu.matmul %250, %252, %cst_110 {dimension_numbers = #tpu.dot_dimension_numbers<[1], [0], [0], [1], [0, 0, 1, 1], [], []>} : vector<16x64xf32>, vector<64x32xf32>, vector<16x32xf32> -> vector<16x32xf32>
    %c0_111 = arith.constant 0 : index
    %c0_112 = arith.constant 0 : index
    %c0_113 = arith.constant 0 : index
    %254 = vector.load %arg16[%c0_111, %c0_112, %c0_113] : memref<1x1x32xf32, #tpu.memory_space<vmem>>, vector<1x1x32xf32>
    %255 = vector.shape_cast %254 : vector<1x1x32xf32> to vector<1x32xf32>
    %256 = vector.broadcast %255 : vector<1x32xf32> to vector<16x32xf32>
    %257 = arith.addf %253, %256 : vector<16x32xf32>
    %258 = arith.addf %241, %257 : vector<16x32xf32>
    %259 = vector.extract_strided_slice %12 {offsets = [2, 0], sizes = [1, 32], strides = [1, 1]} : vector<3x32xf32> to vector<1x32xf32>
    %260 = vector.extract_strided_slice %14 {offsets = [2, 0], sizes = [1, 32], strides = [1, 1]} : vector<3x32xf32> to vector<1x32xf32>
    %cst_114 = arith.constant dense<0.000000e+00> : vector<16xf32>
    %261 = vector.multi_reduction <add>, %258, %cst_114 [1] : vector<16x32xf32> to vector<16xf32>
    %262 = vector.shape_cast %261 : vector<16xf32> to vector<16x1xf32>
    %cst_115 = arith.constant 3.200000e+01 : f32
    %263 = vector.broadcast %cst_115 : f32 to vector<16x1xf32>
    %264 = arith.divf %262, %263 : vector<16x1xf32>
    %265 = vector.broadcast %264 : vector<16x1xf32> to vector<16x32xf32>
    %266 = arith.subf %258, %265 : vector<16x32xf32>
    %267 = arith.mulf %266, %266 : vector<16x32xf32>
    %cst_116 = arith.constant dense<0.000000e+00> : vector<16xf32>
    %268 = vector.multi_reduction <add>, %267, %cst_116 [1] : vector<16x32xf32> to vector<16xf32>
    %269 = vector.shape_cast %268 : vector<16xf32> to vector<16x1xf32>
    %cst_117 = arith.constant 3.200000e+01 : f32
    %270 = vector.broadcast %cst_117 : f32 to vector<16x1xf32>
    %271 = arith.divf %269, %270 : vector<16x1xf32>
    %cst_118 = arith.constant 9.99999974E-6 : f32
    %272 = vector.broadcast %cst_118 : f32 to vector<16x1xf32>
    %273 = arith.addf %271, %272 : vector<16x1xf32>
    %274 = math.rsqrt %273 : vector<16x1xf32>
    %275 = vector.broadcast %274 : vector<16x1xf32> to vector<16x32xf32>
    %276 = arith.mulf %266, %275 : vector<16x32xf32>
    %277 = vector.broadcast %259 : vector<1x32xf32> to vector<16x32xf32>
    %278 = arith.mulf %276, %277 : vector<16x32xf32>
    %279 = vector.broadcast %260 : vector<1x32xf32> to vector<16x32xf32>
    %280 = arith.addf %278, %279 : vector<16x32xf32>
    %c0_119 = arith.constant 0 : index
    %c0_120 = arith.constant 0 : index
    %281 = vector.load %arg22[%c0_119, %c0_120] : memref<16x32xf32, #tpu.memory_space<vmem>>, vector<16x32xf32>
    tpu.vector_store %arg22[%c0_119, %c0_120], %280 {strides = array<i32>} : memref<16x32xf32, #tpu.memory_space<vmem>>, vector<16x32xf32>,
    %c1_i32 = arith.constant 1 : i32
    %282 = arith.cmpi eq, %arg0, %c1_i32 : i32
    %283 = arith.extui %282 : i1 to i32
    %c0_i32_121 = arith.constant 0 : i32
    %284 = arith.cmpi ne, %283, %c0_i32_121 : i32
    scf.if %284 {
      %c0_122 = arith.constant 0 : index
      %c0_123 = arith.constant 0 : index
      %285 = vector.load %arg19[%c0_122, %c0_123] : memref<1x32xf32, #tpu.memory_space<vmem>>, vector<1x32xf32>
      %c0_124 = arith.constant 0 : index
      %c0_125 = arith.constant 0 : index
      %286 = vector.load %arg20[%c0_124, %c0_125] : memref<1x32xf32, #tpu.memory_space<vmem>>, vector<1x32xf32>
      %cst_126 = arith.constant dense<0.000000e+00> : vector<16xf32>
      %287 = vector.multi_reduction <add>, %280, %cst_126 [1] : vector<16x32xf32> to vector<16xf32>
      %288 = vector.shape_cast %287 : vector<16xf32> to vector<16x1xf32>
      %cst_127 = arith.constant 3.200000e+01 : f32
      %289 = vector.broadcast %cst_127 : f32 to vector<16x1xf32>
      %290 = arith.divf %288, %289 : vector<16x1xf32>
      %291 = vector.broadcast %290 : vector<16x1xf32> to vector<16x32xf32>
      %292 = arith.subf %280, %291 : vector<16x32xf32>
      %293 = arith.mulf %292, %292 : vector<16x32xf32>
      %cst_128 = arith.constant dense<0.000000e+00> : vector<16xf32>
      %294 = vector.multi_reduction <add>, %293, %cst_128 [1] : vector<16x32xf32> to vector<16xf32>
      %295 = vector.shape_cast %294 : vector<16xf32> to vector<16x1xf32>
      %cst_129 = arith.constant 3.200000e+01 : f32
      %296 = vector.broadcast %cst_129 : f32 to vector<16x1xf32>
      %297 = arith.divf %295, %296 : vector<16x1xf32>
      %cst_130 = arith.constant 9.99999974E-6 : f32
      %298 = vector.broadcast %cst_130 : f32 to vector<16x1xf32>
      %299 = arith.addf %297, %298 : vector<16x1xf32>
      %300 = math.rsqrt %299 : vector<16x1xf32>
      %301 = vector.broadcast %300 : vector<16x1xf32> to vector<16x32xf32>
      %302 = arith.mulf %292, %301 : vector<16x32xf32>
      %303 = vector.broadcast %285 : vector<1x32xf32> to vector<16x32xf32>
      %304 = arith.mulf %302, %303 : vector<16x32xf32>
      %305 = vector.broadcast %286 : vector<1x32xf32> to vector<16x32xf32>
      %306 = arith.addf %304, %305 : vector<16x32xf32>
      %307 = vector.shape_cast %306 : vector<16x32xf32> to vector<2x8x32xf32>
      %c0_131 = arith.constant 0 : index
      %c0_132 = arith.constant 0 : index
      %c0_133 = arith.constant 0 : index
      %308 = vector.load %arg21[%c0_131, %c0_132, %c0_133] : memref<2x8x32xf32, #tpu.memory_space<vmem>>, vector<2x8x32xf32>
      tpu.vector_store %arg21[%c0_131, %c0_132, %c0_133], %307 {strides = array<i32>} : memref<2x8x32xf32, #tpu.memory_space<vmem>>, vector<2x8x32xf32>,
    } else {
    }
    return
  }
  func.func @transform_0(%arg0: i32) -> (i32, i32, i32) {
    %c0_i32 = arith.constant 0 : i32
    %c0_i32_0 = arith.constant 0 : i32
    %c0_i32_1 = arith.constant 0 : i32
    %c0_i32_2 = arith.constant 0 : i32
    return %c0_i32, %c0_i32_0, %c0_i32_1 : i32, i32, i32
  }
  func.func @transform_1(%arg0: i32) -> (i32, i32, i32) {
    %c0_i32 = arith.constant 0 : i32
    %c0_i32_0 = arith.constant 0 : i32
    %c0_i32_1 = arith.constant 0 : i32
    %c0_i32_2 = arith.constant 0 : i32
    return %c0_i32, %c0_i32_0, %c0_i32_1 : i32, i32, i32
  }
  func.func @transform_2(%arg0: i32) -> (i32, i32, i32) {
    %c0_i32 = arith.constant 0 : i32
    %c0_i32_0 = arith.constant 0 : i32
    %c0_i32_1 = arith.constant 0 : i32
    %c0_i32_2 = arith.constant 0 : i32
    return %c0_i32, %c0_i32_0, %c0_i32_1 : i32, i32, i32
  }
  func.func @transform_3(%arg0: i32) -> (i32, i32, i32) {
    %c0_i32 = arith.constant 0 : i32
    %c0_i32_0 = arith.constant 0 : i32
    %c0_i32_1 = arith.constant 0 : i32
    %c0_i32_2 = arith.constant 0 : i32
    return %c0_i32, %c0_i32_0, %c0_i32_1 : i32, i32, i32
  }
  func.func @transform_4(%arg0: i32) -> (i32, i32, i32) {
    %c0_i32 = arith.constant 0 : i32
    %c0_i32_0 = arith.constant 0 : i32
    %c0_i32_1 = arith.constant 0 : i32
    return %arg0, %c0_i32, %c0_i32_0 : i32, i32, i32
  }
  func.func @transform_5(%arg0: i32) -> (i32, i32, i32) {
    %c0_i32 = arith.constant 0 : i32
    %c0_i32_0 = arith.constant 0 : i32
    %c0_i32_1 = arith.constant 0 : i32
    return %arg0, %c0_i32, %c0_i32_0 : i32, i32, i32
  }
  func.func @transform_6(%arg0: i32) -> (i32, i32, i32) {
    %c0_i32 = arith.constant 0 : i32
    %c0_i32_0 = arith.constant 0 : i32
    %c0_i32_1 = arith.constant 0 : i32
    return %arg0, %c0_i32, %c0_i32_0 : i32, i32, i32
  }
  func.func @transform_7(%arg0: i32) -> (i32, i32, i32) {
    %c0_i32 = arith.constant 0 : i32
    %c0_i32_0 = arith.constant 0 : i32
    %c0_i32_1 = arith.constant 0 : i32
    return %arg0, %c0_i32, %c0_i32_0 : i32, i32, i32
  }
  func.func @transform_8(%arg0: i32) -> (i32, i32, i32) {
    %c0_i32 = arith.constant 0 : i32
    %c0_i32_0 = arith.constant 0 : i32
    %c0_i32_1 = arith.constant 0 : i32
    return %arg0, %c0_i32, %c0_i32_0 : i32, i32, i32
  }
  func.func @transform_9(%arg0: i32) -> (i32, i32, i32) {
    %c0_i32 = arith.constant 0 : i32
    %c0_i32_0 = arith.constant 0 : i32
    %c0_i32_1 = arith.constant 0 : i32
    return %arg0, %c0_i32, %c0_i32_0 : i32, i32, i32
  }
  func.func @transform_10(%arg0: i32) -> (i32, i32, i32, i32) {
    %c0_i32 = arith.constant 0 : i32
    %c0_i32_0 = arith.constant 0 : i32
    %c0_i32_1 = arith.constant 0 : i32
    %c0_i32_2 = arith.constant 0 : i32
    return %arg0, %c0_i32, %c0_i32_0, %c0_i32_1 : i32, i32, i32, i32
  }
  func.func @transform_11(%arg0: i32) -> (i32, i32, i32) {
    %c0_i32 = arith.constant 0 : i32
    %c0_i32_0 = arith.constant 0 : i32
    %c0_i32_1 = arith.constant 0 : i32
    return %arg0, %c0_i32, %c0_i32_0 : i32, i32, i32
  }
  func.func @transform_12(%arg0: i32) -> (i32, i32, i32) {
    %c0_i32 = arith.constant 0 : i32
    %c0_i32_0 = arith.constant 0 : i32
    %c0_i32_1 = arith.constant 0 : i32
    return %arg0, %c0_i32, %c0_i32_0 : i32, i32, i32
  }
  func.func @transform_13(%arg0: i32) -> (i32, i32, i32) {
    %c0_i32 = arith.constant 0 : i32
    %c0_i32_0 = arith.constant 0 : i32
    %c0_i32_1 = arith.constant 0 : i32
    return %arg0, %c0_i32, %c0_i32_0 : i32, i32, i32
  }
  func.func @transform_14(%arg0: i32) -> (i32, i32, i32) {
    %c0_i32 = arith.constant 0 : i32
    %c0_i32_0 = arith.constant 0 : i32
    %c0_i32_1 = arith.constant 0 : i32
    return %arg0, %c0_i32, %c0_i32_0 : i32, i32, i32
  }
  func.func @transform_15(%arg0: i32) -> (i32, i32, i32) {
    %c0_i32 = arith.constant 0 : i32
    %c0_i32_0 = arith.constant 0 : i32
    %c0_i32_1 = arith.constant 0 : i32
    return %arg0, %c0_i32, %c0_i32_0 : i32, i32, i32
  }
  func.func @transform_16(%arg0: i32) -> (i32, i32, i32) {
    %c0_i32 = arith.constant 0 : i32
    %c0_i32_0 = arith.constant 0 : i32
    %c0_i32_1 = arith.constant 0 : i32
    return %arg0, %c0_i32, %c0_i32_0 : i32, i32, i32
  }
  func.func @transform_17(%arg0: i32) -> (i32, i32, i32) {
    %c0_i32 = arith.constant 0 : i32
    %c0_i32_0 = arith.constant 0 : i32
    %c0_i32_1 = arith.constant 0 : i32
    return %arg0, %c0_i32, %c0_i32_0 : i32, i32, i32
  }
  func.func @transform_18(%arg0: i32) -> (i32, i32) {
    %c0_i32 = arith.constant 0 : i32
    %c0_i32_0 = arith.constant 0 : i32
    %c0_i32_1 = arith.constant 0 : i32
    return %c0_i32, %c0_i32_0 : i32, i32
  }
  func.func @transform_19(%arg0: i32) -> (i32, i32) {
    %c0_i32 = arith.constant 0 : i32
    %c0_i32_0 = arith.constant 0 : i32
    %c0_i32_1 = arith.constant 0 : i32
    return %c0_i32, %c0_i32_0 : i32, i32
  }
  func.func @transform_20(%arg0: i32) -> (i32, i32, i32) {
    %c0_i32 = arith.constant 0 : i32
    %c0_i32_0 = arith.constant 0 : i32
    %c0_i32_1 = arith.constant 0 : i32
    %c0_i32_2 = arith.constant 0 : i32
    return %c0_i32, %c0_i32_0, %c0_i32_1 : i32, i32, i32
  }
}

</mosaic_0001>

<llo_original>
// kernel: tpu_custom_call.1
$region0: #{tpu_custom_call.1}
  #allocation0 [shape = 'u32[]', space=smem, size = 0x4, offset = 0x4, fixed_abs, tag = 'smem constant byte address 0x4 - core index']
  #allocation1 [shape = 'u32[144,128]{1,0:T(1,128)}', space=vmem, size = 0x12000, scoped, tag = 'internal scratch']
  #allocation2 [shape = 'f32[16,32]{1,0:T(8,128)}', space=vmem, size = 0x2000, scoped, tag = 'scratch operand']
  %s0 = inlined_call_operand.hbm [shape: f32[2,8,32], index: 0, kind: input, shape index: {}]
  %s1 = inlined_call_operand.hbm [shape: f32[2,16,32], index: 1, kind: input, shape index: {}]
  %s2 = inlined_call_operand.hbm [shape: f32[2,8,32], index: 2, kind: input, shape index: {}]
  %s3 = inlined_call_operand.hbm [shape: f32[2,16,32], index: 3, kind: input, shape index: {}]
  %s4 = inlined_call_operand.hbm [shape: f32[2,32,64], index: 4, kind: input, shape index: {}]
  %s5 = inlined_call_operand.hbm [shape: f32[2,1,64], index: 5, kind: input, shape index: {}]
  %s6 = inlined_call_operand.hbm [shape: f32[2,32,32], index: 6, kind: input, shape index: {}]
  %s7 = inlined_call_operand.hbm [shape: f32[2,1,32], index: 7, kind: input, shape index: {}]
  %s8 = inlined_call_operand.hbm [shape: f32[2,32,32], index: 8, kind: input, shape index: {}]
  %s9 = inlined_call_operand.hbm [shape: f32[2,1,32], index: 9, kind: input, shape index: {}]
  %s10 = inlined_call_operand.vmem [shape: f32[2,4,32,32], index: 10, kind: input, shape index: {}]
  %s11 = inlined_call_operand.hbm [shape: f32[2,4,32], index: 11, kind: input, shape index: {}]
  %s12 = inlined_call_operand.hbm [shape: f32[2,32,64], index: 12, kind: input, shape index: {}]
  %s13 = inlined_call_operand.hbm [shape: f32[2,1,64], index: 13, kind: input, shape index: {}]
  %s14 = inlined_call_operand.vmem [shape: f32[2,64,32], index: 14, kind: input, shape index: {}]
  %s15 = inlined_call_operand.vmem [shape: f32[2,1,32], index: 15, kind: input, shape index: {}]
  %s16 = inlined_call_operand.vmem [shape: f32[2,3,32], index: 16, kind: input, shape index: {}]
  %s17 = inlined_call_operand.vmem [shape: f32[2,3,32], index: 17, kind: input, shape index: {}]
  %s18 = inlined_call_operand.vmem [shape: f32[1,32], index: 18, kind: input, shape index: {}]
  %s19 = inlined_call_operand.vmem [shape: f32[1,32], index: 19, kind: input, shape index: {}]
  %s20 = inlined_call_operand.hbm [shape: f32[2,8,32], index: 20, kind: output, shape index: {}]
  %s21 = sld [smem:[#allocation0]]
  $region173: #{tpu_custom_call.1} parent=0
    _
  %s23 = ssub.s32 1, %s21
  %s24 = scalar_select 0, %s23, %s21
  $region1: #{tpu_custom_call.1} parent=0
    #allocation3 [shape = 'u8[8192]{0}', space=vmem, size = 0x2000, scoped, tag = 'input window, operand 0, single buffered']
    #allocation4 [shape = 's32[2]{0}', space=sflag, size = 0x8, scoped, tag = 'scoped memory for tpu_custom_call.1']
    #allocation5 [shape = 's32[2]{0}', space=sflag, size = 0x8, scoped, tag = 'scoped memory for tpu_custom_call.1']
    #allocation6 [shape = 'u8[16384]{0}', space=vmem, size = 0x4000, scoped, tag = 'input window, operand 1, single buffered']
    #allocation7 [shape = 's32[1]{0}', space=sflag, size = 0x4, scoped, tag = 'scoped memory for tpu_custom_call.1']
    #allocation8 [shape = 'u8[8192]{0}', space=vmem, size = 0x2000, scoped, tag = 'input window, operand 2, single buffered']
    #allocation9 [shape = 'u8[16384]{0}', space=vmem, size = 0x4000, scoped, tag = 'input window, operand 3, single buffered']
    #allocation10 [shape = 's32[1]{0}', space=sflag, size = 0x4, scoped, tag = 'scoped memory for tpu_custom_call.1']
    #allocation11 [shape = 'u8[32768]{0}', space=vmem, size = 0x8000, scoped, tag = 'input window, operand 4']
    #allocation12 [shape = 'u8[1024]{0}', space=vmem, size = 0x400, scoped, tag = 'input window, operand 5']
    #allocation13 [shape = 'u8[32768]{0}', space=vmem, size = 0x8000, scoped, tag = 'input window, operand 6']
    #allocation14 [shape = 'u8[1024]{0}', space=vmem, size = 0x400, scoped, tag = 'input window, operand 7']
    #allocation15 [shape = 'u8[32768]{0}', space=vmem, size = 0x8000, scoped, tag = 'input window, operand 8']
    #allocation16 [shape = 'u8[1024]{0}', space=vmem, size = 0x400, scoped, tag = 'input window, operand 9']
    #allocation17 [shape = 'u8[4096]{0}', space=vmem, size = 0x1000, scoped, tag = 'input window, operand 11']
    #allocation18 [shape = 'u8[32768]{0}', space=vmem, size = 0x8000, scoped, tag = 'input window, operand 12']
    #allocation19 [shape = 'u8[1024]{0}', space=vmem, size = 0x400, scoped, tag = 'input window, operand 13']
    #allocation20 [shape = 'u8[8192]{0}', space=vmem, size = 0x2000, scoped, tag = 'output window, operand 0, single buffered']
    %25 = vsyncpa [#allocation4], 0
    %26 = vsyncpa [#allocation7], 0
    %27 = vsyncpa [#allocation10], 0
    %28 = vsyncpa [#allocation5], 0
    loop: start=0, step=1, limit=4
    $region2: #{tpu_custom_call.1} parent=1 // loop_pre_header
      _
    $region3: #{tpu_custom_call.1} parent=1 // loop_header
      %s30 = sphi 0, %s34
      %p31 = scmp.ge.s32.totalorder %s30, 4
      %s38 = sphi 0, %s38
      %s40 = sphi 0, %s38
      %s41 = sphi 0, %s40
      %s55 = sphi 0, %s41
      %s59 = sphi 0, %s59
      %s61 = sphi 0, %s59
      %s62 = sphi 0, %s61
      %s76 = sphi 0, %s62
      %s80 = sphi 0, %s80
      %s82 = sphi 0, %s80
      %s83 = sphi 0, %s82
      %s97 = sphi 0, %s83
      %s101 = sphi 0, %s101
      %s103 = sphi 0, %s101
      %s104 = sphi 0, %s103
      %s118 = sphi 0, %s104
      %s124 = sphi 0, %s126
      %s127 = sphi 0, %s124
      %s128 = sphi 0, %s127
      %s144 = sphi 0, %s128
      %s150 = sphi 0, %s152
      %s153 = sphi 0, %s150
      %s154 = sphi 0, %s153
      %s170 = sphi 0, %s154
      %s176 = sphi 0, %s178
      %s179 = sphi 0, %s176
      %s180 = sphi 0, %s179
      %s196 = sphi 0, %s180
      %s202 = sphi 0, %s204
      %s205 = sphi 0, %s202
      %s206 = sphi 0, %s205
      %s222 = sphi 0, %s206
      %s228 = sphi 0, %s230
      %s231 = sphi 0, %s228
      %s232 = sphi 0, %s231
      %s248 = sphi 0, %s232
      %s254 = sphi 0, %s256
      %s257 = sphi 0, %s254
      %s258 = sphi 0, %s257
      %s274 = sphi 0, %s258
      %s280 = sphi 0, %s282
      %s283 = sphi 0, %s280
      %s284 = sphi 0, %s283
      %s300 = sphi 0, %s284
      %s306 = sphi 0, %s308
      %s309 = sphi 0, %s306
      %s310 = sphi 0, %s309
      %s326 = sphi 0, %s310
      %s332 = sphi 0, %s334
      %s335 = sphi 0, %s332
      %s336 = sphi 0, %s335
      %s352 = sphi 0, %s336
      %s358 = sphi 0, %s360
      %s361 = sphi 0, %s358
      %s362 = sphi 0, %s361
      %s378 = sphi 0, %s362
      %s384 = sphi 0, %s386
      %s387 = sphi 0, %s384
      %s388 = sphi 0, %s387
      %s404 = sphi 0, %s388
      %s410 = sphi 0, %s412
      %s413 = sphi 0, %s410
      %s414 = sphi 0, %s413
      %s430 = sphi 0, %s414
      %s436 = sphi 0, %s438
      %s439 = sphi 0, %s436
      %s440 = sphi 0, %s439
      %s456 = sphi 0, %s440
      %s462 = sphi 0, %s464
      %s465 = sphi 0, %s462
      %s466 = sphi 0, %s465
      %s482 = sphi 0, %s466
      %s486 = sphi 0, %s486
      %s488 = sphi 0, %s486
      %s489 = sphi 0, %s488
      %s503 = sphi 0, %s489
      %s507 = sphi 0, %s507
      %s509 = sphi 0, %s507
      %s510 = sphi 0, %s509
      %s524 = sphi 0, %s510
      %s528 = sphi 0, %s528
      %s530 = sphi 0, %s528
      %s531 = sphi 0, %s530
      %s545 = sphi 0, %s531
    $region4: #{tpu_custom_call.1} parent=1 // loop_header_branch
      %33 = sbr.rel (%p31) target = $region8
    $region5: #{tpu_custom_call.1} parent=1 // loop_body
      %s35 = ssub.s32 %s30, 1
      %s36 = ssub.s32 %s30, 2
      %s37 = sadd.s32 %s30, 1
      %s39 = sadd.s32 %s38, 1
      %p42 = scmp.eq.s32.totalorder %s30, 1
      %p43 = scmp.ne.s32.totalorder %s38, %s40
      %p44 = scmp.eq.s32.totalorder %s30, 0
      %p45 = por %p43, %p44
      %p46 = scmp.ne.s32.totalorder %s38, %s40
      %p47 = scmp.eq.s32.totalorder %s35, 1
      %p48 = por %p46, %p47
      %p49 = scmp.ne.s32.totalorder %s40, %s41
      %p50 = scmp.eq.s32.totalorder %s35, 0
      %p51 = por %p49, %p50
      %p52 = scmp.ne.s32.totalorder %s40, %s41
      %p53 = scmp.eq.s32.totalorder %s36, 1
      %p54 = por %p52, %p53
      %p56 = scmp.ne.s32.totalorder %s41, %s55
      %p57 = scmp.eq.s32.totalorder %s36, 0
      %p58 = por %p56, %p57
      %s60 = sadd.s32 %s59, 1
      %p63 = scmp.eq.s32.totalorder %s30, 1
      %p64 = scmp.ne.s32.totalorder %s59, %s61
      %p65 = scmp.eq.s32.totalorder %s30, 0
      %p66 = por %p64, %p65
      %p67 = scmp.ne.s32.totalorder %s59, %s61
      %p68 = scmp.eq.s32.totalorder %s35, 1
      %p69 = por %p67, %p68
      %p70 = scmp.ne.s32.totalorder %s61, %s62
      %p71 = scmp.eq.s32.totalorder %s35, 0
      %p72 = por %p70, %p71
      %p73 = scmp.ne.s32.totalorder %s61, %s62
      %p74 = scmp.eq.s32.totalorder %s36, 1
      %p75 = por %p73, %p74
      %p77 = scmp.ne.s32.totalorder %s62, %s76
      %p78 = scmp.eq.s32.totalorder %s36, 0
      %p79 = por %p77, %p78
      %s81 = sadd.s32 %s80, 1
      %p84 = scmp.eq.s32.totalorder %s30, 1
      %p85 = scmp.ne.s32.totalorder %s80, %s82
      %p86 = scmp.eq.s32.totalorder %s30, 0
      %p87 = por %p85, %p86
      %p88 = scmp.ne.s32.totalorder %s80, %s82
      %p89 = scmp.eq.s32.totalorder %s35, 1
      %p90 = por %p88, %p89
      %p91 = scmp.ne.s32.totalorder %s82, %s83
      %p92 = scmp.eq.s32.totalorder %s35, 0
      %p93 = por %p91, %p92
      %p94 = scmp.ne.s32.totalorder %s82, %s83
      %p95 = scmp.eq.s32.totalorder %s36, 1
      %p96 = por %p94, %p95
      %p98 = scmp.ne.s32.totalorder %s83, %s97
      %p99 = scmp.eq.s32.totalorder %s36, 0
      %p100 = por %p98, %p99
      %s102 = sadd.s32 %s101, 1
      %p105 = scmp.eq.s32.totalorder %s30, 1
      %p106 = scmp.ne.s32.totalorder %s101, %s103
      %p107 = scmp.eq.s32.totalorder %s30, 0
      %p108 = por %p106, %p107
      %p109 = scmp.ne.s32.totalorder %s101, %s103
      %p110 = scmp.eq.s32.totalorder %s35, 1
      %p111 = por %p109, %p110
      %p112 = scmp.ne.s32.totalorder %s103, %s104
      %p113 = scmp.eq.s32.totalorder %s35, 0
      %p114 = por %p112, %p113
      %p115 = scmp.ne.s32.totalorder %s103, %s104
      %p116 = scmp.eq.s32.totalorder %s36, 1
      %p117 = por %p115, %p116
      %p119 = scmp.ne.s32.totalorder %s104, %s118
      %p120 = scmp.eq.s32.totalorder %s36, 0
      %p121 = por %p119, %p120
      %s122 = ssub.s32 %s30, %s37
      %p123 = scmp.eq.s32.totalorder %s122, 0
      %s125 = sadd.s32 %s124, 1
      %s126 = scalar_select %p123, %s124, %s125
      %p129 = pneg %p123
      %p130 = scmp.eq.s32.totalorder %s30, 1
      %p131 = por %p129, %p130
      %p132 = scmp.ne.s32.totalorder %s124, %s127
      %p133 = scmp.eq.s32.totalorder %s30, 0
      %p134 = por %p132, %p133
      %p135 = scmp.ne.s32.totalorder %s124, %s127
      %p136 = scmp.eq.s32.totalorder %s35, 1
      %p137 = por %p135, %p136
      %p138 = scmp.ne.s32.totalorder %s127, %s128
      %p139 = scmp.eq.s32.totalorder %s35, 0
      %p140 = por %p138, %p139
      %p141 = scmp.ne.s32.totalorder %s127, %s128
      %p142 = scmp.eq.s32.totalorder %s36, 1
      %p143 = por %p141, %p142
      %p145 = scmp.ne.s32.totalorder %s128, %s144
      %p146 = scmp.eq.s32.totalorder %s36, 0
      %p147 = por %p145, %p146
      %s148 = ssub.s32 %s30, %s37
      %p149 = scmp.eq.s32.totalorder %s148, 0
      %s151 = sadd.s32 %s150, 1
      %s152 = scalar_select %p149, %s150, %s151
      %p155 = pneg %p149
      %p156 = scmp.eq.s32.totalorder %s30, 1
      %p157 = por %p155, %p156
      %p158 = scmp.ne.s32.totalorder %s150, %s153
      %p159 = scmp.eq.s32.totalorder %s30, 0
      %p160 = por %p158, %p159
      %p161 = scmp.ne.s32.totalorder %s150, %s153
      %p162 = scmp.eq.s32.totalorder %s35, 1
      %p163 = por %p161, %p162
      %p164 = scmp.ne.s32.totalorder %s153, %s154
      %p165 = scmp.eq.s32.totalorder %s35, 0
      %p166 = por %p164, %p165
      %p167 = scmp.ne.s32.totalorder %s153, %s154
      %p168 = scmp.eq.s32.totalorder %s36, 1
      %p169 = por %p167, %p168
      %p171 = scmp.ne.s32.totalorder %s154, %s170
      %p172 = scmp.eq.s32.totalorder %s36, 0
      %p173 = por %p171, %p172
      %s174 = ssub.s32 %s30, %s37
      %p175 = scmp.eq.s32.totalorder %s174, 0
      %s177 = sadd.s32 %s176, 1
      %s178 = scalar_select %p175, %s176, %s177
      %p181 = pneg %p175
      %p182 = scmp.eq.s32.totalorder %s30, 1
      %p183 = por %p181, %p182
      %p184 = scmp.ne.s32.totalorder %s176, %s179
      %p185 = scmp.eq.s32.totalorder %s30, 0
      %p186 = por %p184, %p185
      %p187 = scmp.ne.s32.totalorder %s176, %s179
      %p188 = scmp.eq.s32.totalorder %s35, 1
      %p189 = por %p187, %p188
      %p190 = scmp.ne.s32.totalorder %s179, %s180
      %p191 = scmp.eq.s32.totalorder %s35, 0
      %p192 = por %p190, %p191
      %p193 = scmp.ne.s32.totalorder %s179, %s180
      %p194 = scmp.eq.s32.totalorder %s36, 1
      %p195 = por %p193, %p194
      %p197 = scmp.ne.s32.totalorder %s180, %s196
      %p198 = scmp.eq.s32.totalorder %s36, 0
      %p199 = por %p197, %p198
      %s200 = ssub.s32 %s30, %s37
      %p201 = scmp.eq.s32.totalorder %s200, 0
      %s203 = sadd.s32 %s202, 1
      %s204 = scalar_select %p201, %s202, %s203
      %p207 = pneg %p201
      %p208 = scmp.eq.s32.totalorder %s30, 1
      %p209 = por %p207, %p208
      %p210 = scmp.ne.s32.totalorder %s202, %s205
      %p211 = scmp.eq.s32.totalorder %s30, 0
      %p212 = por %p210, %p211
      %p213 = scmp.ne.s32.totalorder %s202, %s205
      %p214 = scmp.eq.s32.totalorder %s35, 1
      %p215 = por %p213, %p214
      %p216 = scmp.ne.s32.totalorder %s205, %s206
      %p217 = scmp.eq.s32.totalorder %s35, 0
      %p218 = por %p216, %p217
      %p219 = scmp.ne.s32.totalorder %s205, %s206
      %p220 = scmp.eq.s32.totalorder %s36, 1
      %p221 = por %p219, %p220
      %p223 = scmp.ne.s32.totalorder %s206, %s222
      %p224 = scmp.eq.s32.totalorder %s36, 0
      %p225 = por %p223, %p224
      %s226 = ssub.s32 %s30, %s37
      %p227 = scmp.eq.s32.totalorder %s226, 0
      %s229 = sadd.s32 %s228, 1
      %s230 = scalar_select %p227, %s228, %s229
      %p233 = pneg %p227
      %p234 = scmp.eq.s32.totalorder %s30, 1
      %p235 = por %p233, %p234
      %p236 = scmp.ne.s32.totalorder %s228, %s231
      %p237 = scmp.eq.s32.totalorder %s30, 0
      %p238 = por %p236, %p237
      %p239 = scmp.ne.s32.totalorder %s228, %s231
      %p240 = scmp.eq.s32.totalorder %s35, 1
      %p241 = por %p239, %p240
      %p242 = scmp.ne.s32.totalorder %s231, %s232
      %p243 = scmp.eq.s32.totalorder %s35, 0
      %p244 = por %p242, %p243
      %p245 = scmp.ne.s32.totalorder %s231, %s232
      %p246 = scmp.eq.s32.totalorder %s36, 1
      %p247 = por %p245, %p246
      %p249 = scmp.ne.s32.totalorder %s232, %s248
      %p250 = scmp.eq.s32.totalorder %s36, 0
      %p251 = por %p249, %p250
      %s252 = ssub.s32 %s30, %s37
      %p253 = scmp.eq.s32.totalorder %s252, 0
      %s255 = sadd.s32 %s254, 1
      %s256 = scalar_select %p253, %s254, %s255
      %p259 = pneg %p253
      %p260 = scmp.eq.s32.totalorder %s30, 1
      %p261 = por %p259, %p260
      %p262 = scmp.ne.s32.totalorder %s254, %s257
      %p263 = scmp.eq.s32.totalorder %s30, 0
      %p264 = por %p262, %p263
      %p265 = scmp.ne.s32.totalorder %s254, %s257
      %p266 = scmp.eq.s32.totalorder %s35, 1
      %p267 = por %p265, %p266
      %p268 = scmp.ne.s32.totalorder %s257, %s258
      %p269 = scmp.eq.s32.totalorder %s35, 0
      %p270 = por %p268, %p269
      %p271 = scmp.ne.s32.totalorder %s257, %s258
      %p272 = scmp.eq.s32.totalorder %s36, 1
      %p273 = por %p271, %p272
      %p275 = scmp.ne.s32.totalorder %s258, %s274
      %p276 = scmp.eq.s32.totalorder %s36, 0
      %p277 = por %p275, %p276
      %s278 = ssub.s32 %s30, %s37
      %p279 = scmp.eq.s32.totalorder %s278, 0
      %s281 = sadd.s32 %s280, 1
      %s282 = scalar_select %p279, %s280, %s281
      %p285 = pneg %p279
      %p286 = scmp.eq.s32.totalorder %s30, 1
      %p287 = por %p285, %p286
      %p288 = scmp.ne.s32.totalorder %s280, %s283
      %p289 = scmp.eq.s32.totalorder %s30, 0
      %p290 = por %p288, %p289
      %p291 = scmp.ne.s32.totalorder %s280, %s283
      %p292 = scmp.eq.s32.totalorder %s35, 1
      %p293 = por %p291, %p292
      %p294 = scmp.ne.s32.totalorder %s283, %s284
      %p295 = scmp.eq.s32.totalorder %s35, 0
      %p296 = por %p294, %p295
      %p297 = scmp.ne.s32.totalorder %s283, %s284
      %p298 = scmp.eq.s32.totalorder %s36, 1
      %p299 = por %p297, %p298
      %p301 = scmp.ne.s32.totalorder %s284, %s300
      %p302 = scmp.eq.s32.totalorder %s36, 0
      %p303 = por %p301, %p302
      %s304 = ssub.s32 %s30, %s37
      %p305 = scmp.eq.s32.totalorder %s304, 0
      %s307 = sadd.s32 %s306, 1
      %s308 = scalar_select %p305, %s306, %s307
      %p311 = pneg %p305
      %p312 = scmp.eq.s32.totalorder %s30, 1
      %p313 = por %p311, %p312
      %p314 = scmp.ne.s32.totalorder %s306, %s309
      %p315 = scmp.eq.s32.totalorder %s30, 0
      %p316 = por %p314, %p315
      %p317 = scmp.ne.s32.totalorder %s306, %s309
      %p318 = scmp.eq.s32.totalorder %s35, 1
      %p319 = por %p317, %p318
      %p320 = scmp.ne.s32.totalorder %s309, %s310
      %p321 = scmp.eq.s32.totalorder %s35, 0
      %p322 = por %p320, %p321
      %p323 = scmp.ne.s32.totalorder %s309, %s310
      %p324 = scmp.eq.s32.totalorder %s36, 1
      %p325 = por %p323, %p324
      %p327 = scmp.ne.s32.totalorder %s310, %s326
      %p328 = scmp.eq.s32.totalorder %s36, 0
      %p329 = por %p327, %p328
      %s330 = ssub.s32 %s30, %s37
      %p331 = scmp.eq.s32.totalorder %s330, 0
      %s333 = sadd.s32 %s332, 1
      %s334 = scalar_select %p331, %s332, %s333
      %p337 = pneg %p331
      %p338 = scmp.eq.s32.totalorder %s30, 1
      %p339 = por %p337, %p338
      %p340 = scmp.ne.s32.totalorder %s332, %s335
      %p341 = scmp.eq.s32.totalorder %s30, 0
      %p342 = por %p340, %p341
      %p343 = scmp.ne.s32.totalorder %s332, %s335
      %p344 = scmp.eq.s32.totalorder %s35, 1
      %p345 = por %p343, %p344
      %p346 = scmp.ne.s32.totalorder %s335, %s336
      %p347 = scmp.eq.s32.totalorder %s35, 0
      %p348 = por %p346, %p347
      %p349 = scmp.ne.s32.totalorder %s335, %s336
      %p350 = scmp.eq.s32.totalorder %s36, 1
      %p351 = por %p349, %p350
      %p353 = scmp.ne.s32.totalorder %s336, %s352
      %p354 = scmp.eq.s32.totalorder %s36, 0
      %p355 = por %p353, %p354
      %s356 = ssub.s32 %s30, %s37
      %p357 = scmp.eq.s32.totalorder %s356, 0
      %s359 = sadd.s32 %s358, 1
      %s360 = scalar_select %p357, %s358, %s359
      %p363 = pneg %p357
      %p364 = scmp.eq.s32.totalorder %s30, 1
      %p365 = por %p363, %p364
      %p366 = scmp.ne.s32.totalorder %s358, %s361
      %p367 = scmp.eq.s32.totalorder %s30, 0
      %p368 = por %p366, %p367
      %p369 = scmp.ne.s32.totalorder %s358, %s361
      %p370 = scmp.eq.s32.totalorder %s35, 1
      %p371 = por %p369, %p370
      %p372 = scmp.ne.s32.totalorder %s361, %s362
      %p373 = scmp.eq.s32.totalorder %s35, 0
      %p374 = por %p372, %p373
      %p375 = scmp.ne.s32.totalorder %s361, %s362
      %p376 = scmp.eq.s32.totalorder %s36, 1
      %p377 = por %p375, %p376
      %p379 = scmp.ne.s32.totalorder %s362, %s378
      %p380 = scmp.eq.s32.totalorder %s36, 0
      %p381 = por %p379, %p380
      %s382 = ssub.s32 %s30, %s37
      %p383 = scmp.eq.s32.totalorder %s382, 0
      %s385 = sadd.s32 %s384, 1
      %s386 = scalar_select %p383, %s384, %s385
      %p389 = pneg %p383
      %p390 = scmp.eq.s32.totalorder %s30, 1
      %p391 = por %p389, %p390
      %p392 = scmp.ne.s32.totalorder %s384, %s387
      %p393 = scmp.eq.s32.totalorder %s30, 0
      %p394 = por %p392, %p393
      %p395 = scmp.ne.s32.totalorder %s384, %s387
      %p396 = scmp.eq.s32.totalorder %s35, 1
      %p397 = por %p395, %p396
      %p398 = scmp.ne.s32.totalorder %s387, %s388
      %p399 = scmp.eq.s32.totalorder %s35, 0
      %p400 = por %p398, %p399
      %p401 = scmp.ne.s32.totalorder %s387, %s388
      %p402 = scmp.eq.s32.totalorder %s36, 1
      %p403 = por %p401, %p402
      %p405 = scmp.ne.s32.totalorder %s388, %s404
      %p406 = scmp.eq.s32.totalorder %s36, 0
      %p407 = por %p405, %p406
      %s408 = ssub.s32 %s30, %s37
      %p409 = scmp.eq.s32.totalorder %s408, 0
      %s411 = sadd.s32 %s410, 1
      %s412 = scalar_select %p409, %s410, %s411
      %p415 = pneg %p409
      %p416 = scmp.eq.s32.totalorder %s30, 1
      %p417 = por %p415, %p416
      %p418 = scmp.ne.s32.totalorder %s410, %s413
      %p419 = scmp.eq.s32.totalorder %s30, 0
      %p420 = por %p418, %p419
      %p421 = scmp.ne.s32.totalorder %s410, %s413
      %p422 = scmp.eq.s32.totalorder %s35, 1
      %p423 = por %p421, %p422
      %p424 = scmp.ne.s32.totalorder %s413, %s414
      %p425 = scmp.eq.s32.totalorder %s35, 0
      %p426 = por %p424, %p425
      %p427 = scmp.ne.s32.totalorder %s413, %s414
      %p428 = scmp.eq.s32.totalorder %s36, 1
      %p429 = por %p427, %p428
      %p431 = scmp.ne.s32.totalorder %s414, %s430
      %p432 = scmp.eq.s32.totalorder %s36, 0
      %p433 = por %p431, %p432
      %s434 = ssub.s32 %s30, %s37
      %p435 = scmp.eq.s32.totalorder %s434, 0
      %s437 = sadd.s32 %s436, 1
      %s438 = scalar_select %p435, %s436, %s437
      %p441 = pneg %p435
      %p442 = scmp.eq.s32.totalorder %s30, 1
      %p443 = por %p441, %p442
      %p444 = scmp.ne.s32.totalorder %s436, %s439
      %p445 = scmp.eq.s32.totalorder %s30, 0
      %p446 = por %p444, %p445
      %p447 = scmp.ne.s32.totalorder %s436, %s439
      %p448 = scmp.eq.s32.totalorder %s35, 1
      %p449 = por %p447, %p448
      %p450 = scmp.ne.s32.totalorder %s439, %s440
      %p451 = scmp.eq.s32.totalorder %s35, 0
      %p452 = por %p450, %p451
      %p453 = scmp.ne.s32.totalorder %s439, %s440
      %p454 = scmp.eq.s32.totalorder %s36, 1
      %p455 = por %p453, %p454
      %p457 = scmp.ne.s32.totalorder %s440, %s456
      %p458 = scmp.eq.s32.totalorder %s36, 0
      %p459 = por %p457, %p458
      %s460 = ssub.s32 %s30, %s37
      %p461 = scmp.eq.s32.totalorder %s460, 0
      %s463 = sadd.s32 %s462, 1
      %s464 = scalar_select %p461, %s462, %s463
      %p467 = pneg %p461
      %p468 = scmp.eq.s32.totalorder %s30, 1
      %p469 = por %p467, %p468
      %p470 = scmp.ne.s32.totalorder %s462, %s465
      %p471 = scmp.eq.s32.totalorder %s30, 0
      %p472 = por %p470, %p471
      %p473 = scmp.ne.s32.totalorder %s462, %s465
      %p474 = scmp.eq.s32.totalorder %s35, 1
      %p475 = por %p473, %p474
      %p476 = scmp.ne.s32.totalorder %s465, %s466
      %p477 = scmp.eq.s32.totalorder %s35, 0
      %p478 = por %p476, %p477
      %p479 = scmp.ne.s32.totalorder %s465, %s466
      %p480 = scmp.eq.s32.totalorder %s36, 1
      %p481 = por %p479, %p480
      %p483 = scmp.ne.s32.totalorder %s466, %s482
      %p484 = scmp.eq.s32.totalorder %s36, 0
      %p485 = por %p483, %p484
      %s487 = sadd.s32 %s486, 1
      %p490 = scmp.eq.s32.totalorder %s30, 1
      %p491 = scmp.ne.s32.totalorder %s486, %s488
      %p492 = scmp.eq.s32.totalorder %s30, 0
      %p493 = por %p491, %p492
      %p494 = scmp.ne.s32.totalorder %s486, %s488
      %p495 = scmp.eq.s32.totalorder %s35, 1
      %p496 = por %p494, %p495
      %p497 = scmp.ne.s32.totalorder %s488, %s489
      %p498 = scmp.eq.s32.totalorder %s35, 0
      %p499 = por %p497, %p498
      %p500 = scmp.ne.s32.totalorder %s488, %s489
      %p501 = scmp.eq.s32.totalorder %s36, 1
      %p502 = por %p500, %p501
      %p504 = scmp.ne.s32.totalorder %s489, %s503
      %p505 = scmp.eq.s32.totalorder %s36, 0
      %p506 = por %p504, %p505
      %s508 = sadd.s32 %s507, 1
      %p511 = scmp.eq.s32.totalorder %s30, 1
      %p512 = scmp.ne.s32.totalorder %s507, %s509
      %p513 = scmp.eq.s32.totalorder %s30, 0
      %p514 = por %p512, %p513
      %p515 = scmp.ne.s32.totalorder %s507, %s509
      %p516 = scmp.eq.s32.totalorder %s35, 1
      %p517 = por %p515, %p516
      %p518 = scmp.ne.s32.totalorder %s509, %s510
      %p519 = scmp.eq.s32.totalorder %s35, 0
      %p520 = por %p518, %p519
      %p521 = scmp.ne.s32.totalorder %s509, %s510
      %p522 = scmp.eq.s32.totalorder %s36, 1
      %p523 = por %p521, %p522
      %p525 = scmp.ne.s32.totalorder %s510, %s524
      %p526 = scmp.eq.s32.totalorder %s36, 0
      %p527 = por %p525, %p526
      %s529 = sadd.s32 %s528, 1
      %p532 = scmp.eq.s32.totalorder %s30, 1
      %p533 = scmp.ne.s32.totalorder %s528, %s530
      %p534 = scmp.eq.s32.totalorder %s30, 0
      %p535 = por %p533, %p534
      %p536 = scmp.ne.s32.totalorder %s528, %s530
      %p537 = scmp.eq.s32.totalorder %s35, 1
      %p538 = por %p536, %p537
      %p539 = scmp.ne.s32.totalorder %s530, %s531
      %p540 = scmp.eq.s32.totalorder %s35, 0
      %p541 = por %p539, %p540
      %p542 = scmp.ne.s32.totalorder %s530, %s531
      %p543 = scmp.eq.s32.totalorder %s36, 1
      %p544 = por %p542, %p543
      %p546 = scmp.ne.s32.totalorder %s531, %s545
      %p547 = scmp.eq.s32.totalorder %s36, 0
      %p548 = por %p546, %p547
      %p549 = scmp.le.s32.totalorder 1, %s30
      %p550 = scmp.lt.s32.totalorder %s30, 3
      %p551 = pnand %p549, %p550
      %p552 = pneg %p551
      // Predicated region
      $region9: #{tpu_custom_call.1} parent=5 // pred_check
        _
      $region10: #{tpu_custom_call.1} parent=5 // pred_check_branch
        %554 = sbr.rel (%p551) target = $region12
      $region11: #{tpu_custom_call.1} parent=5 // pred_region
        %s555 = ssub.s32 %s30, 1
        // Predicated region
        $region13: #{tpu_custom_call.1} parent=11 // pred_check
          %p556 = pneg %p51
        $region14: #{tpu_custom_call.1} parent=11 // pred_check_branch
          %558 = sbr.rel (%p556) target = $region16
        $region15: #{tpu_custom_call.1} parent=11 // pred_region
          %s560 = ssub.s32 256, 256
          %561 = vsyncadd [#allocation4], %s560
          %s562 = sshll.u32 [#allocation3], 4
          %s563 = int_to_ptr.vmem [resolvable:$true] %s562
          %568 = dma.hbm_to_vmem [thread:$0]  %s0, 256, %s563, [#allocation4], 128, 128, 8
        $region16: #{tpu_custom_call.1} parent=11 // pred_fallthru
          _
        // Predicated region
        $region17: #{tpu_custom_call.1} parent=11 // pred_check
          %p569 = pneg %p72
        $region18: #{tpu_custom_call.1} parent=11 // pred_check_branch
          %571 = sbr.rel (%p569) target = $region20
        $region19: #{tpu_custom_call.1} parent=11 // pred_region
          %s573 = ssub.s32 512, 512
          %574 = vsyncadd [#allocation7], %s573
          %s575 = sshll.u32 [#allocation6], 4
          %s576 = int_to_ptr.vmem [resolvable:$true] %s575
          %581 = dma.hbm_to_vmem [thread:$0]  %s1, 512, %s576, [#allocation7], 128, 128, 8
        $region20: #{tpu_custom_call.1} parent=11 // pred_fallthru
          _
        // Predicated region
        $region21: #{tpu_custom_call.1} parent=11 // pred_check
          %p582 = pneg %p93
        $region22: #{tpu_custom_call.1} parent=11 // pred_check_branch
          %584 = sbr.rel (%p582) target = $region24
        $region23: #{tpu_custom_call.1} parent=11 // pred_region
          %s586 = ssub.s32 256, 256
          %587 = vsyncadd [#allocation7], %s586
          %s588 = sshll.u32 [#allocation8], 4
          %s589 = int_to_ptr.vmem [resolvable:$true] %s588
          %594 = dma.hbm_to_vmem [thread:$0]  %s2, 256, %s589, [#allocation7], 128, 128, 8
        $region24: #{tpu_custom_call.1} parent=11 // pred_fallthru
          _
        // Predicated region
        $region25: #{tpu_custom_call.1} parent=11 // pred_check
          %p595 = pneg %p114
        $region26: #{tpu_custom_call.1} parent=11 // pred_check_branch
          %597 = sbr.rel (%p595) target = $region28
        $region27: #{tpu_custom_call.1} parent=11 // pred_region
          %s599 = ssub.s32 512, 512
          %600 = vsyncadd [#allocation10], %s599
          %s601 = sshll.u32 [#allocation9], 4
          %s602 = int_to_ptr.vmem [resolvable:$true] %s601
          %607 = dma.hbm_to_vmem [thread:$0]  %s3, 512, %s602, [#allocation10], 128, 128, 8
        $region28: #{tpu_custom_call.1} parent=11 // pred_fallthru
          _
        // Predicated region
        $region29: #{tpu_custom_call.1} parent=11 // pred_check
          %p608 = pneg %p499
        $region30: #{tpu_custom_call.1} parent=11 // pred_check_branch
          %610 = sbr.rel (%p608) target = $region32
        $region31: #{tpu_custom_call.1} parent=11 // pred_region
          _
        $region32: #{tpu_custom_call.1} parent=11 // pred_fallthru
          _
        // Predicated region
        $region33: #{tpu_custom_call.1} parent=11 // pred_check
          %p611 = pneg %p520
        $region34: #{tpu_custom_call.1} parent=11 // pred_check_branch
          %613 = sbr.rel (%p611) target = $region36
        $region35: #{tpu_custom_call.1} parent=11 // pred_region
          _
        $region36: #{tpu_custom_call.1} parent=11 // pred_fallthru
          _
      $region12: #{tpu_custom_call.1} parent=5 // pred_fallthru
        _
      %p614 = scmp.lt.s32.totalorder %s30, 2
      // Predicated region
      $region37: #{tpu_custom_call.1} parent=5 // pred_check
        %p615 = pneg %p614
      $region38: #{tpu_custom_call.1} parent=5 // pred_check_branch
        %617 = sbr.rel (%p615) target = $region40
      $region39: #{tpu_custom_call.1} parent=5 // pred_region
        // Predicated region
        $region41: #{tpu_custom_call.1} parent=39 // pred_check
          %p618 = pneg %p134
        $region42: #{tpu_custom_call.1} parent=39 // pred_check_branch
          %620 = sbr.rel (%p618) target = $region44
        $region43: #{tpu_custom_call.1} parent=39 // pred_region
          %s621 = sand.u32 %s30, 1
          %s622 = scalar_lea.sflag [#allocation4], %s621
          %s623 = sand.u32 %s124, 1
          %s624 = smul.addr %s623, 32
          %s625 = scalar_lea.vmem [#allocation11], %s624
          %s627 = ssub.s32 512, 512
          %628 = vsyncadd %s622, %s627
          %s629 = smul.addr %s30, 4
          %s630 = smul.addr %s629, 128
          %s631 = scalar_lea.hbm %s4, %s630
          %s632 = sshll.u32 %s625, 4
          %s633 = int_to_ptr.vmem [resolvable:$true] %s632
          %638 = dma.hbm_to_vmem [thread:$0]  %s631, 512, %s633, %s622, 128, 128, 8
        $region44: #{tpu_custom_call.1} parent=39 // pred_fallthru
          _
        // Predicated region
        $region45: #{tpu_custom_call.1} parent=39 // pred_check
          %p639 = pneg %p160
        $region46: #{tpu_custom_call.1} parent=39 // pred_check_branch
          %641 = sbr.rel (%p639) target = $region48
        $region47: #{tpu_custom_call.1} parent=39 // pred_region
          %s642 = sand.u32 %s30, 1
          %s643 = scalar_lea.sflag [#allocation4], %s642
          %s644 = sand.u32 %s150, 1
          %s645 = scalar_lea.vmem [#allocation12], %s644
          %s647 = ssub.s32 16, 16
          %648 = vsyncadd %s643, %s647
          %s649 = smul.addr %s30, 16
          %s650 = scalar_lea.hbm %s5, %s649
          %s652 = sshll.u32 %s645, 4
          %s653 = int_to_ptr.vmem [resolvable:$true] %s652
          %655 = dma.hbm_to_vmem [thread:$0]  %s650, 16, %s653, %s643
        $region48: #{tpu_custom_call.1} parent=39 // pred_fallthru
          _
        // Predicated region
        $region49: #{tpu_custom_call.1} parent=39 // pred_check
          %p656 = pneg %p186
        $region50: #{tpu_custom_call.1} parent=39 // pred_check_branch
          %658 = sbr.rel (%p656) target = $region52
        $region51: #{tpu_custom_call.1} parent=39 // pred_region
          %s659 = sand.u32 %s30, 1
          %s660 = scalar_lea.sflag [#allocation4], %s659
          %s661 = sand.u32 %s176, 1
          %s662 = smul.addr %s661, 32
          %s663 = scalar_lea.vmem [#allocation13], %s662
          %s665 = ssub.s32 512, 512
          %666 = vsyncadd %s660, %s665
          %s667 = smul.addr %s30, 4
          %s668 = smul.addr %s667, 128
          %s669 = scalar_lea.hbm %s6, %s668
          %s670 = sshll.u32 %s663, 4
          %s671 = int_to_ptr.vmem [resolvable:$true] %s670
          %676 = dma.hbm_to_vmem [thread:$0]  %s669, 512, %s671, %s660, 128, 128, 8
        $region52: #{tpu_custom_call.1} parent=39 // pred_fallthru
          _
        // Predicated region
        $region53: #{tpu_custom_call.1} parent=39 // pred_check
          %p677 = pneg %p212
        $region54: #{tpu_custom_call.1} parent=39 // pred_check_branch
          %679 = sbr.rel (%p677) target = $region56
        $region55: #{tpu_custom_call.1} parent=39 // pred_region
          %s680 = sand.u32 %s30, 1
          %s681 = scalar_lea.sflag [#allocation4], %s680
          %s682 = sand.u32 %s202, 1
          %s683 = scalar_lea.vmem [#allocation14], %s682
          %s685 = ssub.s32 16, 16
          %686 = vsyncadd %s681, %s685
          %s687 = smul.addr %s30, 16
          %s688 = scalar_lea.hbm %s7, %s687
          %s690 = sshll.u32 %s683, 4
          %s691 = int_to_ptr.vmem [resolvable:$true] %s690
          %693 = dma.hbm_to_vmem [thread:$0]  %s688, 16, %s691, %s681
        $region56: #{tpu_custom_call.1} parent=39 // pred_fallthru
          _
        // Predicated region
        $region57: #{tpu_custom_call.1} parent=39 // pred_check
          %p694 = pneg %p238
        $region58: #{tpu_custom_call.1} parent=39 // pred_check_branch
          %696 = sbr.rel (%p694) target = $region60
        $region59: #{tpu_custom_call.1} parent=39 // pred_region
          %s697 = sand.u32 %s30, 1
          %s698 = scalar_lea.sflag [#allocation4], %s697
          %s699 = sand.u32 %s228, 1
          %s700 = smul.addr %s699, 32
          %s701 = scalar_lea.vmem [#allocation15], %s700
          %s703 = ssub.s32 512, 512
          %704 = vsyncadd %s698, %s703
          %s705 = smul.addr %s30, 4
          %s706 = smul.addr %s705, 128
          %s707 = scalar_lea.hbm %s8, %s706
          %s708 = sshll.u32 %s701, 4
          %s709 = int_to_ptr.vmem [resolvable:$true] %s708
          %714 = dma.hbm_to_vmem [thread:$0]  %s707, 512, %s709, %s698, 128, 128, 8
        $region60: #{tpu_custom_call.1} parent=39 // pred_fallthru
          _
        // Predicated region
        $region61: #{tpu_custom_call.1} parent=39 // pred_check
          %p715 = pneg %p264
        $region62: #{tpu_custom_call.1} parent=39 // pred_check_branch
          %717 = sbr.rel (%p715) target = $region64
        $region63: #{tpu_custom_call.1} parent=39 // pred_region
          %s718 = sand.u32 %s30, 1
          %s719 = scalar_lea.sflag [#allocation4], %s718
          %s720 = sand.u32 %s254, 1
          %s721 = scalar_lea.vmem [#allocation16], %s720
          %s723 = ssub.s32 16, 16
          %724 = vsyncadd %s719, %s723
          %s725 = smul.addr %s30, 16
          %s726 = scalar_lea.hbm %s9, %s725
          %s728 = sshll.u32 %s721, 4
          %s729 = int_to_ptr.vmem [resolvable:$true] %s728
          %731 = dma.hbm_to_vmem [thread:$0]  %s726, 16, %s729, %s719
        $region64: #{tpu_custom_call.1} parent=39 // pred_fallthru
          _
        // Predicated region
        $region65: #{tpu_custom_call.1} parent=39 // pred_check
          %p732 = pneg %p290
        $region66: #{tpu_custom_call.1} parent=39 // pred_check_branch
          %734 = sbr.rel (%p732) target = $region68
        $region67: #{tpu_custom_call.1} parent=39 // pred_region
          %p735 = scmp.lt.s32.totalorder %s30, 1
          %s736 = scalar_select %p735, %s30, 1
          %s737 = smul.addr %s736, 16
          %s738 = smul.addr %s737, 8
          %s739 = scalar_lea.vmem %s10, %s738
        $region68: #{tpu_custom_call.1} parent=39 // pred_fallthru
          _
        // Predicated region
        $region69: #{tpu_custom_call.1} parent=39 // pred_check
          %p740 = pneg %p316
        $region70: #{tpu_custom_call.1} parent=39 // pred_check_branch
          %742 = sbr.rel (%p740) target = $region72
        $region71: #{tpu_custom_call.1} parent=39 // pred_region
          %s743 = sand.u32 %s30, 1
          %s744 = scalar_lea.sflag [#allocation4], %s743
          %s745 = sand.u32 %s306, 1
          %s746 = smul.addr %s745, 4
          %s747 = scalar_lea.vmem [#allocation17], %s746
          %s749 = ssub.s32 64, 64
          %750 = vsyncadd %s744, %s749
          %s751 = smul.addr %s30, 64
          %s752 = scalar_lea.hbm %s11, %s751
          %s754 = sshll.u32 %s747, 4
          %s755 = int_to_ptr.vmem [resolvable:$true] %s754
          %757 = dma.hbm_to_vmem [thread:$0]  %s752, 64, %s755, %s744
        $region72: #{tpu_custom_call.1} parent=39 // pred_fallthru
          _
        // Predicated region
        $region73: #{tpu_custom_call.1} parent=39 // pred_check
          %p758 = pneg %p342
        $region74: #{tpu_custom_call.1} parent=39 // pred_check_branch
          %760 = sbr.rel (%p758) target = $region76
        $region75: #{tpu_custom_call.1} parent=39 // pred_region
          %s761 = sand.u32 %s30, 1
          %s762 = scalar_lea.sflag [#allocation4], %s761
          %s763 = sand.u32 %s332, 1
          %s764 = smul.addr %s763, 32
          %s765 = scalar_lea.vmem [#allocation18], %s764
          %s767 = ssub.s32 512, 512
          %768 = vsyncadd %s762, %s767
          %s769 = smul.addr %s30, 4
          %s770 = smul.addr %s769, 128
          %s771 = scalar_lea.hbm %s12, %s770
          %s772 = sshll.u32 %s765, 4
          %s773 = int_to_ptr.vmem [resolvable:$true] %s772
          %778 = dma.hbm_to_vmem [thread:$0]  %s771, 512, %s773, %s762, 128, 128, 8
        $region76: #{tpu_custom_call.1} parent=39 // pred_fallthru
          _
        // Predicated region
        $region77: #{tpu_custom_call.1} parent=39 // pred_check
          %p779 = pneg %p368
        $region78: #{tpu_custom_call.1} parent=39 // pred_check_branch
          %781 = sbr.rel (%p779) target = $region80
        $region79: #{tpu_custom_call.1} parent=39 // pred_region
          %s782 = sand.u32 %s30, 1
          %s783 = scalar_lea.sflag [#allocation4], %s782
          %s784 = sand.u32 %s358, 1
          %s785 = scalar_lea.vmem [#allocation19], %s784
          %s787 = ssub.s32 16, 16
          %788 = vsyncadd %s783, %s787
          %s789 = smul.addr %s30, 16
          %s790 = scalar_lea.hbm %s13, %s789
          %s792 = sshll.u32 %s785, 4
          %s793 = int_to_ptr.vmem [resolvable:$true] %s792
          %795 = dma.hbm_to_vmem [thread:$0]  %s790, 16, %s793, %s783
        $region80: #{tpu_custom_call.1} parent=39 // pred_fallthru
          _
        // Predicated region
        $region81: #{tpu_custom_call.1} parent=39 // pred_check
          %p796 = pneg %p394
        $region82: #{tpu_custom_call.1} parent=39 // pred_check_branch
          %798 = sbr.rel (%p796) target = $region84
        $region83: #{tpu_custom_call.1} parent=39 // pred_region
          %p799 = scmp.lt.s32.totalorder %s30, 1
          %s800 = scalar_select %p799, %s30, 1
          %s801 = smul.addr %s800, 8
          %s802 = smul.addr %s801, 8
          %s803 = scalar_lea.vmem %s14, %s802
        $region84: #{tpu_custom_call.1} parent=39 // pred_fallthru
          _
        // Predicated region
        $region85: #{tpu_custom_call.1} parent=39 // pred_check
          %p804 = pneg %p420
        $region86: #{tpu_custom_call.1} parent=39 // pred_check_branch
          %806 = sbr.rel (%p804) target = $region88
        $region87: #{tpu_custom_call.1} parent=39 // pred_region
          %p807 = scmp.lt.s32.totalorder %s30, 1
          %s808 = scalar_select %p807, %s30, 1
          %s809 = scalar_lea.vmem %s15, %s808
        $region88: #{tpu_custom_call.1} parent=39 // pred_fallthru
          _
        // Predicated region
        $region89: #{tpu_custom_call.1} parent=39 // pred_check
          %p810 = pneg %p446
        $region90: #{tpu_custom_call.1} parent=39 // pred_check_branch
          %812 = sbr.rel (%p810) target = $region92
        $region91: #{tpu_custom_call.1} parent=39 // pred_region
          %p813 = scmp.lt.s32.totalorder %s30, 1
          %s814 = scalar_select %p813, %s30, 1
          %s815 = smul.addr %s814, 4
          %s816 = scalar_lea.vmem %s16, %s815
        $region92: #{tpu_custom_call.1} parent=39 // pred_fallthru
          _
        // Predicated region
        $region93: #{tpu_custom_call.1} parent=39 // pred_check
          %p817 = pneg %p472
        $region94: #{tpu_custom_call.1} parent=39 // pred_check_branch
          %819 = sbr.rel (%p817) target = $region96
        $region95: #{tpu_custom_call.1} parent=39 // pred_region
          %p820 = scmp.lt.s32.totalorder %s30, 1
          %s821 = scalar_select %p820, %s30, 1
          %s822 = smul.addr %s821, 4
          %s823 = scalar_lea.vmem %s17, %s822
        $region96: #{tpu_custom_call.1} parent=39 // pred_fallthru
          _
      $region40: #{tpu_custom_call.1} parent=5 // pred_fallthru
        _
      %p824 = scmp.le.s32.totalorder 1, %s30
      %p825 = scmp.lt.s32.totalorder %s30, 3
      %p826 = pnand %p824, %p825
      %p827 = pneg %p826
      // Predicated region
      $region97: #{tpu_custom_call.1} parent=5 // pred_check
        _
      $region98: #{tpu_custom_call.1} parent=5 // pred_check_branch
        %829 = sbr.rel (%p826) target = $region100
      $region99: #{tpu_custom_call.1} parent=5 // pred_region
        %s830 = ssub.s32 %s30, 1
        // Predicated region
        $region101: #{tpu_custom_call.1} parent=99 // pred_check
          %p831 = pneg %p51
        $region102: #{tpu_custom_call.1} parent=99 // pred_check_branch
          %833 = sbr.rel (%p831) target = $region104
        $region103: #{tpu_custom_call.1} parent=99 // pred_region
          %834 = dma.done [#allocation4], 256
        $region104: #{tpu_custom_call.1} parent=99 // pred_fallthru
          _
        // Predicated region
        $region105: #{tpu_custom_call.1} parent=99 // pred_check
          %p835 = pneg %p72
        $region106: #{tpu_custom_call.1} parent=99 // pred_check_branch
          %837 = sbr.rel (%p835) target = $region108
        $region107: #{tpu_custom_call.1} parent=99 // pred_region
          %838 = dma.done [#allocation7], 512
        $region108: #{tpu_custom_call.1} parent=99 // pred_fallthru
          _
        // Predicated region
        $region109: #{tpu_custom_call.1} parent=99 // pred_check
          %p839 = pneg %p93
        $region110: #{tpu_custom_call.1} parent=99 // pred_check_branch
          %841 = sbr.rel (%p839) target = $region112
        $region111: #{tpu_custom_call.1} parent=99 // pred_region
          %842 = dma.done [#allocation7], 256
        $region112: #{tpu_custom_call.1} parent=99 // pred_fallthru
          _
        // Predicated region
        $region113: #{tpu_custom_call.1} parent=99 // pred_check
          %p843 = pneg %p114
        $region114: #{tpu_custom_call.1} parent=99 // pred_check_branch
          %845 = sbr.rel (%p843) target = $region116
        $region115: #{tpu_custom_call.1} parent=99 // pred_region
          %846 = dma.done [#allocation10], 512
        $region116: #{tpu_custom_call.1} parent=99 // pred_fallthru
          _
        %s847 = sand.u32 %s35, 1
        %s848 = scalar_lea.sflag [#allocation4], %s847
        %s849 = sand.u32 %s127, 1
        %s850 = smul.addr %s849, 32
        %s851 = scalar_lea.vmem [#allocation11], %s850
        // Predicated region
        $region117: #{tpu_custom_call.1} parent=99 // pred_check
          %p852 = pneg %p140
        $region118: #{tpu_custom_call.1} parent=99 // pred_check_branch
          %854 = sbr.rel (%p852) target = $region120
        $region119: #{tpu_custom_call.1} parent=99 // pred_region
          %855 = dma.done %s848, 512
        $region120: #{tpu_custom_call.1} parent=99 // pred_fallthru
          _
        %s856 = sand.u32 %s35, 1
        %s857 = scalar_lea.sflag [#allocation4], %s856
        %s858 = sand.u32 %s153, 1
        %s859 = scalar_lea.vmem [#allocation12], %s858
        // Predicated region
        $region121: #{tpu_custom_call.1} parent=99 // pred_check
          %p860 = pneg %p166
        $region122: #{tpu_custom_call.1} parent=99 // pred_check_branch
          %862 = sbr.rel (%p860) target = $region124
        $region123: #{tpu_custom_call.1} parent=99 // pred_region
          %863 = dma.done %s857, 16
        $region124: #{tpu_custom_call.1} parent=99 // pred_fallthru
          _
        %s864 = sand.u32 %s35, 1
        %s865 = scalar_lea.sflag [#allocation4], %s864
        %s866 = sand.u32 %s179, 1
        %s867 = smul.addr %s866, 32
        %s868 = scalar_lea.vmem [#allocation13], %s867
        // Predicated region
        $region125: #{tpu_custom_call.1} parent=99 // pred_check
          %p869 = pneg %p192
        $region126: #{tpu_custom_call.1} parent=99 // pred_check_branch
          %871 = sbr.rel (%p869) target = $region128
        $region127: #{tpu_custom_call.1} parent=99 // pred_region
          %872 = dma.done %s865, 512
        $region128: #{tpu_custom_call.1} parent=99 // pred_fallthru
          _
        %s873 = sand.u32 %s35, 1
        %s874 = scalar_lea.sflag [#allocation4], %s873
        %s875 = sand.u32 %s205, 1
        %s876 = scalar_lea.vmem [#allocation14], %s875
        // Predicated region
        $region129: #{tpu_custom_call.1} parent=99 // pred_check
          %p877 = pneg %p218
        $region130: #{tpu_custom_call.1} parent=99 // pred_check_branch
          %879 = sbr.rel (%p877) target = $region132
        $region131: #{tpu_custom_call.1} parent=99 // pred_region
          %880 = dma.done %s874, 16
        $region132: #{tpu_custom_call.1} parent=99 // pred_fallthru
          _
        %s881 = sand.u32 %s35, 1
        %s882 = scalar_lea.sflag [#allocation4], %s881
        %s883 = sand.u32 %s231, 1
        %s884 = smul.addr %s883, 32
        %s885 = scalar_lea.vmem [#allocation15], %s884
        // Predicated region
        $region133: #{tpu_custom_call.1} parent=99 // pred_check
          %p886 = pneg %p244
        $region134: #{tpu_custom_call.1} parent=99 // pred_check_branch
          %888 = sbr.rel (%p886) target = $region136
        $region135: #{tpu_custom_call.1} parent=99 // pred_region
          %889 = dma.done %s882, 512
        $region136: #{tpu_custom_call.1} parent=99 // pred_fallthru
          _
        %s890 = sand.u32 %s35, 1
        %s891 = scalar_lea.sflag [#allocation4], %s890
        %s892 = sand.u32 %s257, 1
        %s893 = scalar_lea.vmem [#allocation16], %s892
        // Predicated region
        $region137: #{tpu_custom_call.1} parent=99 // pred_check
          %p894 = pneg %p270
        $region138: #{tpu_custom_call.1} parent=99 // pred_check_branch
          %896 = sbr.rel (%p894) target = $region140
        $region139: #{tpu_custom_call.1} parent=99 // pred_region
          %897 = dma.done %s891, 16
        $region140: #{tpu_custom_call.1} parent=99 // pred_fallthru
          _
        %s898 = sand.u32 %s35, 1
        %s899 = scalar_lea.sflag [#allocation4], %s898
        %s900 = sand.u32 %s309, 1
        %s901 = smul.addr %s900, 4
        %s902 = scalar_lea.vmem [#allocation17], %s901
        // Predicated region
        $region141: #{tpu_custom_call.1} parent=99 // pred_check
          %p903 = pneg %p322
        $region142: #{tpu_custom_call.1} parent=99 // pred_check_branch
          %905 = sbr.rel (%p903) target = $region144
        $region143: #{tpu_custom_call.1} parent=99 // pred_region
          %906 = dma.done %s899, 64
        $region144: #{tpu_custom_call.1} parent=99 // pred_fallthru
          _
        %s907 = sand.u32 %s35, 1
        %s908 = scalar_lea.sflag [#allocation4], %s907
        %s909 = sand.u32 %s335, 1
        %s910 = smul.addr %s909, 32
        %s911 = scalar_lea.vmem [#allocation18], %s910
        // Predicated region
        $region145: #{tpu_custom_call.1} parent=99 // pred_check
          %p912 = pneg %p348
        $region146: #{tpu_custom_call.1} parent=99 // pred_check_branch
          %914 = sbr.rel (%p912) target = $region148
        $region147: #{tpu_custom_call.1} parent=99 // pred_region
          %915 = dma.done %s908, 512
        $region148: #{tpu_custom_call.1} parent=99 // pred_fallthru
          _
        %s916 = sand.u32 %s35, 1
        %s917 = scalar_lea.sflag [#allocation4], %s916
        %s918 = sand.u32 %s361, 1
        %s919 = scalar_lea.vmem [#allocation19], %s918
        // Predicated region
        $region149: #{tpu_custom_call.1} parent=99 // pred_check
          %p920 = pneg %p374
        $region150: #{tpu_custom_call.1} parent=99 // pred_check_branch
          %922 = sbr.rel (%p920) target = $region152
        $region151: #{tpu_custom_call.1} parent=99 // pred_region
          %923 = dma.done %s917, 16
        $region152: #{tpu_custom_call.1} parent=99 // pred_fallthru
          _
        %p924 = pneg %p51
        %p925 = pneg %p48
        %p926 = pneg %p72
        %p927 = pneg %p69
        %p928 = pneg %p93
        %p929 = pneg %p90
        %p930 = pneg %p114
        %p931 = pneg %p111
        %s932 = sand.u32 %s35, 1
        %s933 = scalar_lea.sflag [#allocation4], %s932
        %s934 = sand.u32 %s127, 1
        %s935 = smul.addr %s934, 32
        %s936 = scalar_lea.vmem [#allocation11], %s935
        %p937 = pneg %p140
        %p938 = pneg %p137
        %s939 = sand.u32 %s35, 1
        %s940 = scalar_lea.sflag [#allocation4], %s939
        %s941 = sand.u32 %s153, 1
        %s942 = scalar_lea.vmem [#allocation12], %s941
        %p943 = pneg %p166
        %p944 = pneg %p163
        %s945 = sand.u32 %s35, 1
        %s946 = scalar_lea.sflag [#allocation4], %s945
        %s947 = sand.u32 %s179, 1
        %s948 = smul.addr %s947, 32
        %s949 = scalar_lea.vmem [#allocation13], %s948
        %p950 = pneg %p192
        %p951 = pneg %p189
        %s952 = sand.u32 %s35, 1
        %s953 = scalar_lea.sflag [#allocation4], %s952
        %s954 = sand.u32 %s205, 1
        %s955 = scalar_lea.vmem [#allocation14], %s954
        %p956 = pneg %p218
        %p957 = pneg %p215
        %s958 = sand.u32 %s35, 1
        %s959 = scalar_lea.sflag [#allocation4], %s958
        %s960 = sand.u32 %s231, 1
        %s961 = smul.addr %s960, 32
        %s962 = scalar_lea.vmem [#allocation15], %s961
        %p963 = pneg %p244
        %p964 = pneg %p241
        %s965 = sand.u32 %s35, 1
        %s966 = scalar_lea.sflag [#allocation4], %s965
        %s967 = sand.u32 %s257, 1
        %s968 = scalar_lea.vmem [#allocation16], %s967
        %p969 = pneg %p270
        %p970 = pneg %p267
        %p971 = scmp.lt.s32.totalorder %s35, 1
        %s972 = scalar_select %p971, %s35, 1
        %s973 = smul.addr %s972, 16
        %s974 = smul.addr %s973, 8
        %s975 = scalar_lea.vmem %s10, %s974
        %p976 = pneg %p296
        %p977 = pneg %p293
        %s978 = sand.u32 %s35, 1
        %s979 = scalar_lea.sflag [#allocation4], %s978
        %s980 = sand.u32 %s309, 1
        %s981 = smul.addr %s980, 4
        %s982 = scalar_lea.vmem [#allocation17], %s981
        %p983 = pneg %p322
        %p984 = pneg %p319
        %s985 = sand.u32 %s35, 1
        %s986 = scalar_lea.sflag [#allocation4], %s985
        %s987 = sand.u32 %s335, 1
        %s988 = smul.addr %s987, 32
        %s989 = scalar_lea.vmem [#allocation18], %s988
        %p990 = pneg %p348
        %p991 = pneg %p345
        %s992 = sand.u32 %s35, 1
        %s993 = scalar_lea.sflag [#allocation4], %s992
        %s994 = sand.u32 %s361, 1
        %s995 = scalar_lea.vmem [#allocation19], %s994
        %p996 = pneg %p374
        %p997 = pneg %p371
        %p998 = scmp.lt.s32.totalorder %s35, 1
        %s999 = scalar_select %p998, %s35, 1
        %s1000 = smul.addr %s999, 8
        %s1001 = smul.addr %s1000, 8
        %s1002 = scalar_lea.vmem %s14, %s1001
        %p1003 = pneg %p400
        %p1004 = pneg %p397
        %p1005 = scmp.lt.s32.totalorder %s35, 1
        %s1006 = scalar_select %p1005, %s35, 1
        %s1007 = scalar_lea.vmem %s15, %s1006
        %p1008 = pneg %p426
        %p1009 = pneg %p423
        %p1010 = scmp.lt.s32.totalorder %s35, 1
        %s1011 = scalar_select %p1010, %s35, 1
        %s1012 = smul.addr %s1011, 4
        %s1013 = scalar_lea.vmem %s16, %s1012
        %p1014 = pneg %p452
        %p1015 = pneg %p449
        %p1016 = scmp.lt.s32.totalorder %s35, 1
        %s1017 = scalar_select %p1016, %s35, 1
        %s1018 = smul.addr %s1017, 4
        %s1019 = scalar_lea.vmem %s17, %s1018
        %p1020 = pneg %p478
        %p1021 = pneg %p475
        %p1022 = pneg %p499
        %p1023 = pneg %p496
        %p1024 = pneg %p520
        %p1025 = pneg %p517
        %p1026 = pneg %p541
        %p1027 = pneg %p538
        %p1028 = scmp.lt.s32.totalorder %s35, 1
        %s1029 = scalar_select %p1028, %s35, 1
        %s1030 = smul.addr %s1029, 16
        %s1031 = smul.addr %s1030, 8
        %s1032 = scalar_lea.vmem %s10, %s1031
        %p1033 = scmp.lt.s32.totalorder %s35, 1
        %s1034 = scalar_select %p1033, %s35, 1
        %s1035 = smul.addr %s1034, 8
        %s1036 = smul.addr %s1035, 8
        %s1037 = scalar_lea.vmem %s14, %s1036
        %p1038 = scmp.lt.s32.totalorder %s35, 1
        %s1039 = scalar_select %p1038, %s35, 1
        %s1040 = scalar_lea.vmem %s15, %s1039
        %p1041 = scmp.lt.s32.totalorder %s35, 1
        %s1042 = scalar_select %p1041, %s35, 1
        %s1043 = smul.addr %s1042, 4
        %s1044 = scalar_lea.vmem %s16, %s1043
        %p1045 = scmp.lt.s32.totalorder %s35, 1
        %s1046 = scalar_select %p1045, %s35, 1
        %s1047 = smul.addr %s1046, 4
        %s1048 = scalar_lea.vmem %s17, %s1047
        %p1049 = scmp.eq.s32.totalorder %s35, 0
        // Predicated region
        $region153: #{tpu_custom_call.1} parent=99 // pred_check
          %p1050 = pneg %p1049
        $region154: #{tpu_custom_call.1} parent=99 // pred_check_branch
          %1052 = sbr.rel (%p1050) target = $region156
        $region155: #{tpu_custom_call.1} parent=99 // pred_region
          %v1053 = vld [vmem:[#allocation3] sm:$0xff]
          %v1054 = vld [vmem:[#allocation3 + $0x8] sm:$0xff]
          %vm1055 = vcmask 261120
          %1056 = vst.msk [vmem:[#allocation2] sm:$0xff] %vm1055, %v1053
          %1057 = vst.msk [vmem:[#allocation2 + $0x8] sm:$0xff] %vm1055, %v1054
        $region156: #{tpu_custom_call.1} parent=99 // pred_fallthru
          _
        %v1058 = vld [vmem:[#allocation2] sm:$0xff]
        %v1059 = vld [vmem:[#allocation2 + $0x8] sm:$0xff]
        %v1060 = vld [vmem:[#allocation8] sm:$0xff]
        %v1061 = vld [vmem:[#allocation8 + $0x8] sm:$0xff]
        %v1062 = vld [vmem:[#allocation6] sm:$0xff]
        %v1063 = vld [vmem:[#allocation6 + $0x8] sm:$0xff]
        %v1064 = vld [vmem:[#allocation6 + $0x10] sm:$0xff]
        %v1065 = vld [vmem:[#allocation6 + $0x18] sm:$0xff]
        %v1066 = vld [vmem:[#allocation9] sm:$0xff]
        %v1067 = vld [vmem:[#allocation9 + $0x8] sm:$0xff]
        %v1068 = vld [vmem:[#allocation9 + $0x10] sm:$0xff]
        %v1069 = vld [vmem:[#allocation9 + $0x18] sm:$0xff]
        %v1070 = vadd.f32 %v1062, %v1066
        %v1071 = vadd.f32 %v1063, %v1067
        %v1072 = vadd.f32 %v1064, %v1068
        %v1073 = vadd.f32 %v1065, %v1069
        %v1074 = vld [vmem:[%s1044] sm:$0x7]
        %v1075 = vld [vmem:[%s1048] sm:$0x7]
        %v1076 = vadd.f32 %v1058, %v1060
        %v1077 = vadd.f32 %v1059, %v1061
        %v1078 = vld [vmem:[%s851] sm:$0xff]
        %v1079 = vld [vmem:[%s851 + $0x8] sm:$0xff]
        %v1080 = vld [vmem:[%s851 + $0x10] sm:$0xff]
        %v1081 = vld [vmem:[%s851 + $0x18] sm:$0xff]
        %v1082 = vld [vmem:[%s859] sm:$0x1]
        %v1084 = vlaneseq
        %v1085 = vshrl.u32 %v1084, 7
        %v1086 = vsub.s32 0, %v1085
        %v1087 = vrot.slane %v1082, %v1086
        %vm1089 = vcmask 261120
        %v1091 = vsel %vm1089, %v1076, 0
        %v1094 = vsel %vm1089, %v1077, 0
        %1096 = vmatprep.subr.mxu0 0.0
        %1097 = vmatpush1.msra.mxu0 %v1078
        %1098 = vmatprep.subr.mxu0 0.0
        %1099 = vmatpush1.msra.mxu0 %v1079
        %1100 = vmatprep.subr.mxu0 0.0
        %1101 = vmatpush1.msra.mxu0 %v1080
        %1102 = vmatprep.subr.mxu0 0.0
        %1103 = vmatpush1.msra.mxu0 %v1081
        %1104 = vmatprep.subr.mxu0 0.0
        %1105 = vmatpush1.msra.mxu0 0.0
        %1106 = vmatprep.subr.mxu0 0.0
        %1107 = vmatpush1.msra.mxu0 0.0
        %1108 = vmatprep.subr.mxu0 0.0
        %1109 = vmatpush1.msra.mxu0 0.0
        %1110 = vmatprep.subr.mxu0 0.0
        %1111 = vmatpush1.msra.mxu0 0.0
        %1112 = vmatprep.subr.mxu0 0.0
        %1113 = vmatpush1.msra.mxu0 0.0
        %1114 = vmatprep.subr.mxu0 0.0
        %1115 = vmatpush1.msra.mxu0 0.0
        %1116 = vmatprep.subr.mxu0 0.0
        %1117 = vmatpush1.msra.mxu0 0.0
        %1118 = vmatprep.subr.mxu0 0.0
        %1119 = vmatpush1.msra.mxu0 0.0
        %1120 = vmatprep.subr.mxu0 0.0
        %1121 = vmatpush1.msra.mxu0 0.0
        %1122 = vmatprep.subr.mxu0 0.0
        %1123 = vmatpush1.msra.mxu0 0.0
        %1124 = vmatprep.subr.mxu0 0.0
        %1125 = vmatpush1.msra.mxu0 0.0
        %1126 = vmatprep.subr.mxu0 0.0
        %1127 = vmatpush1.msra.mxu0 0.0
        %1128 = vmatprep.subr.mxu0 0.0
        %1129 = vmatpush1.msra.mxu0 0.0
        %1130 = vmatprep.subr.mxu0 0.0
        %1131 = vmatpush1.msra.mxu0 0.0
        %1132 = vmatprep.subr.mxu0 0.0
        %1133 = vmatpush1.msra.mxu0 0.0
        %1134 = vmatprep.subr.mxu0 0.0
        %1135 = vmatpush1.msra.mxu0 0.0
        %1136 = vmatprep.subr.mxu0 0.0
        %1137 = vmatpush1.msra.mxu0 0.0
        %1138 = vmatprep.subr.mxu0 0.0
        %1139 = vmatpush1.msra.mxu0 0.0
        %1140 = vmatprep.subr.mxu0 0.0
        %1141 = vmatpush1.msra.mxu0 0.0
        %1142 = vmatprep.subr.mxu0 0.0
        %1143 = vmatpush1.msra.mxu0 0.0
        %1144 = vmatprep.subr.mxu0 0.0
        %1145 = vmatpush1.msra.mxu0 0.0
        %1146 = vmatprep.subr.mxu0 0.0
        %1147 = vmatpush1.msra.mxu0 0.0
        %1148 = vmatprep.subr.mxu0 0.0
        %1149 = vmatpush1.msra.mxu0 0.0
        %1150 = vmatprep.subr.mxu0 0.0
        %1151 = vmatpush1.msra.mxu0 0.0
        %1152 = vmatprep.subr.mxu0 0.0
        %1153 = vmatpush1.msra.mxu0 0.0
        %1154 = vmatprep.subr.mxu0 0.0
        %1155 = vmatpush1.msra.mxu0 0.0
        %1156 = vmatprep.subr.mxu0 0.0
        %1157 = vmatpush1.msra.mxu0 0.0
        %1158 = vmatprep.subr.mxu0 0.0
        %1159 = vmatpush1.msra.mxu0 0.0
        %1160 = vmatprep.mubr.f32.mxu0 0.0
        %1161 = vmatmul.mubr.f32.gmra.mrb[0].mxu0 %v1091
        %v1162 = vpop.f32.mrb[0].mxu0
        %v1163 = vadd.f32 %v1087, %v1162
        %v1164 = vpop.f32.mrb[0].mxu0
        %1165 = vmatprep.mubr.f32.mxu0 0.0
        %1166 = vmatmul.mubr.f32.gmra.mrb[0].mxu0 %v1094
        %v1167 = vpop.f32.mrb[0].mxu0
        %v1168 = vadd.f32 %v1087, %v1167
        %v1169 = vpop.f32.mrb[0].mxu0
        %1170 = vdwg.mxu0
        %v1171 = vld [vmem:[%s868] sm:$0xff]
        %v1172 = vld [vmem:[%s868 + $0x8] sm:$0xff]
        %v1173 = vld [vmem:[%s868 + $0x10] sm:$0xff]
        %v1174 = vld [vmem:[%s868 + $0x18] sm:$0xff]
        %v1175 = vld [vmem:[%s876] sm:$0x1]
        %v1177 = vlaneseq
        %v1178 = vshrl.u32 %v1177, 7
        %v1179 = vsub.s32 0, %v1178
        %v1180 = vrot.slane %v1175, %v1179
        %v1183 = vsel %vm1089, %v1058, 0
        %v1186 = vsel %vm1089, %v1059, 0
        %1188 = vmatprep.subr.mxu0 0.0
        %1189 = vmatpush1.msra.mxu0 %v1171
        %1190 = vmatprep.subr.mxu0 0.0
        %1191 = vmatpush1.msra.mxu0 %v1172
        %1192 = vmatprep.subr.mxu0 0.0
        %1193 = vmatpush1.msra.mxu0 %v1173
        %1194 = vmatprep.subr.mxu0 0.0
        %1195 = vmatpush1.msra.mxu0 %v1174
        %1196 = vmatprep.subr.mxu0 0.0
        %1197 = vmatpush1.msra.mxu0 0.0
        %1198 = vmatprep.subr.mxu0 0.0
        %1199 = vmatpush1.msra.mxu0 0.0
        %1200 = vmatprep.subr.mxu0 0.0
        %1201 = vmatpush1.msra.mxu0 0.0
        %1202 = vmatprep.subr.mxu0 0.0
        %1203 = vmatpush1.msra.mxu0 0.0
        %1204 = vmatprep.subr.mxu0 0.0
        %1205 = vmatpush1.msra.mxu0 0.0
        %1206 = vmatprep.subr.mxu0 0.0
        %1207 = vmatpush1.msra.mxu0 0.0
        %1208 = vmatprep.subr.mxu0 0.0
        %1209 = vmatpush1.msra.mxu0 0.0
        %1210 = vmatprep.subr.mxu0 0.0
        %1211 = vmatpush1.msra.mxu0 0.0
        %1212 = vmatprep.subr.mxu0 0.0
        %1213 = vmatpush1.msra.mxu0 0.0
        %1214 = vmatprep.subr.mxu0 0.0
        %1215 = vmatpush1.msra.mxu0 0.0
        %1216 = vmatprep.subr.mxu0 0.0
        %1217 = vmatpush1.msra.mxu0 0.0
        %1218 = vmatprep.subr.mxu0 0.0
        %1219 = vmatpush1.msra.mxu0 0.0
        %1220 = vmatprep.subr.mxu0 0.0
        %1221 = vmatpush1.msra.mxu0 0.0
        %1222 = vmatprep.subr.mxu0 0.0
        %1223 = vmatpush1.msra.mxu0 0.0
        %1224 = vmatprep.subr.mxu0 0.0
        %1225 = vmatpush1.msra.mxu0 0.0
        %1226 = vmatprep.subr.mxu0 0.0
        %1227 = vmatpush1.msra.mxu0 0.0
        %1228 = vmatprep.subr.mxu0 0.0
        %1229 = vmatpush1.msra.mxu0 0.0
        %1230 = vmatprep.subr.mxu0 0.0
        %1231 = vmatpush1.msra.mxu0 0.0
        %1232 = vmatprep.subr.mxu0 0.0
        %1233 = vmatpush1.msra.mxu0 0.0
        %1234 = vmatprep.subr.mxu0 0.0
        %1235 = vmatpush1.msra.mxu0 0.0
        %1236 = vmatprep.subr.mxu0 0.0
        %1237 = vmatpush1.msra.mxu0 0.0
        %1238 = vmatprep.subr.mxu0 0.0
        %1239 = vmatpush1.msra.mxu0 0.0
        %1240 = vmatprep.subr.mxu0 0.0
        %1241 = vmatpush1.msra.mxu0 0.0
        %1242 = vmatprep.subr.mxu0 0.0
        %1243 = vmatpush1.msra.mxu0 0.0
        %1244 = vmatprep.subr.mxu0 0.0
        %1245 = vmatpush1.msra.mxu0 0.0
        %1246 = vmatprep.subr.mxu0 0.0
        %1247 = vmatpush1.msra.mxu0 0.0
        %1248 = vmatprep.subr.mxu0 0.0
        %1249 = vmatpush1.msra.mxu0 0.0
        %1250 = vmatprep.subr.mxu0 0.0
        %1251 = vmatpush1.msra.mxu0 0.0
        %1252 = vmatprep.mubr.f32.mxu0 0.0
        %1253 = vmatmul.mubr.f32.gmra.mrb[0].mxu0 %v1183
        %v1254 = vpop.f32.mrb[0].mxu0
        %v1255 = vadd.f32 %v1180, %v1254
        %v1256 = vpop.f32.mrb[0].mxu0
        %1257 = vmatprep.mubr.f32.mxu0 0.0
        %1258 = vmatmul.mubr.f32.gmra.mrb[0].mxu0 %v1186
        %v1259 = vpop.f32.mrb[0].mxu0
        %v1260 = vadd.f32 %v1180, %v1259
        %v1261 = vpop.f32.mrb[0].mxu0
        %1262 = vdwg.mxu0
        %1264 = vrot.lane.b32.xlu0 %v1163, 96
        %v1265 = vpop.permute.xlu0 %1264
        %vm1266 = vcmask 64512
        %v1267 = vsel %vm1266, %v1163, 0
        %v1269 = vsel %vm1266, %v1265, 0
        %1271 = vmatprep.subr.mxu0 0.0
        %1272 = vmatpush1.xpose.msra.mxu0 %v1269
        %1273 = vmatprep.subr.mxu0 0.0
        %1274 = vmatpush1.xpose.msra.mxu0 0.0
        %1275 = vmatprep.subr.mxu0 0.0
        %1276 = vmatpush1.xpose.msra.mxu0 0.0
        %1277 = vmatprep.subr.mxu0 0.0
        %1278 = vmatpush1.xpose.msra.mxu0 0.0
        %1279 = vmatprep.subr.mxu0 0.0
        %1280 = vmatpush1.xpose.msra.mxu0 0.0
        %1281 = vmatprep.subr.mxu0 0.0
        %1282 = vmatpush1.xpose.msra.mxu0 0.0
        %1283 = vmatprep.subr.mxu0 0.0
        %1284 = vmatpush1.xpose.msra.mxu0 0.0
        %1285 = vmatprep.subr.mxu0 0.0
        %1286 = vmatpush1.xpose.msra.mxu0 0.0
        %1287 = vmatprep.subr.mxu0 0.0
        %1288 = vmatpush1.xpose.msra.mxu0 0.0
        %1289 = vmatprep.subr.mxu0 0.0
        %1290 = vmatpush1.xpose.msra.mxu0 0.0
        %1291 = vmatprep.subr.mxu0 0.0
        %1292 = vmatpush1.xpose.msra.mxu0 0.0
        %1293 = vmatprep.subr.mxu0 0.0
        %1294 = vmatpush1.xpose.msra.mxu0 0.0
        %1295 = vmatprep.subr.mxu0 0.0
        %1296 = vmatpush1.xpose.msra.mxu0 0.0
        %1297 = vmatprep.subr.mxu0 0.0
        %1298 = vmatpush1.xpose.msra.mxu0 0.0
        %1299 = vmatprep.subr.mxu0 0.0
        %1300 = vmatpush1.xpose.msra.mxu0 0.0
        %1301 = vmatprep.subr.mxu0 0.0
        %1302 = vmatpush1.xpose.msra.mxu0 0.0
        %1303 = vmatprep.subr.mxu0 0.0
        %1304 = vmatpush1.xpose.msra.mxu0 0.0
        %1305 = vmatprep.subr.mxu0 0.0
        %1306 = vmatpush1.xpose.msra.mxu0 0.0
        %1307 = vmatprep.subr.mxu0 0.0
        %1308 = vmatpush1.xpose.msra.mxu0 0.0
        %1309 = vmatprep.subr.mxu0 0.0
        %1310 = vmatpush1.xpose.msra.mxu0 0.0
        %1311 = vmatprep.subr.mxu0 0.0
        %1312 = vmatpush1.xpose.msra.mxu0 0.0
        %1313 = vmatprep.subr.mxu0 0.0
        %1314 = vmatpush1.xpose.msra.mxu0 0.0
        %1315 = vmatprep.subr.mxu0 0.0
        %1316 = vmatpush1.xpose.msra.mxu0 0.0
        %1317 = vmatprep.subr.mxu0 0.0
        %1318 = vmatpush1.xpose.msra.mxu0 0.0
        %1319 = vmatprep.subr.mxu0 0.0
        %1320 = vmatpush1.xpose.msra.mxu0 0.0
        %1321 = vmatprep.subr.mxu0 0.0
        %1322 = vmatpush1.xpose.msra.mxu0 0.0
        %1323 = vmatprep.subr.mxu0 0.0
        %1324 = vmatpush1.xpose.msra.mxu0 0.0
        %1325 = vmatprep.subr.mxu0 0.0
        %1326 = vmatpush1.xpose.msra.mxu0 0.0
        %1327 = vmatprep.subr.mxu0 0.0
        %1328 = vmatpush1.xpose.msra.mxu0 0.0
        %1329 = vmatprep.subr.mxu0 0.0
        %1330 = vmatpush1.xpose.msra.mxu0 0.0
        %1331 = vmatprep.subr.mxu0 0.0
        %1332 = vmatpush1.xpose.msra.mxu0 0.0
        %1333 = vmatprep.subr.mxu0 0.0
        %1334 = vmatpush1.xpose.msra.mxu0 0.0
        %1335 = vmatprep.mubr.f32.mxu0 0.0
        %1336 = vmatmul.mubr.f32.gmra.mrb[0].mxu0 %v1267
        %v1337 = vpop.f32.mrb[0].mxu0
        %v1338 = vadd.f32 0.0, %v1337
        %v1339 = vpop.f32.mrb[0].mxu0
        %1340 = vdwg.mxu0
        %1342 = vrot.lane.b32.xlu0 %v1168, 96
        %v1343 = vpop.permute.xlu0 %1342
        %v1344 = vsel %vm1266, %v1168, 0
        %v1346 = vsel %vm1266, %v1343, 0
        %1348 = vmatprep.subr.mxu0 0.0
        %1349 = vmatpush1.xpose.msra.mxu0 %v1346
        %1350 = vmatprep.subr.mxu0 0.0
        %1351 = vmatpush1.xpose.msra.mxu0 0.0
        %1352 = vmatprep.subr.mxu0 0.0
        %1353 = vmatpush1.xpose.msra.mxu0 0.0
        %1354 = vmatprep.subr.mxu0 0.0
        %1355 = vmatpush1.xpose.msra.mxu0 0.0
        %1356 = vmatprep.subr.mxu0 0.0
        %1357 = vmatpush1.xpose.msra.mxu0 0.0
        %1358 = vmatprep.subr.mxu0 0.0
        %1359 = vmatpush1.xpose.msra.mxu0 0.0
        %1360 = vmatprep.subr.mxu0 0.0
        %1361 = vmatpush1.xpose.msra.mxu0 0.0
        %1362 = vmatprep.subr.mxu0 0.0
        %1363 = vmatpush1.xpose.msra.mxu0 0.0
        %1364 = vmatprep.subr.mxu0 0.0
        %1365 = vmatpush1.xpose.msra.mxu0 0.0
        %1366 = vmatprep.subr.mxu0 0.0
        %1367 = vmatpush1.xpose.msra.mxu0 0.0
        %1368 = vmatprep.subr.mxu0 0.0
        %1369 = vmatpush1.xpose.msra.mxu0 0.0
        %1370 = vmatprep.subr.mxu0 0.0
        %1371 = vmatpush1.xpose.msra.mxu0 0.0
        %1372 = vmatprep.subr.mxu0 0.0
        %1373 = vmatpush1.xpose.msra.mxu0 0.0
        %1374 = vmatprep.subr.mxu0 0.0
        %1375 = vmatpush1.xpose.msra.mxu0 0.0
        %1376 = vmatprep.subr.mxu0 0.0
        %1377 = vmatpush1.xpose.msra.mxu0 0.0
        %1378 = vmatprep.subr.mxu0 0.0
        %1379 = vmatpush1.xpose.msra.mxu0 0.0
        %1380 = vmatprep.subr.mxu0 0.0
        %1381 = vmatpush1.xpose.msra.mxu0 0.0
        %1382 = vmatprep.subr.mxu0 0.0
        %1383 = vmatpush1.xpose.msra.mxu0 0.0
        %1384 = vmatprep.subr.mxu0 0.0
        %1385 = vmatpush1.xpose.msra.mxu0 0.0
        %1386 = vmatprep.subr.mxu0 0.0
        %1387 = vmatpush1.xpose.msra.mxu0 0.0
        %1388 = vmatprep.subr.mxu0 0.0
        %1389 = vmatpush1.xpose.msra.mxu0 0.0
        %1390 = vmatprep.subr.mxu0 0.0
        %1391 = vmatpush1.xpose.msra.mxu0 0.0
        %1392 = vmatprep.subr.mxu0 0.0
        %1393 = vmatpush1.xpose.msra.mxu0 0.0
        %1394 = vmatprep.subr.mxu0 0.0
        %1395 = vmatpush1.xpose.msra.mxu0 0.0
        %1396 = vmatprep.subr.mxu0 0.0
        %1397 = vmatpush1.xpose.msra.mxu0 0.0
        %1398 = vmatprep.subr.mxu0 0.0
        %1399 = vmatpush1.xpose.msra.mxu0 0.0
        %1400 = vmatprep.subr.mxu0 0.0
        %1401 = vmatpush1.xpose.msra.mxu0 0.0
        %1402 = vmatprep.subr.mxu0 0.0
        %1403 = vmatpush1.xpose.msra.mxu0 0.0
        %1404 = vmatprep.subr.mxu0 0.0
        %1405 = vmatpush1.xpose.msra.mxu0 0.0
        %1406 = vmatprep.subr.mxu0 0.0
        %1407 = vmatpush1.xpose.msra.mxu0 0.0
        %1408 = vmatprep.subr.mxu0 0.0
        %1409 = vmatpush1.xpose.msra.mxu0 0.0
        %1410 = vmatprep.subr.mxu0 0.0
        %1411 = vmatpush1.xpose.msra.mxu0 0.0
        %1412 = vmatprep.mubr.f32.mxu0 0.0
        %1413 = vmatmul.mubr.f32.gmra.mrb[0].mxu0 %v1344
        %v1414 = vpop.f32.mrb[0].mxu0
        %v1415 = vadd.f32 0.0, %v1414
        %v1416 = vpop.f32.mrb[0].mxu0
        %1417 = vdwg.mxu0
        %v1418 = vsel %vm1266, %v1338, -inf
        %1419 = vmax.xlane.f32.xlu0 %v1418
        %v1420 = vpop.xlane.xlu0 %1419
        %v1421 = vsel %vm1266, %v1415, -inf
        %1422 = vmax.xlane.f32.xlu0 %v1421
        %v1423 = vpop.xlane.xlu0 %1422
        %v1424 = vsub.f32 %v1338, %v1420
        %v1425 = vsub.f32 %v1415, %v1423
        %v1426 = vmul.f32 %v1424, 1.442695
        %v1427 = vpow.pop %v1426
        %v1428 = vmul.f32 %v1425, 1.442695
        %v1429 = vpow.pop %v1428
        %v1430 = vsel %vm1266, %v1427, 0.0
        %1431 = vadd.xlane.f32.xlu0 %v1430
        %v1432 = vpop.xlane.xlu0 %1431
        %v1433 = vsel %vm1266, %v1429, 0.0
        %1434 = vadd.xlane.f32.xlu0 %v1433
        %v1435 = vpop.xlane.xlu0 %1434
        %v1436 = vrcp.pop %v1432
        %v1437 = vrcp.pop %v1435
        %v1438 = vmul.f32 %v1427, %v1436
        %v1439 = vmul.f32 %v1429, %v1437
        %v1441 = vsel %vm1266, %v1438, 0
        %1443 = vmatprep.subr.mxu0 0.0
        %1444 = vmatpush1.msra.mxu0 %v1255
        %1445 = vmatprep.subr.mxu0 0.0
        %1446 = vmatpush1.msra.mxu0 0.0
        %1447 = vmatprep.subr.mxu0 0.0
        %1448 = vmatpush1.msra.mxu0 0.0
        %1449 = vmatprep.subr.mxu0 0.0
        %1450 = vmatpush1.msra.mxu0 0.0
        %1451 = vmatprep.subr.mxu0 0.0
        %1452 = vmatpush1.msra.mxu0 0.0
        %1453 = vmatprep.subr.mxu0 0.0
        %1454 = vmatpush1.msra.mxu0 0.0
        %1455 = vmatprep.subr.mxu0 0.0
        %1456 = vmatpush1.msra.mxu0 0.0
        %1457 = vmatprep.subr.mxu0 0.0
        %1458 = vmatpush1.msra.mxu0 0.0
        %1459 = vmatprep.subr.mxu0 0.0
        %1460 = vmatpush1.msra.mxu0 0.0
        %1461 = vmatprep.subr.mxu0 0.0
        %1462 = vmatpush1.msra.mxu0 0.0
        %1463 = vmatprep.subr.mxu0 0.0
        %1464 = vmatpush1.msra.mxu0 0.0
        %1465 = vmatprep.subr.mxu0 0.0
        %1466 = vmatpush1.msra.mxu0 0.0
        %1467 = vmatprep.subr.mxu0 0.0
        %1468 = vmatpush1.msra.mxu0 0.0
        %1469 = vmatprep.subr.mxu0 0.0
        %1470 = vmatpush1.msra.mxu0 0.0
        %1471 = vmatprep.subr.mxu0 0.0
        %1472 = vmatpush1.msra.mxu0 0.0
        %1473 = vmatprep.subr.mxu0 0.0
        %1474 = vmatpush1.msra.mxu0 0.0
        %1475 = vmatprep.subr.mxu0 0.0
        %1476 = vmatpush1.msra.mxu0 0.0
        %1477 = vmatprep.subr.mxu0 0.0
        %1478 = vmatpush1.msra.mxu0 0.0
        %1479 = vmatprep.subr.mxu0 0.0
        %1480 = vmatpush1.msra.mxu0 0.0
        %1481 = vmatprep.subr.mxu0 0.0
        %1482 = vmatpush1.msra.mxu0 0.0
        %1483 = vmatprep.subr.mxu0 0.0
        %1484 = vmatpush1.msra.mxu0 0.0
        %1485 = vmatprep.subr.mxu0 0.0
        %1486 = vmatpush1.msra.mxu0 0.0
        %1487 = vmatprep.subr.mxu0 0.0
        %1488 = vmatpush1.msra.mxu0 0.0
        %1489 = vmatprep.subr.mxu0 0.0
        %1490 = vmatpush1.msra.mxu0 0.0
        %1491 = vmatprep.subr.mxu0 0.0
        %1492 = vmatpush1.msra.mxu0 0.0
        %1493 = vmatprep.subr.mxu0 0.0
        %1494 = vmatpush1.msra.mxu0 0.0
        %1495 = vmatprep.subr.mxu0 0.0
        %1496 = vmatpush1.msra.mxu0 0.0
        %1497 = vmatprep.subr.mxu0 0.0
        %1498 = vmatpush1.msra.mxu0 0.0
        %1499 = vmatprep.subr.mxu0 0.0
        %1500 = vmatpush1.msra.mxu0 0.0
        %1501 = vmatprep.subr.mxu0 0.0
        %1502 = vmatpush1.msra.mxu0 0.0
        %1503 = vmatprep.subr.mxu0 0.0
        %1504 = vmatpush1.msra.mxu0 0.0
        %1505 = vmatprep.subr.mxu0 0.0
        %1506 = vmatpush1.msra.mxu0 0.0
        %1507 = vmatprep.mubr.f32.mxu0 0.0
        %1508 = vmatmul.mubr.f32.gmra.mrb[0].mxu0 %v1441
        %v1509 = vpop.f32.mrb[0].mxu0
        %v1510 = vadd.f32 0.0, %v1509
        %v1511 = vpop.f32.mrb[0].mxu0
        %1512 = vdwg.mxu0
        %v1514 = vsel %vm1266, %v1439, 0
        %1516 = vmatprep.subr.mxu0 0.0
        %1517 = vmatpush1.msra.mxu0 %v1260
        %1518 = vmatprep.subr.mxu0 0.0
        %1519 = vmatpush1.msra.mxu0 0.0
        %1520 = vmatprep.subr.mxu0 0.0
        %1521 = vmatpush1.msra.mxu0 0.0
        %1522 = vmatprep.subr.mxu0 0.0
        %1523 = vmatpush1.msra.mxu0 0.0
        %1524 = vmatprep.subr.mxu0 0.0
        %1525 = vmatpush1.msra.mxu0 0.0
        %1526 = vmatprep.subr.mxu0 0.0
        %1527 = vmatpush1.msra.mxu0 0.0
        %1528 = vmatprep.subr.mxu0 0.0
        %1529 = vmatpush1.msra.mxu0 0.0
        %1530 = vmatprep.subr.mxu0 0.0
        %1531 = vmatpush1.msra.mxu0 0.0
        %1532 = vmatprep.subr.mxu0 0.0
        %1533 = vmatpush1.msra.mxu0 0.0
        %1534 = vmatprep.subr.mxu0 0.0
        %1535 = vmatpush1.msra.mxu0 0.0
        %1536 = vmatprep.subr.mxu0 0.0
        %1537 = vmatpush1.msra.mxu0 0.0
        %1538 = vmatprep.subr.mxu0 0.0
        %1539 = vmatpush1.msra.mxu0 0.0
        %1540 = vmatprep.subr.mxu0 0.0
        %1541 = vmatpush1.msra.mxu0 0.0
        %1542 = vmatprep.subr.mxu0 0.0
        %1543 = vmatpush1.msra.mxu0 0.0
        %1544 = vmatprep.subr.mxu0 0.0
        %1545 = vmatpush1.msra.mxu0 0.0
        %1546 = vmatprep.subr.mxu0 0.0
        %1547 = vmatpush1.msra.mxu0 0.0
        %1548 = vmatprep.subr.mxu0 0.0
        %1549 = vmatpush1.msra.mxu0 0.0
        %1550 = vmatprep.subr.mxu0 0.0
        %1551 = vmatpush1.msra.mxu0 0.0
        %1552 = vmatprep.subr.mxu0 0.0
        %1553 = vmatpush1.msra.mxu0 0.0
        %1554 = vmatprep.subr.mxu0 0.0
        %1555 = vmatpush1.msra.mxu0 0.0
        %1556 = vmatprep.subr.mxu0 0.0
        %1557 = vmatpush1.msra.mxu0 0.0
        %1558 = vmatprep.subr.mxu0 0.0
        %1559 = vmatpush1.msra.mxu0 0.0
        %1560 = vmatprep.subr.mxu0 0.0
        %1561 = vmatpush1.msra.mxu0 0.0
        %1562 = vmatprep.subr.mxu0 0.0
        %1563 = vmatpush1.msra.mxu0 0.0
        %1564 = vmatprep.subr.mxu0 0.0
        %1565 = vmatpush1.msra.mxu0 0.0
        %1566 = vmatprep.subr.mxu0 0.0
        %1567 = vmatpush1.msra.mxu0 0.0
        %1568 = vmatprep.subr.mxu0 0.0
        %1569 = vmatpush1.msra.mxu0 0.0
        %1570 = vmatprep.subr.mxu0 0.0
        %1571 = vmatpush1.msra.mxu0 0.0
        %1572 = vmatprep.subr.mxu0 0.0
        %1573 = vmatpush1.msra.mxu0 0.0
        %1574 = vmatprep.subr.mxu0 0.0
        %1575 = vmatpush1.msra.mxu0 0.0
        %1576 = vmatprep.subr.mxu0 0.0
        %1577 = vmatpush1.msra.mxu0 0.0
        %1578 = vmatprep.subr.mxu0 0.0
        %1579 = vmatpush1.msra.mxu0 0.0
        %1580 = vmatprep.mubr.f32.mxu0 0.0
        %1581 = vmatmul.mubr.f32.gmra.mrb[0].mxu0 %v1514
        %v1582 = vpop.f32.mrb[0].mxu0
        %v1583 = vadd.f32 0.0, %v1582
        %v1584 = vpop.f32.mrb[0].mxu0
        %1585 = vdwg.mxu0
        %1586 = vrot.lane.b32.xlu0 %v1163, 120
        %v1587 = vpop.permute.xlu0 %1586
        %1588 = vrot.lane.b32.xlu0 %v1163, 88
        %v1589 = vpop.permute.xlu0 %1588
        %v1590 = vsel %vm1266, %v1587, 0
        %v1592 = vsel %vm1266, %v1589, 0
        %1594 = vmatprep.subr.mxu0 0.0
        %1595 = vmatpush1.xpose.msra.mxu0 %v1592
        %1596 = vmatprep.subr.mxu0 0.0
        %1597 = vmatpush1.xpose.msra.mxu0 0.0
        %1598 = vmatprep.subr.mxu0 0.0
        %1599 = vmatpush1.xpose.msra.mxu0 0.0
        %1600 = vmatprep.subr.mxu0 0.0
        %1601 = vmatpush1.xpose.msra.mxu0 0.0
        %1602 = vmatprep.subr.mxu0 0.0
        %1603 = vmatpush1.xpose.msra.mxu0 0.0
        %1604 = vmatprep.subr.mxu0 0.0
        %1605 = vmatpush1.xpose.msra.mxu0 0.0
        %1606 = vmatprep.subr.mxu0 0.0
        %1607 = vmatpush1.xpose.msra.mxu0 0.0
        %1608 = vmatprep.subr.mxu0 0.0
        %1609 = vmatpush1.xpose.msra.mxu0 0.0
        %1610 = vmatprep.subr.mxu0 0.0
        %1611 = vmatpush1.xpose.msra.mxu0 0.0
        %1612 = vmatprep.subr.mxu0 0.0
        %1613 = vmatpush1.xpose.msra.mxu0 0.0
        %1614 = vmatprep.subr.mxu0 0.0
        %1615 = vmatpush1.xpose.msra.mxu0 0.0
        %1616 = vmatprep.subr.mxu0 0.0
        %1617 = vmatpush1.xpose.msra.mxu0 0.0
        %1618 = vmatprep.subr.mxu0 0.0
        %1619 = vmatpush1.xpose.msra.mxu0 0.0
        %1620 = vmatprep.subr.mxu0 0.0
        %1621 = vmatpush1.xpose.msra.mxu0 0.0
        %1622 = vmatprep.subr.mxu0 0.0
        %1623 = vmatpush1.xpose.msra.mxu0 0.0
        %1624 = vmatprep.subr.mxu0 0.0
        %1625 = vmatpush1.xpose.msra.mxu0 0.0
        %1626 = vmatprep.subr.mxu0 0.0
        %1627 = vmatpush1.xpose.msra.mxu0 0.0
        %1628 = vmatprep.subr.mxu0 0.0
        %1629 = vmatpush1.xpose.msra.mxu0 0.0
        %1630 = vmatprep.subr.mxu0 0.0
        %1631 = vmatpush1.xpose.msra.mxu0 0.0
        %1632 = vmatprep.subr.mxu0 0.0
        %1633 = vmatpush1.xpose.msra.mxu0 0.0
        %1634 = vmatprep.subr.mxu0 0.0
        %1635 = vmatpush1.xpose.msra.mxu0 0.0
        %1636 = vmatprep.subr.mxu0 0.0
        %1637 = vmatpush1.xpose.msra.mxu0 0.0
        %1638 = vmatprep.subr.mxu0 0.0
        %1639 = vmatpush1.xpose.msra.mxu0 0.0
        %1640 = vmatprep.subr.mxu0 0.0
        %1641 = vmatpush1.xpose.msra.mxu0 0.0
        %1642 = vmatprep.subr.mxu0 0.0
        %1643 = vmatpush1.xpose.msra.mxu0 0.0
        %1644 = vmatprep.subr.mxu0 0.0
        %1645 = vmatpush1.xpose.msra.mxu0 0.0
        %1646 = vmatprep.subr.mxu0 0.0
        %1647 = vmatpush1.xpose.msra.mxu0 0.0
        %1648 = vmatprep.subr.mxu0 0.0
        %1649 = vmatpush1.xpose.msra.mxu0 0.0
        %1650 = vmatprep.subr.mxu0 0.0
        %1651 = vmatpush1.xpose.msra.mxu0 0.0
        %1652 = vmatprep.subr.mxu0 0.0
        %1653 = vmatpush1.xpose.msra.mxu0 0.0
        %1654 = vmatprep.subr.mxu0 0.0
        %1655 = vmatpush1.xpose.msra.mxu0 0.0
        %1656 = vmatprep.subr.mxu0 0.0
        %1657 = vmatpush1.xpose.msra.mxu0 0.0
        %1658 = vmatprep.mubr.f32.mxu0 0.0
        %1659 = vmatmul.mubr.f32.gmra.mrb[0].mxu0 %v1590
        %v1660 = vpop.f32.mrb[0].mxu0
        %v1661 = vadd.f32 0.0, %v1660
        %v1662 = vpop.f32.mrb[0].mxu0
        %1663 = vdwg.mxu0
        %1664 = vrot.lane.b32.xlu0 %v1168, 120
        %v1665 = vpop.permute.xlu0 %1664
        %1666 = vrot.lane.b32.xlu0 %v1168, 88
        %v1667 = vpop.permute.xlu0 %1666
        %v1668 = vsel %vm1266, %v1665, 0
        %v1670 = vsel %vm1266, %v1667, 0
        %1672 = vmatprep.subr.mxu0 0.0
        %1673 = vmatpush1.xpose.msra.mxu0 %v1670
        %1674 = vmatprep.subr.mxu0 0.0
        %1675 = vmatpush1.xpose.msra.mxu0 0.0
        %1676 = vmatprep.subr.mxu0 0.0
        %1677 = vmatpush1.xpose.msra.mxu0 0.0
        %1678 = vmatprep.subr.mxu0 0.0
        %1679 = vmatpush1.xpose.msra.mxu0 0.0
        %1680 = vmatprep.subr.mxu0 0.0
        %1681 = vmatpush1.xpose.msra.mxu0 0.0
        %1682 = vmatprep.subr.mxu0 0.0
        %1683 = vmatpush1.xpose.msra.mxu0 0.0
        %1684 = vmatprep.subr.mxu0 0.0
        %1685 = vmatpush1.xpose.msra.mxu0 0.0
        %1686 = vmatprep.subr.mxu0 0.0
        %1687 = vmatpush1.xpose.msra.mxu0 0.0
        %1688 = vmatprep.subr.mxu0 0.0
        %1689 = vmatpush1.xpose.msra.mxu0 0.0
        %1690 = vmatprep.subr.mxu0 0.0
        %1691 = vmatpush1.xpose.msra.mxu0 0.0
        %1692 = vmatprep.subr.mxu0 0.0
        %1693 = vmatpush1.xpose.msra.mxu0 0.0
        %1694 = vmatprep.subr.mxu0 0.0
        %1695 = vmatpush1.xpose.msra.mxu0 0.0
        %1696 = vmatprep.subr.mxu0 0.0
        %1697 = vmatpush1.xpose.msra.mxu0 0.0
        %1698 = vmatprep.subr.mxu0 0.0
        %1699 = vmatpush1.xpose.msra.mxu0 0.0
        %1700 = vmatprep.subr.mxu0 0.0
        %1701 = vmatpush1.xpose.msra.mxu0 0.0
        %1702 = vmatprep.subr.mxu0 0.0
        %1703 = vmatpush1.xpose.msra.mxu0 0.0
        %1704 = vmatprep.subr.mxu0 0.0
        %1705 = vmatpush1.xpose.msra.mxu0 0.0
        %1706 = vmatprep.subr.mxu0 0.0
        %1707 = vmatpush1.xpose.msra.mxu0 0.0
        %1708 = vmatprep.subr.mxu0 0.0
        %1709 = vmatpush1.xpose.msra.mxu0 0.0
        %1710 = vmatprep.subr.mxu0 0.0
        %1711 = vmatpush1.xpose.msra.mxu0 0.0
        %1712 = vmatprep.subr.mxu0 0.0
        %1713 = vmatpush1.xpose.msra.mxu0 0.0
        %1714 = vmatprep.subr.mxu0 0.0
        %1715 = vmatpush1.xpose.msra.mxu0 0.0
        %1716 = vmatprep.subr.mxu0 0.0
        %1717 = vmatpush1.xpose.msra.mxu0 0.0
        %1718 = vmatprep.subr.mxu0 0.0
        %1719 = vmatpush1.xpose.msra.mxu0 0.0
        %1720 = vmatprep.subr.mxu0 0.0
        %1721 = vmatpush1.xpose.msra.mxu0 0.0
        %1722 = vmatprep.subr.mxu0 0.0
        %1723 = vmatpush1.xpose.msra.mxu0 0.0
        %1724 = vmatprep.subr.mxu0 0.0
        %1725 = vmatpush1.xpose.msra.mxu0 0.0
        %1726 = vmatprep.subr.mxu0 0.0
        %1727 = vmatpush1.xpose.msra.mxu0 0.0
        %1728 = vmatprep.subr.mxu0 0.0
        %1729 = vmatpush1.xpose.msra.mxu0 0.0
        %1730 = vmatprep.subr.mxu0 0.0
        %1731 = vmatpush1.xpose.msra.mxu0 0.0
        %1732 = vmatprep.subr.mxu0 0.0
        %1733 = vmatpush1.xpose.msra.mxu0 0.0
        %1734 = vmatprep.subr.mxu0 0.0
        %1735 = vmatpush1.xpose.msra.mxu0 0.0
        %1736 = vmatprep.mubr.f32.mxu0 0.0
        %1737 = vmatmul.mubr.f32.gmra.mrb[0].mxu0 %v1668
        %v1738 = vpop.f32.mrb[0].mxu0
        %v1739 = vadd.f32 0.0, %v1738
        %v1740 = vpop.f32.mrb[0].mxu0
        %1741 = vdwg.mxu0
        %v1742 = vsel %vm1266, %v1661, -inf
        %1743 = vmax.xlane.f32.xlu0 %v1742
        %v1744 = vpop.xlane.xlu0 %1743
        %v1745 = vsel %vm1266, %v1739, -inf
        %1746 = vmax.xlane.f32.xlu0 %v1745
        %v1747 = vpop.xlane.xlu0 %1746
        %v1748 = vsub.f32 %v1661, %v1744
        %v1749 = vsub.f32 %v1739, %v1747
        %v1750 = vmul.f32 %v1748, 1.442695
        %v1751 = vpow.pop %v1750
        %v1752 = vmul.f32 %v1749, 1.442695
        %v1753 = vpow.pop %v1752
        %v1754 = vsel %vm1266, %v1751, 0.0
        %1755 = vadd.xlane.f32.xlu0 %v1754
        %v1756 = vpop.xlane.xlu0 %1755
        %v1757 = vsel %vm1266, %v1753, 0.0
        %1758 = vadd.xlane.f32.xlu0 %v1757
        %v1759 = vpop.xlane.xlu0 %1758
        %v1760 = vrcp.pop %v1756
        %v1761 = vrcp.pop %v1759
        %v1762 = vmul.f32 %v1751, %v1760
        %v1763 = vmul.f32 %v1753, %v1761
        %1765 = vrot.lane.b32.xlu0 %v1255, 120
        %v1766 = vpop.permute.xlu0 %1765
        %v1769 = vsel %vm1266, %v1762, 0
        %1771 = vmatprep.subr.mxu0 0.0
        %1772 = vmatpush1.msra.mxu0 %v1766
        %1773 = vmatprep.subr.mxu0 0.0
        %1774 = vmatpush1.msra.mxu0 0.0
        %1775 = vmatprep.subr.mxu0 0.0
        %1776 = vmatpush1.msra.mxu0 0.0
        %1777 = vmatprep.subr.mxu0 0.0
        %1778 = vmatpush1.msra.mxu0 0.0
        %1779 = vmatprep.subr.mxu0 0.0
        %1780 = vmatpush1.msra.mxu0 0.0
        %1781 = vmatprep.subr.mxu0 0.0
        %1782 = vmatpush1.msra.mxu0 0.0
        %1783 = vmatprep.subr.mxu0 0.0
        %1784 = vmatpush1.msra.mxu0 0.0
        %1785 = vmatprep.subr.mxu0 0.0
        %1786 = vmatpush1.msra.mxu0 0.0
        %1787 = vmatprep.subr.mxu0 0.0
        %1788 = vmatpush1.msra.mxu0 0.0
        %1789 = vmatprep.subr.mxu0 0.0
        %1790 = vmatpush1.msra.mxu0 0.0
        %1791 = vmatprep.subr.mxu0 0.0
        %1792 = vmatpush1.msra.mxu0 0.0
        %1793 = vmatprep.subr.mxu0 0.0
        %1794 = vmatpush1.msra.mxu0 0.0
        %1795 = vmatprep.subr.mxu0 0.0
        %1796 = vmatpush1.msra.mxu0 0.0
        %1797 = vmatprep.subr.mxu0 0.0
        %1798 = vmatpush1.msra.mxu0 0.0
        %1799 = vmatprep.subr.mxu0 0.0
        %1800 = vmatpush1.msra.mxu0 0.0
        %1801 = vmatprep.subr.mxu0 0.0
        %1802 = vmatpush1.msra.mxu0 0.0
        %1803 = vmatprep.subr.mxu0 0.0
        %1804 = vmatpush1.msra.mxu0 0.0
        %1805 = vmatprep.subr.mxu0 0.0
        %1806 = vmatpush1.msra.mxu0 0.0
        %1807 = vmatprep.subr.mxu0 0.0
        %1808 = vmatpush1.msra.mxu0 0.0
        %1809 = vmatprep.subr.mxu0 0.0
        %1810 = vmatpush1.msra.mxu0 0.0
        %1811 = vmatprep.subr.mxu0 0.0
        %1812 = vmatpush1.msra.mxu0 0.0
        %1813 = vmatprep.subr.mxu0 0.0
        %1814 = vmatpush1.msra.mxu0 0.0
        %1815 = vmatprep.subr.mxu0 0.0
        %1816 = vmatpush1.msra.mxu0 0.0
        %1817 = vmatprep.subr.mxu0 0.0
        %1818 = vmatpush1.msra.mxu0 0.0
        %1819 = vmatprep.subr.mxu0 0.0
        %1820 = vmatpush1.msra.mxu0 0.0
        %1821 = vmatprep.subr.mxu0 0.0
        %1822 = vmatpush1.msra.mxu0 0.0
        %1823 = vmatprep.subr.mxu0 0.0
        %1824 = vmatpush1.msra.mxu0 0.0
        %1825 = vmatprep.subr.mxu0 0.0
        %1826 = vmatpush1.msra.mxu0 0.0
        %1827 = vmatprep.subr.mxu0 0.0
        %1828 = vmatpush1.msra.mxu0 0.0
        %1829 = vmatprep.subr.mxu0 0.0
        %1830 = vmatpush1.msra.mxu0 0.0
        %1831 = vmatprep.subr.mxu0 0.0
        %1832 = vmatpush1.msra.mxu0 0.0
        %1833 = vmatprep.subr.mxu0 0.0
        %1834 = vmatpush1.msra.mxu0 0.0
        %1835 = vmatprep.mubr.f32.mxu0 0.0
        %1836 = vmatmul.mubr.f32.gmra.mrb[0].mxu0 %v1769
        %v1837 = vpop.f32.mrb[0].mxu0
        %v1838 = vadd.f32 0.0, %v1837
        %v1839 = vpop.f32.mrb[0].mxu0
        %1840 = vdwg.mxu0
        %1842 = vrot.lane.b32.xlu0 %v1260, 120
        %v1843 = vpop.permute.xlu0 %1842
        %v1846 = vsel %vm1266, %v1763, 0
        %1848 = vmatprep.subr.mxu0 0.0
        %1849 = vmatpush1.msra.mxu0 %v1843
        %1850 = vmatprep.subr.mxu0 0.0
        %1851 = vmatpush1.msra.mxu0 0.0
        %1852 = vmatprep.subr.mxu0 0.0
        %1853 = vmatpush1.msra.mxu0 0.0
        %1854 = vmatprep.subr.mxu0 0.0
        %1855 = vmatpush1.msra.mxu0 0.0
        %1856 = vmatprep.subr.mxu0 0.0
        %1857 = vmatpush1.msra.mxu0 0.0
        %1858 = vmatprep.subr.mxu0 0.0
        %1859 = vmatpush1.msra.mxu0 0.0
        %1860 = vmatprep.subr.mxu0 0.0
        %1861 = vmatpush1.msra.mxu0 0.0
        %1862 = vmatprep.subr.mxu0 0.0
        %1863 = vmatpush1.msra.mxu0 0.0
        %1864 = vmatprep.subr.mxu0 0.0
        %1865 = vmatpush1.msra.mxu0 0.0
        %1866 = vmatprep.subr.mxu0 0.0
        %1867 = vmatpush1.msra.mxu0 0.0
        %1868 = vmatprep.subr.mxu0 0.0
        %1869 = vmatpush1.msra.mxu0 0.0
        %1870 = vmatprep.subr.mxu0 0.0
        %1871 = vmatpush1.msra.mxu0 0.0
        %1872 = vmatprep.subr.mxu0 0.0
        %1873 = vmatpush1.msra.mxu0 0.0
        %1874 = vmatprep.subr.mxu0 0.0
        %1875 = vmatpush1.msra.mxu0 0.0
        %1876 = vmatprep.subr.mxu0 0.0
        %1877 = vmatpush1.msra.mxu0 0.0
        %1878 = vmatprep.subr.mxu0 0.0
        %1879 = vmatpush1.msra.mxu0 0.0
        %1880 = vmatprep.subr.mxu0 0.0
        %1881 = vmatpush1.msra.mxu0 0.0
        %1882 = vmatprep.subr.mxu0 0.0
        %1883 = vmatpush1.msra.mxu0 0.0
        %1884 = vmatprep.subr.mxu0 0.0
        %1885 = vmatpush1.msra.mxu0 0.0
        %1886 = vmatprep.subr.mxu0 0.0
        %1887 = vmatpush1.msra.mxu0 0.0
        %1888 = vmatprep.subr.mxu0 0.0
        %1889 = vmatpush1.msra.mxu0 0.0
        %1890 = vmatprep.subr.mxu0 0.0
        %1891 = vmatpush1.msra.mxu0 0.0
        %1892 = vmatprep.subr.mxu0 0.0
        %1893 = vmatpush1.msra.mxu0 0.0
        %1894 = vmatprep.subr.mxu0 0.0
        %1895 = vmatpush1.msra.mxu0 0.0
        %1896 = vmatprep.subr.mxu0 0.0
        %1897 = vmatpush1.msra.mxu0 0.0
        %1898 = vmatprep.subr.mxu0 0.0
        %1899 = vmatpush1.msra.mxu0 0.0
        %1900 = vmatprep.subr.mxu0 0.0
        %1901 = vmatpush1.msra.mxu0 0.0
        %1902 = vmatprep.subr.mxu0 0.0
        %1903 = vmatpush1.msra.mxu0 0.0
        %1904 = vmatprep.subr.mxu0 0.0
        %1905 = vmatpush1.msra.mxu0 0.0
        %1906 = vmatprep.subr.mxu0 0.0
        %1907 = vmatpush1.msra.mxu0 0.0
        %1908 = vmatprep.subr.mxu0 0.0
        %1909 = vmatpush1.msra.mxu0 0.0
        %1910 = vmatprep.subr.mxu0 0.0
        %1911 = vmatpush1.msra.mxu0 0.0
        %1912 = vmatprep.mubr.f32.mxu0 0.0
        %1913 = vmatmul.mubr.f32.gmra.mrb[0].mxu0 %v1846
        %v1914 = vpop.f32.mrb[0].mxu0
        %v1915 = vadd.f32 0.0, %v1914
        %v1916 = vpop.f32.mrb[0].mxu0
        %1917 = vdwg.mxu0
        %1918 = vrot.lane.b32.xlu0 %v1163, 112
        %v1919 = vpop.permute.xlu0 %1918
        %1920 = vrot.lane.b32.xlu0 %v1163, 80
        %v1921 = vpop.permute.xlu0 %1920
        %v1922 = vsel %vm1266, %v1919, 0
        %v1924 = vsel %vm1266, %v1921, 0
        %1926 = vmatprep.subr.mxu0 0.0
        %1927 = vmatpush1.xpose.msra.mxu0 %v1924
        %1928 = vmatprep.subr.mxu0 0.0
        %1929 = vmatpush1.xpose.msra.mxu0 0.0
        %1930 = vmatprep.subr.mxu0 0.0
        %1931 = vmatpush1.xpose.msra.mxu0 0.0
        %1932 = vmatprep.subr.mxu0 0.0
        %1933 = vmatpush1.xpose.msra.mxu0 0.0
        %1934 = vmatprep.subr.mxu0 0.0
        %1935 = vmatpush1.xpose.msra.mxu0 0.0
        %1936 = vmatprep.subr.mxu0 0.0
        %1937 = vmatpush1.xpose.msra.mxu0 0.0
        %1938 = vmatprep.subr.mxu0 0.0
        %1939 = vmatpush1.xpose.msra.mxu0 0.0
        %1940 = vmatprep.subr.mxu0 0.0
        %1941 = vmatpush1.xpose.msra.mxu0 0.0
        %1942 = vmatprep.subr.mxu0 0.0
        %1943 = vmatpush1.xpose.msra.mxu0 0.0
        %1944 = vmatprep.subr.mxu0 0.0
        %1945 = vmatpush1.xpose.msra.mxu0 0.0
        %1946 = vmatprep.subr.mxu0 0.0
        %1947 = vmatpush1.xpose.msra.mxu0 0.0
        %1948 = vmatprep.subr.mxu0 0.0
        %1949 = vmatpush1.xpose.msra.mxu0 0.0
        %1950 = vmatprep.subr.mxu0 0.0
        %1951 = vmatpush1.xpose.msra.mxu0 0.0
        %1952 = vmatprep.subr.mxu0 0.0
        %1953 = vmatpush1.xpose.msra.mxu0 0.0
        %1954 = vmatprep.subr.mxu0 0.0
        %1955 = vmatpush1.xpose.msra.mxu0 0.0
        %1956 = vmatprep.subr.mxu0 0.0
        %1957 = vmatpush1.xpose.msra.mxu0 0.0
        %1958 = vmatprep.subr.mxu0 0.0
        %1959 = vmatpush1.xpose.msra.mxu0 0.0
        %1960 = vmatprep.subr.mxu0 0.0
        %1961 = vmatpush1.xpose.msra.mxu0 0.0
        %1962 = vmatprep.subr.mxu0 0.0
        %1963 = vmatpush1.xpose.msra.mxu0 0.0
        %1964 = vmatprep.subr.mxu0 0.0
        %1965 = vmatpush1.xpose.msra.mxu0 0.0
        %1966 = vmatprep.subr.mxu0 0.0
        %1967 = vmatpush1.xpose.msra.mxu0 0.0
        %1968 = vmatprep.subr.mxu0 0.0
        %1969 = vmatpush1.xpose.msra.mxu0 0.0
        %1970 = vmatprep.subr.mxu0 0.0
        %1971 = vmatpush1.xpose.msra.mxu0 0.0
        %1972 = vmatprep.subr.mxu0 0.0
        %1973 = vmatpush1.xpose.msra.mxu0 0.0
        %1974 = vmatprep.subr.mxu0 0.0
        %1975 = vmatpush1.xpose.msra.mxu0 0.0
        %1976 = vmatprep.subr.mxu0 0.0
        %1977 = vmatpush1.xpose.msra.mxu0 0.0
        %1978 = vmatprep.subr.mxu0 0.0
        %1979 = vmatpush1.xpose.msra.mxu0 0.0
        %1980 = vmatprep.subr.mxu0 0.0
        %1981 = vmatpush1.xpose.msra.mxu0 0.0
        %1982 = vmatprep.subr.mxu0 0.0
        %1983 = vmatpush1.xpose.msra.mxu0 0.0
        %1984 = vmatprep.subr.mxu0 0.0
        %1985 = vmatpush1.xpose.msra.mxu0 0.0
        %1986 = vmatprep.subr.mxu0 0.0
        %1987 = vmatpush1.xpose.msra.mxu0 0.0
        %1988 = vmatprep.subr.mxu0 0.0
        %1989 = vmatpush1.xpose.msra.mxu0 0.0
        %1990 = vmatprep.mubr.f32.mxu0 0.0
        %1991 = vmatmul.mubr.f32.gmra.mrb[0].mxu0 %v1922
        %v1992 = vpop.f32.mrb[0].mxu0
        %v1993 = vadd.f32 0.0, %v1992
        %v1994 = vpop.f32.mrb[0].mxu0
        %1995 = vdwg.mxu0
        %1996 = vrot.lane.b32.xlu0 %v1168, 112
        %v1997 = vpop.permute.xlu0 %1996
        %1998 = vrot.lane.b32.xlu0 %v1168, 80
        %v1999 = vpop.permute.xlu0 %1998
        %v2000 = vsel %vm1266, %v1997, 0
        %v2002 = vsel %vm1266, %v1999, 0
        %2004 = vmatprep.subr.mxu0 0.0
        %2005 = vmatpush1.xpose.msra.mxu0 %v2002
        %2006 = vmatprep.subr.mxu0 0.0
        %2007 = vmatpush1.xpose.msra.mxu0 0.0
        %2008 = vmatprep.subr.mxu0 0.0
        %2009 = vmatpush1.xpose.msra.mxu0 0.0
        %2010 = vmatprep.subr.mxu0 0.0
        %2011 = vmatpush1.xpose.msra.mxu0 0.0
        %2012 = vmatprep.subr.mxu0 0.0
        %2013 = vmatpush1.xpose.msra.mxu0 0.0
        %2014 = vmatprep.subr.mxu0 0.0
        %2015 = vmatpush1.xpose.msra.mxu0 0.0
        %2016 = vmatprep.subr.mxu0 0.0
        %2017 = vmatpush1.xpose.msra.mxu0 0.0
        %2018 = vmatprep.subr.mxu0 0.0
        %2019 = vmatpush1.xpose.msra.mxu0 0.0
        %2020 = vmatprep.subr.mxu0 0.0
        %2021 = vmatpush1.xpose.msra.mxu0 0.0
        %2022 = vmatprep.subr.mxu0 0.0
        %2023 = vmatpush1.xpose.msra.mxu0 0.0
        %2024 = vmatprep.subr.mxu0 0.0
        %2025 = vmatpush1.xpose.msra.mxu0 0.0
        %2026 = vmatprep.subr.mxu0 0.0
        %2027 = vmatpush1.xpose.msra.mxu0 0.0
        %2028 = vmatprep.subr.mxu0 0.0
        %2029 = vmatpush1.xpose.msra.mxu0 0.0
        %2030 = vmatprep.subr.mxu0 0.0
        %2031 = vmatpush1.xpose.msra.mxu0 0.0
        %2032 = vmatprep.subr.mxu0 0.0
        %2033 = vmatpush1.xpose.msra.mxu0 0.0
        %2034 = vmatprep.subr.mxu0 0.0
        %2035 = vmatpush1.xpose.msra.mxu0 0.0
        %2036 = vmatprep.subr.mxu0 0.0
        %2037 = vmatpush1.xpose.msra.mxu0 0.0
        %2038 = vmatprep.subr.mxu0 0.0
        %2039 = vmatpush1.xpose.msra.mxu0 0.0
        %2040 = vmatprep.subr.mxu0 0.0
        %2041 = vmatpush1.xpose.msra.mxu0 0.0
        %2042 = vmatprep.subr.mxu0 0.0
        %2043 = vmatpush1.xpose.msra.mxu0 0.0
        %2044 = vmatprep.subr.mxu0 0.0
        %2045 = vmatpush1.xpose.msra.mxu0 0.0
        %2046 = vmatprep.subr.mxu0 0.0
        %2047 = vmatpush1.xpose.msra.mxu0 0.0
        %2048 = vmatprep.subr.mxu0 0.0
        %2049 = vmatpush1.xpose.msra.mxu0 0.0
        %2050 = vmatprep.subr.mxu0 0.0
        %2051 = vmatpush1.xpose.msra.mxu0 0.0
        %2052 = vmatprep.subr.mxu0 0.0
        %2053 = vmatpush1.xpose.msra.mxu0 0.0
        %2054 = vmatprep.subr.mxu0 0.0
        %2055 = vmatpush1.xpose.msra.mxu0 0.0
        %2056 = vmatprep.subr.mxu0 0.0
        %2057 = vmatpush1.xpose.msra.mxu0 0.0
        %2058 = vmatprep.subr.mxu0 0.0
        %2059 = vmatpush1.xpose.msra.mxu0 0.0
        %2060 = vmatprep.subr.mxu0 0.0
        %2061 = vmatpush1.xpose.msra.mxu0 0.0
        %2062 = vmatprep.subr.mxu0 0.0
        %2063 = vmatpush1.xpose.msra.mxu0 0.0
        %2064 = vmatprep.subr.mxu0 0.0
        %2065 = vmatpush1.xpose.msra.mxu0 0.0
        %2066 = vmatprep.subr.mxu0 0.0
        %2067 = vmatpush1.xpose.msra.mxu0 0.0
        %2068 = vmatprep.mubr.f32.mxu0 0.0
        %2069 = vmatmul.mubr.f32.gmra.mrb[0].mxu0 %v2000
        %v2070 = vpop.f32.mrb[0].mxu0
        %v2071 = vadd.f32 0.0, %v2070
        %v2072 = vpop.f32.mrb[0].mxu0
        %2073 = vdwg.mxu0
        %v2074 = vsel %vm1266, %v1993, -inf
        %2075 = vmax.xlane.f32.xlu0 %v2074
        %v2076 = vpop.xlane.xlu0 %2075
        %v2077 = vsel %vm1266, %v2071, -inf
        %2078 = vmax.xlane.f32.xlu0 %v2077
        %v2079 = vpop.xlane.xlu0 %2078
        %v2080 = vsub.f32 %v1993, %v2076
        %v2081 = vsub.f32 %v2071, %v2079
        %v2082 = vmul.f32 %v2080, 1.442695
        %v2083 = vpow.pop %v2082
        %v2084 = vmul.f32 %v2081, 1.442695
        %v2085 = vpow.pop %v2084
        %v2086 = vsel %vm1266, %v2083, 0.0
        %2087 = vadd.xlane.f32.xlu0 %v2086
        %v2088 = vpop.xlane.xlu0 %2087
        %v2089 = vsel %vm1266, %v2085, 0.0
        %2090 = vadd.xlane.f32.xlu0 %v2089
        %v2091 = vpop.xlane.xlu0 %2090
        %v2092 = vrcp.pop %v2088
        %v2093 = vrcp.pop %v2091
        %v2094 = vmul.f32 %v2083, %v2092
        %v2095 = vmul.f32 %v2085, %v2093
        %2096 = vrot.lane.b32.xlu0 %v1255, 112
        %v2097 = vpop.permute.xlu0 %2096
        %v2100 = vsel %vm1266, %v2094, 0
        %2102 = vmatprep.subr.mxu0 0.0
        %2103 = vmatpush1.msra.mxu0 %v2097
        %2104 = vmatprep.subr.mxu0 0.0
        %2105 = vmatpush1.msra.mxu0 0.0
        %2106 = vmatprep.subr.mxu0 0.0
        %2107 = vmatpush1.msra.mxu0 0.0
        %2108 = vmatprep.subr.mxu0 0.0
        %2109 = vmatpush1.msra.mxu0 0.0
        %2110 = vmatprep.subr.mxu0 0.0
        %2111 = vmatpush1.msra.mxu0 0.0
        %2112 = vmatprep.subr.mxu0 0.0
        %2113 = vmatpush1.msra.mxu0 0.0
        %2114 = vmatprep.subr.mxu0 0.0
        %2115 = vmatpush1.msra.mxu0 0.0
        %2116 = vmatprep.subr.mxu0 0.0
        %2117 = vmatpush1.msra.mxu0 0.0
        %2118 = vmatprep.subr.mxu0 0.0
        %2119 = vmatpush1.msra.mxu0 0.0
        %2120 = vmatprep.subr.mxu0 0.0
        %2121 = vmatpush1.msra.mxu0 0.0
        %2122 = vmatprep.subr.mxu0 0.0
        %2123 = vmatpush1.msra.mxu0 0.0
        %2124 = vmatprep.subr.mxu0 0.0
        %2125 = vmatpush1.msra.mxu0 0.0
        %2126 = vmatprep.subr.mxu0 0.0
        %2127 = vmatpush1.msra.mxu0 0.0
        %2128 = vmatprep.subr.mxu0 0.0
        %2129 = vmatpush1.msra.mxu0 0.0
        %2130 = vmatprep.subr.mxu0 0.0
        %2131 = vmatpush1.msra.mxu0 0.0
        %2132 = vmatprep.subr.mxu0 0.0
        %2133 = vmatpush1.msra.mxu0 0.0
        %2134 = vmatprep.subr.mxu0 0.0
        %2135 = vmatpush1.msra.mxu0 0.0
        %2136 = vmatprep.subr.mxu0 0.0
        %2137 = vmatpush1.msra.mxu0 0.0
        %2138 = vmatprep.subr.mxu0 0.0
        %2139 = vmatpush1.msra.mxu0 0.0
        %2140 = vmatprep.subr.mxu0 0.0
        %2141 = vmatpush1.msra.mxu0 0.0
        %2142 = vmatprep.subr.mxu0 0.0
        %2143 = vmatpush1.msra.mxu0 0.0
        %2144 = vmatprep.subr.mxu0 0.0
        %2145 = vmatpush1.msra.mxu0 0.0
        %2146 = vmatprep.subr.mxu0 0.0
        %2147 = vmatpush1.msra.mxu0 0.0
        %2148 = vmatprep.subr.mxu0 0.0
        %2149 = vmatpush1.msra.mxu0 0.0
        %2150 = vmatprep.subr.mxu0 0.0
        %2151 = vmatpush1.msra.mxu0 0.0
        %2152 = vmatprep.subr.mxu0 0.0
        %2153 = vmatpush1.msra.mxu0 0.0
        %2154 = vmatprep.subr.mxu0 0.0
        %2155 = vmatpush1.msra.mxu0 0.0
        %2156 = vmatprep.subr.mxu0 0.0
        %2157 = vmatpush1.msra.mxu0 0.0
        %2158 = vmatprep.subr.mxu0 0.0
        %2159 = vmatpush1.msra.mxu0 0.0
        %2160 = vmatprep.subr.mxu0 0.0
        %2161 = vmatpush1.msra.mxu0 0.0
        %2162 = vmatprep.subr.mxu0 0.0
        %2163 = vmatpush1.msra.mxu0 0.0
        %2164 = vmatprep.subr.mxu0 0.0
        %2165 = vmatpush1.msra.mxu0 0.0
        %2166 = vmatprep.mubr.f32.mxu0 0.0
        %2167 = vmatmul.mubr.f32.gmra.mrb[0].mxu0 %v2100
        %v2168 = vpop.f32.mrb[0].mxu0
        %v2169 = vadd.f32 0.0, %v2168
        %v2170 = vpop.f32.mrb[0].mxu0
        %2171 = vdwg.mxu0
        %2172 = vrot.lane.b32.xlu0 %v1260, 112
        %v2173 = vpop.permute.xlu0 %2172
        %v2176 = vsel %vm1266, %v2095, 0
        %2178 = vmatprep.subr.mxu0 0.0
        %2179 = vmatpush1.msra.mxu0 %v2173
        %2180 = vmatprep.subr.mxu0 0.0
        %2181 = vmatpush1.msra.mxu0 0.0
        %2182 = vmatprep.subr.mxu0 0.0
        %2183 = vmatpush1.msra.mxu0 0.0
        %2184 = vmatprep.subr.mxu0 0.0
        %2185 = vmatpush1.msra.mxu0 0.0
        %2186 = vmatprep.subr.mxu0 0.0
        %2187 = vmatpush1.msra.mxu0 0.0
        %2188 = vmatprep.subr.mxu0 0.0
        %2189 = vmatpush1.msra.mxu0 0.0
        %2190 = vmatprep.subr.mxu0 0.0
        %2191 = vmatpush1.msra.mxu0 0.0
        %2192 = vmatprep.subr.mxu0 0.0
        %2193 = vmatpush1.msra.mxu0 0.0
        %2194 = vmatprep.subr.mxu0 0.0
        %2195 = vmatpush1.msra.mxu0 0.0
        %2196 = vmatprep.subr.mxu0 0.0
        %2197 = vmatpush1.msra.mxu0 0.0
        %2198 = vmatprep.subr.mxu0 0.0
        %2199 = vmatpush1.msra.mxu0 0.0
        %2200 = vmatprep.subr.mxu0 0.0
        %2201 = vmatpush1.msra.mxu0 0.0
        %2202 = vmatprep.subr.mxu0 0.0
        %2203 = vmatpush1.msra.mxu0 0.0
        %2204 = vmatprep.subr.mxu0 0.0
        %2205 = vmatpush1.msra.mxu0 0.0
        %2206 = vmatprep.subr.mxu0 0.0
        %2207 = vmatpush1.msra.mxu0 0.0
        %2208 = vmatprep.subr.mxu0 0.0
        %2209 = vmatpush1.msra.mxu0 0.0
        %2210 = vmatprep.subr.mxu0 0.0
        %2211 = vmatpush1.msra.mxu0 0.0
        %2212 = vmatprep.subr.mxu0 0.0
        %2213 = vmatpush1.msra.mxu0 0.0
        %2214 = vmatprep.subr.mxu0 0.0
        %2215 = vmatpush1.msra.mxu0 0.0
        %2216 = vmatprep.subr.mxu0 0.0
        %2217 = vmatpush1.msra.mxu0 0.0
        %2218 = vmatprep.subr.mxu0 0.0
        %2219 = vmatpush1.msra.mxu0 0.0
        %2220 = vmatprep.subr.mxu0 0.0
        %2221 = vmatpush1.msra.mxu0 0.0
        %2222 = vmatprep.subr.mxu0 0.0
        %2223 = vmatpush1.msra.mxu0 0.0
        %2224 = vmatprep.subr.mxu0 0.0
        %2225 = vmatpush1.msra.mxu0 0.0
        %2226 = vmatprep.subr.mxu0 0.0
        %2227 = vmatpush1.msra.mxu0 0.0
        %2228 = vmatprep.subr.mxu0 0.0
        %2229 = vmatpush1.msra.mxu0 0.0
        %2230 = vmatprep.subr.mxu0 0.0
        %2231 = vmatpush1.msra.mxu0 0.0
        %2232 = vmatprep.subr.mxu0 0.0
        %2233 = vmatpush1.msra.mxu0 0.0
        %2234 = vmatprep.subr.mxu0 0.0
        %2235 = vmatpush1.msra.mxu0 0.0
        %2236 = vmatprep.subr.mxu0 0.0
        %2237 = vmatpush1.msra.mxu0 0.0
        %2238 = vmatprep.subr.mxu0 0.0
        %2239 = vmatpush1.msra.mxu0 0.0
        %2240 = vmatprep.subr.mxu0 0.0
        %2241 = vmatpush1.msra.mxu0 0.0
        %2242 = vmatprep.mubr.f32.mxu0 0.0
        %2243 = vmatmul.mubr.f32.gmra.mrb[0].mxu0 %v2176
        %v2244 = vpop.f32.mrb[0].mxu0
        %v2245 = vadd.f32 0.0, %v2244
        %v2246 = vpop.f32.mrb[0].mxu0
        %2247 = vdwg.mxu0
        %2248 = vrot.lane.b32.xlu0 %v1163, 104
        %v2249 = vpop.permute.xlu0 %2248
        %2250 = vrot.lane.b32.xlu0 %v1163, 72
        %v2251 = vpop.permute.xlu0 %2250
        %v2252 = vsel %vm1266, %v2249, 0
        %v2254 = vsel %vm1266, %v2251, 0
        %2256 = vmatprep.subr.mxu0 0.0
        %2257 = vmatpush1.xpose.msra.mxu0 %v2254
        %2258 = vmatprep.subr.mxu0 0.0
        %2259 = vmatpush1.xpose.msra.mxu0 0.0
        %2260 = vmatprep.subr.mxu0 0.0
        %2261 = vmatpush1.xpose.msra.mxu0 0.0
        %2262 = vmatprep.subr.mxu0 0.0
        %2263 = vmatpush1.xpose.msra.mxu0 0.0
        %2264 = vmatprep.subr.mxu0 0.0
        %2265 = vmatpush1.xpose.msra.mxu0 0.0
        %2266 = vmatprep.subr.mxu0 0.0
        %2267 = vmatpush1.xpose.msra.mxu0 0.0
        %2268 = vmatprep.subr.mxu0 0.0
        %2269 = vmatpush1.xpose.msra.mxu0 0.0
        %2270 = vmatprep.subr.mxu0 0.0
        %2271 = vmatpush1.xpose.msra.mxu0 0.0
        %2272 = vmatprep.subr.mxu0 0.0
        %2273 = vmatpush1.xpose.msra.mxu0 0.0
        %2274 = vmatprep.subr.mxu0 0.0
        %2275 = vmatpush1.xpose.msra.mxu0 0.0
        %2276 = vmatprep.subr.mxu0 0.0
        %2277 = vmatpush1.xpose.msra.mxu0 0.0
        %2278 = vmatprep.subr.mxu0 0.0
        %2279 = vmatpush1.xpose.msra.mxu0 0.0
        %2280 = vmatprep.subr.mxu0 0.0
        %2281 = vmatpush1.xpose.msra.mxu0 0.0
        %2282 = vmatprep.subr.mxu0 0.0
        %2283 = vmatpush1.xpose.msra.mxu0 0.0
        %2284 = vmatprep.subr.mxu0 0.0
        %2285 = vmatpush1.xpose.msra.mxu0 0.0
        %2286 = vmatprep.subr.mxu0 0.0
        %2287 = vmatpush1.xpose.msra.mxu0 0.0
        %2288 = vmatprep.subr.mxu0 0.0
        %2289 = vmatpush1.xpose.msra.mxu0 0.0
        %2290 = vmatprep.subr.mxu0 0.0
        %2291 = vmatpush1.xpose.msra.mxu0 0.0
        %2292 = vmatprep.subr.mxu0 0.0
        %2293 = vmatpush1.xpose.msra.mxu0 0.0
        %2294 = vmatprep.subr.mxu0 0.0
        %2295 = vmatpush1.xpose.msra.mxu0 0.0
        %2296 = vmatprep.subr.mxu0 0.0
        %2297 = vmatpush1.xpose.msra.mxu0 0.0
        %2298 = vmatprep.subr.mxu0 0.0
        %2299 = vmatpush1.xpose.msra.mxu0 0.0
        %2300 = vmatprep.subr.mxu0 0.0
        %2301 = vmatpush1.xpose.msra.mxu0 0.0
        %2302 = vmatprep.subr.mxu0 0.0
        %2303 = vmatpush1.xpose.msra.mxu0 0.0
        %2304 = vmatprep.subr.mxu0 0.0
        %2305 = vmatpush1.xpose.msra.mxu0 0.0
        %2306 = vmatprep.subr.mxu0 0.0
        %2307 = vmatpush1.xpose.msra.mxu0 0.0
        %2308 = vmatprep.subr.mxu0 0.0
        %2309 = vmatpush1.xpose.msra.mxu0 0.0
        %2310 = vmatprep.subr.mxu0 0.0
        %2311 = vmatpush1.xpose.msra.mxu0 0.0
        %2312 = vmatprep.subr.mxu0 0.0
        %2313 = vmatpush1.xpose.msra.mxu0 0.0
        %2314 = vmatprep.subr.mxu0 0.0
        %2315 = vmatpush1.xpose.msra.mxu0 0.0
        %2316 = vmatprep.subr.mxu0 0.0
        %2317 = vmatpush1.xpose.msra.mxu0 0.0
        %2318 = vmatprep.subr.mxu0 0.0
        %2319 = vmatpush1.xpose.msra.mxu0 0.0
        %2320 = vmatprep.mubr.f32.mxu0 0.0
        %2321 = vmatmul.mubr.f32.gmra.mrb[0].mxu0 %v2252
        %v2322 = vpop.f32.mrb[0].mxu0
        %v2323 = vadd.f32 0.0, %v2322
        %v2324 = vpop.f32.mrb[0].mxu0
        %2325 = vdwg.mxu0
        %2326 = vrot.lane.b32.xlu0 %v1168, 104
        %v2327 = vpop.permute.xlu0 %2326
        %2328 = vrot.lane.b32.xlu0 %v1168, 72
        %v2329 = vpop.permute.xlu0 %2328
        %v2330 = vsel %vm1266, %v2327, 0
        %v2332 = vsel %vm1266, %v2329, 0
        %2334 = vmatprep.subr.mxu0 0.0
        %2335 = vmatpush1.xpose.msra.mxu0 %v2332
        %2336 = vmatprep.subr.mxu0 0.0
        %2337 = vmatpush1.xpose.msra.mxu0 0.0
        %2338 = vmatprep.subr.mxu0 0.0
        %2339 = vmatpush1.xpose.msra.mxu0 0.0
        %2340 = vmatprep.subr.mxu0 0.0
        %2341 = vmatpush1.xpose.msra.mxu0 0.0
        %2342 = vmatprep.subr.mxu0 0.0
        %2343 = vmatpush1.xpose.msra.mxu0 0.0
        %2344 = vmatprep.subr.mxu0 0.0
        %2345 = vmatpush1.xpose.msra.mxu0 0.0
        %2346 = vmatprep.subr.mxu0 0.0
        %2347 = vmatpush1.xpose.msra.mxu0 0.0
        %2348 = vmatprep.subr.mxu0 0.0
        %2349 = vmatpush1.xpose.msra.mxu0 0.0
        %2350 = vmatprep.subr.mxu0 0.0
        %2351 = vmatpush1.xpose.msra.mxu0 0.0
        %2352 = vmatprep.subr.mxu0 0.0
        %2353 = vmatpush1.xpose.msra.mxu0 0.0
        %2354 = vmatprep.subr.mxu0 0.0
        %2355 = vmatpush1.xpose.msra.mxu0 0.0
        %2356 = vmatprep.subr.mxu0 0.0
        %2357 = vmatpush1.xpose.msra.mxu0 0.0
        %2358 = vmatprep.subr.mxu0 0.0
        %2359 = vmatpush1.xpose.msra.mxu0 0.0
        %2360 = vmatprep.subr.mxu0 0.0
        %2361 = vmatpush1.xpose.msra.mxu0 0.0
        %2362 = vmatprep.subr.mxu0 0.0
        %2363 = vmatpush1.xpose.msra.mxu0 0.0
        %2364 = vmatprep.subr.mxu0 0.0
        %2365 = vmatpush1.xpose.msra.mxu0 0.0
        %2366 = vmatprep.subr.mxu0 0.0
        %2367 = vmatpush1.xpose.msra.mxu0 0.0
        %2368 = vmatprep.subr.mxu0 0.0
        %2369 = vmatpush1.xpose.msra.mxu0 0.0
        %2370 = vmatprep.subr.mxu0 0.0
        %2371 = vmatpush1.xpose.msra.mxu0 0.0
        %2372 = vmatprep.subr.mxu0 0.0
        %2373 = vmatpush1.xpose.msra.mxu0 0.0
        %2374 = vmatprep.subr.mxu0 0.0
        %2375 = vmatpush1.xpose.msra.mxu0 0.0
        %2376 = vmatprep.subr.mxu0 0.0
        %2377 = vmatpush1.xpose.msra.mxu0 0.0
        %2378 = vmatprep.subr.mxu0 0.0
        %2379 = vmatpush1.xpose.msra.mxu0 0.0
        %2380 = vmatprep.subr.mxu0 0.0
        %2381 = vmatpush1.xpose.msra.mxu0 0.0
        %2382 = vmatprep.subr.mxu0 0.0
        %2383 = vmatpush1.xpose.msra.mxu0 0.0
        %2384 = vmatprep.subr.mxu0 0.0
        %2385 = vmatpush1.xpose.msra.mxu0 0.0
        %2386 = vmatprep.subr.mxu0 0.0
        %2387 = vmatpush1.xpose.msra.mxu0 0.0
        %2388 = vmatprep.subr.mxu0 0.0
        %2389 = vmatpush1.xpose.msra.mxu0 0.0
        %2390 = vmatprep.subr.mxu0 0.0
        %2391 = vmatpush1.xpose.msra.mxu0 0.0
        %2392 = vmatprep.subr.mxu0 0.0
        %2393 = vmatpush1.xpose.msra.mxu0 0.0
        %2394 = vmatprep.subr.mxu0 0.0
        %2395 = vmatpush1.xpose.msra.mxu0 0.0
        %2396 = vmatprep.subr.mxu0 0.0
        %2397 = vmatpush1.xpose.msra.mxu0 0.0
        %2398 = vmatprep.mubr.f32.mxu0 0.0
        %2399 = vmatmul.mubr.f32.gmra.mrb[0].mxu0 %v2330
        %v2400 = vpop.f32.mrb[0].mxu0
        %v2401 = vadd.f32 0.0, %v2400
        %v2402 = vpop.f32.mrb[0].mxu0
        %2403 = vdwg.mxu0
        %v2404 = vsel %vm1266, %v2323, -inf
        %2405 = vmax.xlane.f32.xlu0 %v2404
        %v2406 = vpop.xlane.xlu0 %2405
        %v2407 = vsel %vm1266, %v2401, -inf
        %2408 = vmax.xlane.f32.xlu0 %v2407
        %v2409 = vpop.xlane.xlu0 %2408
        %v2410 = vsub.f32 %v2323, %v2406
        %v2411 = vsub.f32 %v2401, %v2409
        %v2412 = vmul.f32 %v2410, 1.442695
        %v2413 = vpow.pop %v2412
        %v2414 = vmul.f32 %v2411, 1.442695
        %v2415 = vpow.pop %v2414
        %v2416 = vsel %vm1266, %v2413, 0.0
        %2417 = vadd.xlane.f32.xlu0 %v2416
        %v2418 = vpop.xlane.xlu0 %2417
        %v2419 = vsel %vm1266, %v2415, 0.0
        %2420 = vadd.xlane.f32.xlu0 %v2419
        %v2421 = vpop.xlane.xlu0 %2420
        %v2422 = vrcp.pop %v2418
        %v2423 = vrcp.pop %v2421
        %v2424 = vmul.f32 %v2413, %v2422
        %v2425 = vmul.f32 %v2415, %v2423
        %2426 = vrot.lane.b32.xlu0 %v1255, 104
        %v2427 = vpop.permute.xlu0 %2426
        %v2430 = vsel %vm1266, %v2424, 0
        %2432 = vmatprep.subr.mxu0 0.0
        %2433 = vmatpush1.msra.mxu0 %v2427
        %2434 = vmatprep.subr.mxu0 0.0
        %2435 = vmatpush1.msra.mxu0 0.0
        %2436 = vmatprep.subr.mxu0 0.0
        %2437 = vmatpush1.msra.mxu0 0.0
        %2438 = vmatprep.subr.mxu0 0.0
        %2439 = vmatpush1.msra.mxu0 0.0
        %2440 = vmatprep.subr.mxu0 0.0
        %2441 = vmatpush1.msra.mxu0 0.0
        %2442 = vmatprep.subr.mxu0 0.0
        %2443 = vmatpush1.msra.mxu0 0.0
        %2444 = vmatprep.subr.mxu0 0.0
        %2445 = vmatpush1.msra.mxu0 0.0
        %2446 = vmatprep.subr.mxu0 0.0
        %2447 = vmatpush1.msra.mxu0 0.0
        %2448 = vmatprep.subr.mxu0 0.0
        %2449 = vmatpush1.msra.mxu0 0.0
        %2450 = vmatprep.subr.mxu0 0.0
        %2451 = vmatpush1.msra.mxu0 0.0
        %2452 = vmatprep.subr.mxu0 0.0
        %2453 = vmatpush1.msra.mxu0 0.0
        %2454 = vmatprep.subr.mxu0 0.0
        %2455 = vmatpush1.msra.mxu0 0.0
        %2456 = vmatprep.subr.mxu0 0.0
        %2457 = vmatpush1.msra.mxu0 0.0
        %2458 = vmatprep.subr.mxu0 0.0
        %2459 = vmatpush1.msra.mxu0 0.0
        %2460 = vmatprep.subr.mxu0 0.0
        %2461 = vmatpush1.msra.mxu0 0.0
        %2462 = vmatprep.subr.mxu0 0.0
        %2463 = vmatpush1.msra.mxu0 0.0
        %2464 = vmatprep.subr.mxu0 0.0
        %2465 = vmatpush1.msra.mxu0 0.0
        %2466 = vmatprep.subr.mxu0 0.0
        %2467 = vmatpush1.msra.mxu0 0.0
        %2468 = vmatprep.subr.mxu0 0.0
        %2469 = vmatpush1.msra.mxu0 0.0
        %2470 = vmatprep.subr.mxu0 0.0
        %2471 = vmatpush1.msra.mxu0 0.0
        %2472 = vmatprep.subr.mxu0 0.0
        %2473 = vmatpush1.msra.mxu0 0.0
        %2474 = vmatprep.subr.mxu0 0.0
        %2475 = vmatpush1.msra.mxu0 0.0
        %2476 = vmatprep.subr.mxu0 0.0
        %2477 = vmatpush1.msra.mxu0 0.0
        %2478 = vmatprep.subr.mxu0 0.0
        %2479 = vmatpush1.msra.mxu0 0.0
        %2480 = vmatprep.subr.mxu0 0.0
        %2481 = vmatpush1.msra.mxu0 0.0
        %2482 = vmatprep.subr.mxu0 0.0
        %2483 = vmatpush1.msra.mxu0 0.0
        %2484 = vmatprep.subr.mxu0 0.0
        %2485 = vmatpush1.msra.mxu0 0.0
        %2486 = vmatprep.subr.mxu0 0.0
        %2487 = vmatpush1.msra.mxu0 0.0
        %2488 = vmatprep.subr.mxu0 0.0
        %2489 = vmatpush1.msra.mxu0 0.0
        %2490 = vmatprep.subr.mxu0 0.0
        %2491 = vmatpush1.msra.mxu0 0.0
        %2492 = vmatprep.subr.mxu0 0.0
        %2493 = vmatpush1.msra.mxu0 0.0
        %2494 = vmatprep.subr.mxu0 0.0
        %2495 = vmatpush1.msra.mxu0 0.0
        %2496 = vmatprep.mubr.f32.mxu0 0.0
        %2497 = vmatmul.mubr.f32.gmra.mrb[0].mxu0 %v2430
        %v2498 = vpop.f32.mrb[0].mxu0
        %v2499 = vadd.f32 0.0, %v2498
        %v2500 = vpop.f32.mrb[0].mxu0
        %2501 = vdwg.mxu0
        %2502 = vrot.lane.b32.xlu0 %v1260, 104
        %v2503 = vpop.permute.xlu0 %2502
        %v2506 = vsel %vm1266, %v2425, 0
        %2508 = vmatprep.subr.mxu0 0.0
        %2509 = vmatpush1.msra.mxu0 %v2503
        %2510 = vmatprep.subr.mxu0 0.0
        %2511 = vmatpush1.msra.mxu0 0.0
        %2512 = vmatprep.subr.mxu0 0.0
        %2513 = vmatpush1.msra.mxu0 0.0
        %2514 = vmatprep.subr.mxu0 0.0
        %2515 = vmatpush1.msra.mxu0 0.0
        %2516 = vmatprep.subr.mxu0 0.0
        %2517 = vmatpush1.msra.mxu0 0.0
        %2518 = vmatprep.subr.mxu0 0.0
        %2519 = vmatpush1.msra.mxu0 0.0
        %2520 = vmatprep.subr.mxu0 0.0
        %2521 = vmatpush1.msra.mxu0 0.0
        %2522 = vmatprep.subr.mxu0 0.0
        %2523 = vmatpush1.msra.mxu0 0.0
        %2524 = vmatprep.subr.mxu0 0.0
        %2525 = vmatpush1.msra.mxu0 0.0
        %2526 = vmatprep.subr.mxu0 0.0
        %2527 = vmatpush1.msra.mxu0 0.0
        %2528 = vmatprep.subr.mxu0 0.0
        %2529 = vmatpush1.msra.mxu0 0.0
        %2530 = vmatprep.subr.mxu0 0.0
        %2531 = vmatpush1.msra.mxu0 0.0
        %2532 = vmatprep.subr.mxu0 0.0
        %2533 = vmatpush1.msra.mxu0 0.0
        %2534 = vmatprep.subr.mxu0 0.0
        %2535 = vmatpush1.msra.mxu0 0.0
        %2536 = vmatprep.subr.mxu0 0.0
        %2537 = vmatpush1.msra.mxu0 0.0
        %2538 = vmatprep.subr.mxu0 0.0
        %2539 = vmatpush1.msra.mxu0 0.0
        %2540 = vmatprep.subr.mxu0 0.0
        %2541 = vmatpush1.msra.mxu0 0.0
        %2542 = vmatprep.subr.mxu0 0.0
        %2543 = vmatpush1.msra.mxu0 0.0
        %2544 = vmatprep.subr.mxu0 0.0
        %2545 = vmatpush1.msra.mxu0 0.0
        %2546 = vmatprep.subr.mxu0 0.0
        %2547 = vmatpush1.msra.mxu0 0.0
        %2548 = vmatprep.subr.mxu0 0.0
        %2549 = vmatpush1.msra.mxu0 0.0
        %2550 = vmatprep.subr.mxu0 0.0
        %2551 = vmatpush1.msra.mxu0 0.0
        %2552 = vmatprep.subr.mxu0 0.0
        %2553 = vmatpush1.msra.mxu0 0.0
        %2554 = vmatprep.subr.mxu0 0.0
        %2555 = vmatpush1.msra.mxu0 0.0
        %2556 = vmatprep.subr.mxu0 0.0
        %2557 = vmatpush1.msra.mxu0 0.0
        %2558 = vmatprep.subr.mxu0 0.0
        %2559 = vmatpush1.msra.mxu0 0.0
        %2560 = vmatprep.subr.mxu0 0.0
        %2561 = vmatpush1.msra.mxu0 0.0
        %2562 = vmatprep.subr.mxu0 0.0
        %2563 = vmatpush1.msra.mxu0 0.0
        %2564 = vmatprep.subr.mxu0 0.0
        %2565 = vmatpush1.msra.mxu0 0.0
        %2566 = vmatprep.subr.mxu0 0.0
        %2567 = vmatpush1.msra.mxu0 0.0
        %2568 = vmatprep.subr.mxu0 0.0
        %2569 = vmatpush1.msra.mxu0 0.0
        %2570 = vmatprep.subr.mxu0 0.0
        %2571 = vmatpush1.msra.mxu0 0.0
        %2572 = vmatprep.mubr.f32.mxu0 0.0
        %2573 = vmatmul.mubr.f32.gmra.mrb[0].mxu0 %v2506
        %v2574 = vpop.f32.mrb[0].mxu0
        %v2575 = vadd.f32 0.0, %v2574
        %v2576 = vpop.f32.mrb[0].mxu0
        %2577 = vdwg.mxu0
        %2580 = vrot.lane.b32.xlu0 %v1838, 8
        %v2581 = vpop.permute.xlu0 %2580
        %2582 = vrot.lane.b32.xlu0 %v1915, 8
        %v2583 = vpop.permute.xlu0 %2582
        %2588 = vrot.lane.b32.xlu0 %v2169, 16
        %v2589 = vpop.permute.xlu0 %2588
        %2590 = vrot.lane.b32.xlu0 %v2245, 16
        %v2591 = vpop.permute.xlu0 %2590
        %2596 = vrot.lane.b32.xlu0 %v2499, 24
        %v2597 = vpop.permute.xlu0 %2596
        %2598 = vrot.lane.b32.xlu0 %v2575, 24
        %v2599 = vpop.permute.xlu0 %2598
        %v2602 = vsel %vm1266, %v1510, %v2581
        %v2603 = vsel %vm1266, %v1583, %v2583
        %vm2604 = vcmask 130048
        %v2605 = vsel %vm2604, %v2602, %v2589
        %v2606 = vsel %vm2604, %v2603, %v2591
        %vm2607 = vcmask 195584
        %v2608 = vsel %vm2607, %v2605, %v2597
        %v2609 = vsel %vm2607, %v2606, %v2599
        %v2610 = vld [vmem:[%s885] sm:$0xff]
        %v2611 = vld [vmem:[%s885 + $0x8] sm:$0xff]
        %v2612 = vld [vmem:[%s885 + $0x10] sm:$0xff]
        %v2613 = vld [vmem:[%s885 + $0x18] sm:$0xff]
        %v2614 = vld [vmem:[%s893] sm:$0x1]
        %v2616 = vlaneseq
        %v2617 = vshrl.u32 %v2616, 7
        %v2618 = vsub.s32 0, %v2617
        %v2619 = vrot.slane %v2614, %v2618
        %v2622 = vsel %vm1089, %v2608, 0
        %v2625 = vsel %vm1089, %v2609, 0
        %2627 = vmatprep.subr.mxu0 0.0
        %2628 = vmatpush1.msra.mxu0 %v2610
        %2629 = vmatprep.subr.mxu0 0.0
        %2630 = vmatpush1.msra.mxu0 %v2611
        %2631 = vmatprep.subr.mxu0 0.0
        %2632 = vmatpush1.msra.mxu0 %v2612
        %2633 = vmatprep.subr.mxu0 0.0
        %2634 = vmatpush1.msra.mxu0 %v2613
        %2635 = vmatprep.subr.mxu0 0.0
        %2636 = vmatpush1.msra.mxu0 0.0
        %2637 = vmatprep.subr.mxu0 0.0
        %2638 = vmatpush1.msra.mxu0 0.0
        %2639 = vmatprep.subr.mxu0 0.0
        %2640 = vmatpush1.msra.mxu0 0.0
        %2641 = vmatprep.subr.mxu0 0.0
        %2642 = vmatpush1.msra.mxu0 0.0
        %2643 = vmatprep.subr.mxu0 0.0
        %2644 = vmatpush1.msra.mxu0 0.0
        %2645 = vmatprep.subr.mxu0 0.0
        %2646 = vmatpush1.msra.mxu0 0.0
        %2647 = vmatprep.subr.mxu0 0.0
        %2648 = vmatpush1.msra.mxu0 0.0
        %2649 = vmatprep.subr.mxu0 0.0
        %2650 = vmatpush1.msra.mxu0 0.0
        %2651 = vmatprep.subr.mxu0 0.0
        %2652 = vmatpush1.msra.mxu0 0.0
        %2653 = vmatprep.subr.mxu0 0.0
        %2654 = vmatpush1.msra.mxu0 0.0
        %2655 = vmatprep.subr.mxu0 0.0
        %2656 = vmatpush1.msra.mxu0 0.0
        %2657 = vmatprep.subr.mxu0 0.0
        %2658 = vmatpush1.msra.mxu0 0.0
        %2659 = vmatprep.subr.mxu0 0.0
        %2660 = vmatpush1.msra.mxu0 0.0
        %2661 = vmatprep.subr.mxu0 0.0
        %2662 = vmatpush1.msra.mxu0 0.0
        %2663 = vmatprep.subr.mxu0 0.0
        %2664 = vmatpush1.msra.mxu0 0.0
        %2665 = vmatprep.subr.mxu0 0.0
        %2666 = vmatpush1.msra.mxu0 0.0
        %2667 = vmatprep.subr.mxu0 0.0
        %2668 = vmatpush1.msra.mxu0 0.0
        %2669 = vmatprep.subr.mxu0 0.0
        %2670 = vmatpush1.msra.mxu0 0.0
        %2671 = vmatprep.subr.mxu0 0.0
        %2672 = vmatpush1.msra.mxu0 0.0
        %2673 = vmatprep.subr.mxu0 0.0
        %2674 = vmatpush1.msra.mxu0 0.0
        %2675 = vmatprep.subr.mxu0 0.0
        %2676 = vmatpush1.msra.mxu0 0.0
        %2677 = vmatprep.subr.mxu0 0.0
        %2678 = vmatpush1.msra.mxu0 0.0
        %2679 = vmatprep.subr.mxu0 0.0
        %2680 = vmatpush1.msra.mxu0 0.0
        %2681 = vmatprep.subr.mxu0 0.0
        %2682 = vmatpush1.msra.mxu0 0.0
        %2683 = vmatprep.subr.mxu0 0.0
        %2684 = vmatpush1.msra.mxu0 0.0
        %2685 = vmatprep.subr.mxu0 0.0
        %2686 = vmatpush1.msra.mxu0 0.0
        %2687 = vmatprep.subr.mxu0 0.0
        %2688 = vmatpush1.msra.mxu0 0.0
        %2689 = vmatprep.subr.mxu0 0.0
        %2690 = vmatpush1.msra.mxu0 0.0
        %2691 = vmatprep.mubr.f32.mxu0 0.0
        %2692 = vmatmul.mubr.f32.gmra.mrb[0].mxu0 %v2622
        %v2693 = vpop.f32.mrb[0].mxu0
        %v2694 = vadd.f32 %v2619, %v2693
        %v2695 = vpop.f32.mrb[0].mxu0
        %2696 = vmatprep.mubr.f32.mxu0 0.0
        %2697 = vmatmul.mubr.f32.gmra.mrb[0].mxu0 %v2625
        %v2698 = vpop.f32.mrb[0].mxu0
        %v2699 = vadd.f32 %v2619, %v2698
        %v2700 = vpop.f32.mrb[0].mxu0
        %2701 = vdwg.mxu0
        %v2702 = vadd.f32 %v1058, %v2694
        %v2703 = vadd.f32 %v1059, %v2699
        %v2704 = vsel %vm1089, %v2702, 0.0
        %2705 = vadd.xlane.f32.xlu0 %v2704
        %v2706 = vpop.xlane.xlu0 %2705
        %v2707 = vsel %vm1089, %v2703, 0.0
        %2708 = vadd.xlane.f32.xlu0 %v2707
        %v2709 = vpop.xlane.xlu0 %2708
        %v2710 = vrcp.pop 32.0
        %v2711 = vmul.f32 %v2706, %v2710
        %v2712 = vmul.f32 %v2709, %v2710
        %v2713 = vsub.f32 %v2702, %v2711
        %v2714 = vsub.f32 %v2703, %v2712
        %v2715 = vmul.f32 %v2713, %v2713
        %v2716 = vmul.f32 %v2714, %v2714
        %v2717 = vsel %vm1089, %v2715, 0.0
        %2718 = vadd.xlane.f32.xlu0 %v2717
        %v2719 = vpop.xlane.xlu0 %2718
        %v2720 = vsel %vm1089, %v2716, 0.0
        %2721 = vadd.xlane.f32.xlu0 %v2720
        %v2722 = vpop.xlane.xlu0 %2721
        %v2723 = vmul.f32 %v2719, %v2710
        %v2724 = vmul.f32 %v2722, %v2710
        %v2725 = vadd.f32 %v2723, 1e-05
        %v2726 = vadd.f32 %v2724, 1e-05
        %v2727 = vrsqrt.pop %v2725
        %v2728 = vrsqrt.pop %v2726
        %v2729 = vmul.f32 %v2713, %v2727
        %v2730 = vmul.f32 %v2714, %v2728
        %v2731 = vlaneseq
        %v2732 = vshrl.u32 %v2731, 7
        %v2733 = vsub.s32 0, %v2732
        %v2734 = vrot.slane %v1074, %v2733
        %v2735 = vmul.f32 %v2729, %v2734
        %v2736 = vmul.f32 %v2730, %v2734
        %v2737 = vlaneseq
        %v2738 = vshrl.u32 %v2737, 7
        %v2739 = vsub.s32 0, %v2738
        %v2740 = vrot.slane %v1075, %v2739
        %v2741 = vadd.f32 %v2735, %v2740
        %v2742 = vadd.f32 %v2736, %v2740
        %v2743 = vld [vmem:[%s902] sm:$0xf]
        %v2744 = vadd.f32 %v2741, %v1060
        %v2745 = vadd.f32 %v2742, %v1061
        %v2746 = vld [vmem:[%s1032] sm:$0xff]
        %v2747 = vld [vmem:[%s1032 + $0x8] sm:$0xff]
        %v2748 = vld [vmem:[%s1032 + $0x10] sm:$0xff]
        %v2749 = vld [vmem:[%s1032 + $0x18] sm:$0xff]
        %v2750 = vlaneseq
        %v2751 = vshrl.u32 %v2750, 7
        %v2752 = vsub.s32 0, %v2751
        %v2753 = vrot.slane %v2743, %v2752
        %v2755 = vsel %vm1089, %v2744, 0
        %v2758 = vsel %vm1089, %v2745, 0
        %2760 = vmatprep.subr.mxu0 0.0
        %2761 = vmatpush1.msra.mxu0 %v2746
        %2762 = vmatprep.subr.mxu0 0.0
        %2763 = vmatpush1.msra.mxu0 %v2747
        %2764 = vmatprep.subr.mxu0 0.0
        %2765 = vmatpush1.msra.mxu0 %v2748
        %2766 = vmatprep.subr.mxu0 0.0
        %2767 = vmatpush1.msra.mxu0 %v2749
        %2768 = vmatprep.subr.mxu0 0.0
        %2769 = vmatpush1.msra.mxu0 0.0
        %2770 = vmatprep.subr.mxu0 0.0
        %2771 = vmatpush1.msra.mxu0 0.0
        %2772 = vmatprep.subr.mxu0 0.0
        %2773 = vmatpush1.msra.mxu0 0.0
        %2774 = vmatprep.subr.mxu0 0.0
        %2775 = vmatpush1.msra.mxu0 0.0
        %2776 = vmatprep.subr.mxu0 0.0
        %2777 = vmatpush1.msra.mxu0 0.0
        %2778 = vmatprep.subr.mxu0 0.0
        %2779 = vmatpush1.msra.mxu0 0.0
        %2780 = vmatprep.subr.mxu0 0.0
        %2781 = vmatpush1.msra.mxu0 0.0
        %2782 = vmatprep.subr.mxu0 0.0
        %2783 = vmatpush1.msra.mxu0 0.0
        %2784 = vmatprep.subr.mxu0 0.0
        %2785 = vmatpush1.msra.mxu0 0.0
        %2786 = vmatprep.subr.mxu0 0.0
        %2787 = vmatpush1.msra.mxu0 0.0
        %2788 = vmatprep.subr.mxu0 0.0
        %2789 = vmatpush1.msra.mxu0 0.0
        %2790 = vmatprep.subr.mxu0 0.0
        %2791 = vmatpush1.msra.mxu0 0.0
        %2792 = vmatprep.subr.mxu0 0.0
        %2793 = vmatpush1.msra.mxu0 0.0
        %2794 = vmatprep.subr.mxu0 0.0
        %2795 = vmatpush1.msra.mxu0 0.0
        %2796 = vmatprep.subr.mxu0 0.0
        %2797 = vmatpush1.msra.mxu0 0.0
        %2798 = vmatprep.subr.mxu0 0.0
        %2799 = vmatpush1.msra.mxu0 0.0
        %2800 = vmatprep.subr.mxu0 0.0
        %2801 = vmatpush1.msra.mxu0 0.0
        %2802 = vmatprep.subr.mxu0 0.0
        %2803 = vmatpush1.msra.mxu0 0.0
        %2804 = vmatprep.subr.mxu0 0.0
        %2805 = vmatpush1.msra.mxu0 0.0
        %2806 = vmatprep.subr.mxu0 0.0
        %2807 = vmatpush1.msra.mxu0 0.0
        %2808 = vmatprep.subr.mxu0 0.0
        %2809 = vmatpush1.msra.mxu0 0.0
        %2810 = vmatprep.subr.mxu0 0.0
        %2811 = vmatpush1.msra.mxu0 0.0
        %2812 = vmatprep.subr.mxu0 0.0
        %2813 = vmatpush1.msra.mxu0 0.0
        %2814 = vmatprep.subr.mxu0 0.0
        %2815 = vmatpush1.msra.mxu0 0.0
        %2816 = vmatprep.subr.mxu0 0.0
        %2817 = vmatpush1.msra.mxu0 0.0
        %2818 = vmatprep.subr.mxu0 0.0
        %2819 = vmatpush1.msra.mxu0 0.0
        %2820 = vmatprep.subr.mxu0 0.0
        %2821 = vmatpush1.msra.mxu0 0.0
        %2822 = vmatprep.subr.mxu0 0.0
        %2823 = vmatpush1.msra.mxu0 0.0
        %2824 = vmatprep.mubr.f32.mxu0 0.0
        %2825 = vmatmul.mubr.f32.gmra.mrb[0].mxu0 %v2755
        %v2826 = vpop.f32.mrb[0].mxu0
        %v2827 = vadd.f32 %v2753, %v2826
        %v2828 = vpop.f32.mrb[0].mxu0
        %2829 = vmatprep.mubr.f32.mxu0 0.0
        %2830 = vmatmul.mubr.f32.gmra.mrb[0].mxu0 %v2758
        %v2831 = vpop.f32.mrb[0].mxu0
        %v2832 = vadd.f32 %v2753, %v2831
        %v2833 = vpop.f32.mrb[0].mxu0
        %2834 = vdwg.mxu0
        %s2835 = scalar_lea.vmem %s1032, 32
        %v2836 = vld [vmem:[%s2835] sm:$0xff]
        %v2837 = vld [vmem:[%s2835 + $0x8] sm:$0xff]
        %v2838 = vld [vmem:[%s2835 + $0x10] sm:$0xff]
        %v2839 = vld [vmem:[%s2835 + $0x18] sm:$0xff]
        %v2840 = vlaneseq
        %v2841 = vshrl.u32 %v2840, 7
        %v2842 = vsub.s32 1, %v2841
        %v2843 = vrot.slane %v2743, %v2842
        %v2845 = vsel %vm1089, %v1070, 0
        %v2848 = vsel %vm1089, %v1071, 0
        %v2851 = vsel %vm1089, %v1072, 0
        %v2854 = vsel %vm1089, %v1073, 0
        %2856 = vmatprep.subr.mxu0 0.0
        %2857 = vmatpush1.msra.mxu0 %v2836
        %2858 = vmatprep.subr.mxu0 0.0
        %2859 = vmatpush1.msra.mxu0 %v2837
        %2860 = vmatprep.subr.mxu0 0.0
        %2861 = vmatpush1.msra.mxu0 %v2838
        %2862 = vmatprep.subr.mxu0 0.0
        %2863 = vmatpush1.msra.mxu0 %v2839
        %2864 = vmatprep.subr.mxu0 0.0
        %2865 = vmatpush1.msra.mxu0 0.0
        %2866 = vmatprep.subr.mxu0 0.0
        %2867 = vmatpush1.msra.mxu0 0.0
        %2868 = vmatprep.subr.mxu0 0.0
        %2869 = vmatpush1.msra.mxu0 0.0
        %2870 = vmatprep.subr.mxu0 0.0
        %2871 = vmatpush1.msra.mxu0 0.0
        %2872 = vmatprep.subr.mxu0 0.0
        %2873 = vmatpush1.msra.mxu0 0.0
        %2874 = vmatprep.subr.mxu0 0.0
        %2875 = vmatpush1.msra.mxu0 0.0
        %2876 = vmatprep.subr.mxu0 0.0
        %2877 = vmatpush1.msra.mxu0 0.0
        %2878 = vmatprep.subr.mxu0 0.0
        %2879 = vmatpush1.msra.mxu0 0.0
        %2880 = vmatprep.subr.mxu0 0.0
        %2881 = vmatpush1.msra.mxu0 0.0
        %2882 = vmatprep.subr.mxu0 0.0
        %2883 = vmatpush1.msra.mxu0 0.0
        %2884 = vmatprep.subr.mxu0 0.0
        %2885 = vmatpush1.msra.mxu0 0.0
        %2886 = vmatprep.subr.mxu0 0.0
        %2887 = vmatpush1.msra.mxu0 0.0
        %2888 = vmatprep.subr.mxu0 0.0
        %2889 = vmatpush1.msra.mxu0 0.0
        %2890 = vmatprep.subr.mxu0 0.0
        %2891 = vmatpush1.msra.mxu0 0.0
        %2892 = vmatprep.subr.mxu0 0.0
        %2893 = vmatpush1.msra.mxu0 0.0
        %2894 = vmatprep.subr.mxu0 0.0
        %2895 = vmatpush1.msra.mxu0 0.0
        %2896 = vmatprep.subr.mxu0 0.0
        %2897 = vmatpush1.msra.mxu0 0.0
        %2898 = vmatprep.subr.mxu0 0.0
        %2899 = vmatpush1.msra.mxu0 0.0
        %2900 = vmatprep.subr.mxu0 0.0
        %2901 = vmatpush1.msra.mxu0 0.0
        %2902 = vmatprep.subr.mxu0 0.0
        %2903 = vmatpush1.msra.mxu0 0.0
        %2904 = vmatprep.subr.mxu0 0.0
        %2905 = vmatpush1.msra.mxu0 0.0
        %2906 = vmatprep.subr.mxu0 0.0
        %2907 = vmatpush1.msra.mxu0 0.0
        %2908 = vmatprep.subr.mxu0 0.0
        %2909 = vmatpush1.msra.mxu0 0.0
        %2910 = vmatprep.subr.mxu0 0.0
        %2911 = vmatpush1.msra.mxu0 0.0
        %2912 = vmatprep.subr.mxu0 0.0
        %2913 = vmatpush1.msra.mxu0 0.0
        %2914 = vmatprep.subr.mxu0 0.0
        %2915 = vmatpush1.msra.mxu0 0.0
        %2916 = vmatprep.subr.mxu0 0.0
        %2917 = vmatpush1.msra.mxu0 0.0
        %2918 = vmatprep.subr.mxu0 0.0
        %2919 = vmatpush1.msra.mxu0 0.0
        %2920 = vmatprep.mubr.f32.mxu0 0.0
        %2921 = vmatmul.mubr.f32.gmra.mrb[0].mxu0 %v2845
        %v2922 = vpop.f32.mrb[0].mxu0
        %v2923 = vadd.f32 %v2843, %v2922
        %v2924 = vpop.f32.mrb[0].mxu0
        %2925 = vmatprep.mubr.f32.mxu0 0.0
        %2926 = vmatmul.mubr.f32.gmra.mrb[0].mxu0 %v2848
        %v2927 = vpop.f32.mrb[0].mxu0
        %v2928 = vadd.f32 %v2843, %v2927
        %v2929 = vpop.f32.mrb[0].mxu0
        %2930 = vmatprep.mubr.f32.mxu0 0.0
        %2931 = vmatmul.mubr.f32.gmra.mrb[0].mxu0 %v2851
        %v2932 = vpop.f32.mrb[0].mxu0
        %v2933 = vadd.f32 %v2843, %v2932
        %v2934 = vpop.f32.mrb[0].mxu0
        %2935 = vmatprep.mubr.f32.mxu0 0.0
        %2936 = vmatmul.mubr.f32.gmra.mrb[0].mxu0 %v2854
        %v2937 = vpop.f32.mrb[0].mxu0
        %v2938 = vadd.f32 %v2843, %v2937
        %v2939 = vpop.f32.mrb[0].mxu0
        %2940 = vdwg.mxu0
        %s2941 = scalar_lea.vmem %s1032, 64
        %v2942 = vld [vmem:[%s2941] sm:$0xff]
        %v2943 = vld [vmem:[%s2941 + $0x8] sm:$0xff]
        %v2944 = vld [vmem:[%s2941 + $0x10] sm:$0xff]
        %v2945 = vld [vmem:[%s2941 + $0x18] sm:$0xff]
        %v2946 = vlaneseq
        %v2947 = vshrl.u32 %v2946, 7
        %v2948 = vsub.s32 2, %v2947
        %v2949 = vrot.slane %v2743, %v2948
        %v2951 = vsel %vm1089, %v1062, 0
        %v2954 = vsel %vm1089, %v1063, 0
        %v2957 = vsel %vm1089, %v1064, 0
        %v2960 = vsel %vm1089, %v1065, 0
        %2962 = vmatprep.subr.mxu0 0.0
        %2963 = vmatpush1.msra.mxu0 %v2942
        %2964 = vmatprep.subr.mxu0 0.0
        %2965 = vmatpush1.msra.mxu0 %v2943
        %2966 = vmatprep.subr.mxu0 0.0
        %2967 = vmatpush1.msra.mxu0 %v2944
        %2968 = vmatprep.subr.mxu0 0.0
        %2969 = vmatpush1.msra.mxu0 %v2945
        %2970 = vmatprep.subr.mxu0 0.0
        %2971 = vmatpush1.msra.mxu0 0.0
        %2972 = vmatprep.subr.mxu0 0.0
        %2973 = vmatpush1.msra.mxu0 0.0
        %2974 = vmatprep.subr.mxu0 0.0
        %2975 = vmatpush1.msra.mxu0 0.0
        %2976 = vmatprep.subr.mxu0 0.0
        %2977 = vmatpush1.msra.mxu0 0.0
        %2978 = vmatprep.subr.mxu0 0.0
        %2979 = vmatpush1.msra.mxu0 0.0
        %2980 = vmatprep.subr.mxu0 0.0
        %2981 = vmatpush1.msra.mxu0 0.0
        %2982 = vmatprep.subr.mxu0 0.0
        %2983 = vmatpush1.msra.mxu0 0.0
        %2984 = vmatprep.subr.mxu0 0.0
        %2985 = vmatpush1.msra.mxu0 0.0
        %2986 = vmatprep.subr.mxu0 0.0
        %2987 = vmatpush1.msra.mxu0 0.0
        %2988 = vmatprep.subr.mxu0 0.0
        %2989 = vmatpush1.msra.mxu0 0.0
        %2990 = vmatprep.subr.mxu0 0.0
        %2991 = vmatpush1.msra.mxu0 0.0
        %2992 = vmatprep.subr.mxu0 0.0
        %2993 = vmatpush1.msra.mxu0 0.0
        %2994 = vmatprep.subr.mxu0 0.0
        %2995 = vmatpush1.msra.mxu0 0.0
        %2996 = vmatprep.subr.mxu0 0.0
        %2997 = vmatpush1.msra.mxu0 0.0
        %2998 = vmatprep.subr.mxu0 0.0
        %2999 = vmatpush1.msra.mxu0 0.0
        %3000 = vmatprep.subr.mxu0 0.0
        %3001 = vmatpush1.msra.mxu0 0.0
        %3002 = vmatprep.subr.mxu0 0.0
        %3003 = vmatpush1.msra.mxu0 0.0
        %3004 = vmatprep.subr.mxu0 0.0
        %3005 = vmatpush1.msra.mxu0 0.0
        %3006 = vmatprep.subr.mxu0 0.0
        %3007 = vmatpush1.msra.mxu0 0.0
        %3008 = vmatprep.subr.mxu0 0.0
        %3009 = vmatpush1.msra.mxu0 0.0
        %3010 = vmatprep.subr.mxu0 0.0
        %3011 = vmatpush1.msra.mxu0 0.0
        %3012 = vmatprep.subr.mxu0 0.0
        %3013 = vmatpush1.msra.mxu0 0.0
        %3014 = vmatprep.subr.mxu0 0.0
        %3015 = vmatpush1.msra.mxu0 0.0
        %3016 = vmatprep.subr.mxu0 0.0
        %3017 = vmatpush1.msra.mxu0 0.0
        %3018 = vmatprep.subr.mxu0 0.0
        %3019 = vmatpush1.msra.mxu0 0.0
        %3020 = vmatprep.subr.mxu0 0.0
        %3021 = vmatpush1.msra.mxu0 0.0
        %3022 = vmatprep.subr.mxu0 0.0
        %3023 = vmatpush1.msra.mxu0 0.0
        %3024 = vmatprep.subr.mxu0 0.0
        %3025 = vmatpush1.msra.mxu0 0.0
        %3026 = vmatprep.mubr.f32.mxu0 0.0
        %3027 = vmatmul.mubr.f32.gmra.mrb[0].mxu0 %v2951
        %v3028 = vpop.f32.mrb[0].mxu0
        %v3029 = vadd.f32 %v2949, %v3028
        %v3030 = vpop.f32.mrb[0].mxu0
        %3031 = vmatprep.mubr.f32.mxu0 0.0
        %3032 = vmatmul.mubr.f32.gmra.mrb[0].mxu0 %v2954
        %v3033 = vpop.f32.mrb[0].mxu0
        %v3034 = vadd.f32 %v2949, %v3033
        %v3035 = vpop.f32.mrb[0].mxu0
        %3036 = vmatprep.mubr.f32.mxu0 0.0
        %3037 = vmatmul.mubr.f32.gmra.mrb[0].mxu0 %v2957
        %v3038 = vpop.f32.mrb[0].mxu0
        %v3039 = vadd.f32 %v2949, %v3038
        %v3040 = vpop.f32.mrb[0].mxu0
        %3041 = vmatprep.mubr.f32.mxu0 0.0
        %3042 = vmatmul.mubr.f32.gmra.mrb[0].mxu0 %v2960
        %v3043 = vpop.f32.mrb[0].mxu0
        %v3044 = vadd.f32 %v2949, %v3043
        %v3045 = vpop.f32.mrb[0].mxu0
        %3046 = vdwg.mxu0
        %v3048 = vsel %vm1266, %v2827, 0
        %v3051 = vsel %vm1266, %v2923, 0
        %v3054 = vsel %vm1266, %v2928, 0
        %3056 = vmatprep.subr.mxu0 0.0
        %3057 = vmatpush1.xpose.msra.mxu0 %v3051
        %3058 = vmatprep.subr.mxu0 0.0
        %3059 = vmatpush1.xpose.msra.mxu0 %v3054
        %3060 = vmatprep.subr.mxu0 0.0
        %3061 = vmatpush1.xpose.msra.mxu0 0.0
        %3062 = vmatprep.subr.mxu0 0.0
        %3063 = vmatpush1.xpose.msra.mxu0 0.0
        %3064 = vmatprep.subr.mxu0 0.0
        %3065 = vmatpush1.xpose.msra.mxu0 0.0
        %3066 = vmatprep.subr.mxu0 0.0
        %3067 = vmatpush1.xpose.msra.mxu0 0.0
        %3068 = vmatprep.subr.mxu0 0.0
        %3069 = vmatpush1.xpose.msra.mxu0 0.0
        %3070 = vmatprep.subr.mxu0 0.0
        %3071 = vmatpush1.xpose.msra.mxu0 0.0
        %3072 = vmatprep.subr.mxu0 0.0
        %3073 = vmatpush1.xpose.msra.mxu0 0.0
        %3074 = vmatprep.subr.mxu0 0.0
        %3075 = vmatpush1.xpose.msra.mxu0 0.0
        %3076 = vmatprep.subr.mxu0 0.0
        %3077 = vmatpush1.xpose.msra.mxu0 0.0
        %3078 = vmatprep.subr.mxu0 0.0
        %3079 = vmatpush1.xpose.msra.mxu0 0.0
        %3080 = vmatprep.subr.mxu0 0.0
        %3081 = vmatpush1.xpose.msra.mxu0 0.0
        %3082 = vmatprep.subr.mxu0 0.0
        %3083 = vmatpush1.xpose.msra.mxu0 0.0
        %3084 = vmatprep.subr.mxu0 0.0
        %3085 = vmatpush1.xpose.msra.mxu0 0.0
        %3086 = vmatprep.subr.mxu0 0.0
        %3087 = vmatpush1.xpose.msra.mxu0 0.0
        %3088 = vmatprep.subr.mxu0 0.0
        %3089 = vmatpush1.xpose.msra.mxu0 0.0
        %3090 = vmatprep.subr.mxu0 0.0
        %3091 = vmatpush1.xpose.msra.mxu0 0.0
        %3092 = vmatprep.subr.mxu0 0.0
        %3093 = vmatpush1.xpose.msra.mxu0 0.0
        %3094 = vmatprep.subr.mxu0 0.0
        %3095 = vmatpush1.xpose.msra.mxu0 0.0
        %3096 = vmatprep.subr.mxu0 0.0
        %3097 = vmatpush1.xpose.msra.mxu0 0.0
        %3098 = vmatprep.subr.mxu0 0.0
        %3099 = vmatpush1.xpose.msra.mxu0 0.0
        %3100 = vmatprep.subr.mxu0 0.0
        %3101 = vmatpush1.xpose.msra.mxu0 0.0
        %3102 = vmatprep.subr.mxu0 0.0
        %3103 = vmatpush1.xpose.msra.mxu0 0.0
        %3104 = vmatprep.subr.mxu0 0.0
        %3105 = vmatpush1.xpose.msra.mxu0 0.0
        %3106 = vmatprep.subr.mxu0 0.0
        %3107 = vmatpush1.xpose.msra.mxu0 0.0
        %3108 = vmatprep.subr.mxu0 0.0
        %3109 = vmatpush1.xpose.msra.mxu0 0.0
        %3110 = vmatprep.subr.mxu0 0.0
        %3111 = vmatpush1.xpose.msra.mxu0 0.0
        %3112 = vmatprep.subr.mxu0 0.0
        %3113 = vmatpush1.xpose.msra.mxu0 0.0
        %3114 = vmatprep.subr.mxu0 0.0
        %3115 = vmatpush1.xpose.msra.mxu0 0.0
        %3116 = vmatprep.subr.mxu0 0.0
        %3117 = vmatpush1.xpose.msra.mxu0 0.0
        %3118 = vmatprep.subr.mxu0 0.0
        %3119 = vmatpush1.xpose.msra.mxu0 0.0
        %3120 = vmatprep.mubr.f32.mxu0 0.0
        %3121 = vmatmul.mubr.f32.gmra.mrb[0].mxu0 %v3048
        %v3122 = vpop.f32.mrb[0].mxu0
        %v3123 = vadd.f32 0.0, %v3122
        %v3124 = vpop.f32.mrb[0].mxu0
        %3125 = vdwg.mxu0
        %v3127 = vsel %vm1266, %v2832, 0
        %v3130 = vsel %vm1266, %v2933, 0
        %v3133 = vsel %vm1266, %v2938, 0
        %3135 = vmatprep.subr.mxu0 0.0
        %3136 = vmatpush1.xpose.msra.mxu0 %v3130
        %3137 = vmatprep.subr.mxu0 0.0
        %3138 = vmatpush1.xpose.msra.mxu0 %v3133
        %3139 = vmatprep.subr.mxu0 0.0
        %3140 = vmatpush1.xpose.msra.mxu0 0.0
        %3141 = vmatprep.subr.mxu0 0.0
        %3142 = vmatpush1.xpose.msra.mxu0 0.0
        %3143 = vmatprep.subr.mxu0 0.0
        %3144 = vmatpush1.xpose.msra.mxu0 0.0
        %3145 = vmatprep.subr.mxu0 0.0
        %3146 = vmatpush1.xpose.msra.mxu0 0.0
        %3147 = vmatprep.subr.mxu0 0.0
        %3148 = vmatpush1.xpose.msra.mxu0 0.0
        %3149 = vmatprep.subr.mxu0 0.0
        %3150 = vmatpush1.xpose.msra.mxu0 0.0
        %3151 = vmatprep.subr.mxu0 0.0
        %3152 = vmatpush1.xpose.msra.mxu0 0.0
        %3153 = vmatprep.subr.mxu0 0.0
        %3154 = vmatpush1.xpose.msra.mxu0 0.0
        %3155 = vmatprep.subr.mxu0 0.0
        %3156 = vmatpush1.xpose.msra.mxu0 0.0
        %3157 = vmatprep.subr.mxu0 0.0
        %3158 = vmatpush1.xpose.msra.mxu0 0.0
        %3159 = vmatprep.subr.mxu0 0.0
        %3160 = vmatpush1.xpose.msra.mxu0 0.0
        %3161 = vmatprep.subr.mxu0 0.0
        %3162 = vmatpush1.xpose.msra.mxu0 0.0
        %3163 = vmatprep.subr.mxu0 0.0
        %3164 = vmatpush1.xpose.msra.mxu0 0.0
        %3165 = vmatprep.subr.mxu0 0.0
        %3166 = vmatpush1.xpose.msra.mxu0 0.0
        %3167 = vmatprep.subr.mxu0 0.0
        %3168 = vmatpush1.xpose.msra.mxu0 0.0
        %3169 = vmatprep.subr.mxu0 0.0
        %3170 = vmatpush1.xpose.msra.mxu0 0.0
        %3171 = vmatprep.subr.mxu0 0.0
        %3172 = vmatpush1.xpose.msra.mxu0 0.0
        %3173 = vmatprep.subr.mxu0 0.0
        %3174 = vmatpush1.xpose.msra.mxu0 0.0
        %3175 = vmatprep.subr.mxu0 0.0
        %3176 = vmatpush1.xpose.msra.mxu0 0.0
        %3177 = vmatprep.subr.mxu0 0.0
        %3178 = vmatpush1.xpose.msra.mxu0 0.0
        %3179 = vmatprep.subr.mxu0 0.0
        %3180 = vmatpush1.xpose.msra.mxu0 0.0
        %3181 = vmatprep.subr.mxu0 0.0
        %3182 = vmatpush1.xpose.msra.mxu0 0.0
        %3183 = vmatprep.subr.mxu0 0.0
        %3184 = vmatpush1.xpose.msra.mxu0 0.0
        %3185 = vmatprep.subr.mxu0 0.0
        %3186 = vmatpush1.xpose.msra.mxu0 0.0
        %3187 = vmatprep.subr.mxu0 0.0
        %3188 = vmatpush1.xpose.msra.mxu0 0.0
        %3189 = vmatprep.subr.mxu0 0.0
        %3190 = vmatpush1.xpose.msra.mxu0 0.0
        %3191 = vmatprep.subr.mxu0 0.0
        %3192 = vmatpush1.xpose.msra.mxu0 0.0
        %3193 = vmatprep.subr.mxu0 0.0
        %3194 = vmatpush1.xpose.msra.mxu0 0.0
        %3195 = vmatprep.subr.mxu0 0.0
        %3196 = vmatpush1.xpose.msra.mxu0 0.0
        %3197 = vmatprep.subr.mxu0 0.0
        %3198 = vmatpush1.xpose.msra.mxu0 0.0
        %3199 = vmatprep.mubr.f32.mxu0 0.0
        %3200 = vmatmul.mubr.f32.gmra.mrb[0].mxu0 %v3127
        %v3201 = vpop.f32.mrb[0].mxu0
        %v3202 = vadd.f32 0.0, %v3201
        %v3203 = vpop.f32.mrb[0].mxu0
        %3204 = vdwg.mxu0
        %v3205 = vsel %vm2604, %v3123, -inf
        %3206 = vmax.xlane.f32.xlu0 %v3205
        %v3207 = vpop.xlane.xlu0 %3206
        %v3208 = vsel %vm2604, %v3202, -inf
        %3209 = vmax.xlane.f32.xlu0 %v3208
        %v3210 = vpop.xlane.xlu0 %3209
        %v3211 = vsub.f32 %v3123, %v3207
        %v3212 = vsub.f32 %v3202, %v3210
        %v3213 = vmul.f32 %v3211, 1.442695
        %v3214 = vpow.pop %v3213
        %v3215 = vmul.f32 %v3212, 1.442695
        %v3216 = vpow.pop %v3215
        %v3217 = vsel %vm2604, %v3214, 0.0
        %3218 = vadd.xlane.f32.xlu0 %v3217
        %v3219 = vpop.xlane.xlu0 %3218
        %v3220 = vsel %vm2604, %v3216, 0.0
        %3221 = vadd.xlane.f32.xlu0 %v3220
        %v3222 = vpop.xlane.xlu0 %3221
        %v3223 = vrcp.pop %v3219
        %v3224 = vrcp.pop %v3222
        %v3225 = vmul.f32 %v3214, %v3223
        %v3226 = vmul.f32 %v3216, %v3224
        %v3228 = vsel %vm2604, %v3225, 0
        %3230 = vmatprep.subr.mxu0 0.0
        %3231 = vmatpush1.msra.mxu0 %v3029
        %3232 = vmatprep.subr.mxu0 0.0
        %3233 = vmatpush1.msra.mxu0 %v3034
        %3234 = vmatprep.subr.mxu0 0.0
        %3235 = vmatpush1.msra.mxu0 0.0
        %3236 = vmatprep.subr.mxu0 0.0
        %3237 = vmatpush1.msra.mxu0 0.0
        %3238 = vmatprep.subr.mxu0 0.0
        %3239 = vmatpush1.msra.mxu0 0.0
        %3240 = vmatprep.subr.mxu0 0.0
        %3241 = vmatpush1.msra.mxu0 0.0
        %3242 = vmatprep.subr.mxu0 0.0
        %3243 = vmatpush1.msra.mxu0 0.0
        %3244 = vmatprep.subr.mxu0 0.0
        %3245 = vmatpush1.msra.mxu0 0.0
        %3246 = vmatprep.subr.mxu0 0.0
        %3247 = vmatpush1.msra.mxu0 0.0
        %3248 = vmatprep.subr.mxu0 0.0
        %3249 = vmatpush1.msra.mxu0 0.0
        %3250 = vmatprep.subr.mxu0 0.0
        %3251 = vmatpush1.msra.mxu0 0.0
        %3252 = vmatprep.subr.mxu0 0.0
        %3253 = vmatpush1.msra.mxu0 0.0
        %3254 = vmatprep.subr.mxu0 0.0
        %3255 = vmatpush1.msra.mxu0 0.0
        %3256 = vmatprep.subr.mxu0 0.0
        %3257 = vmatpush1.msra.mxu0 0.0
        %3258 = vmatprep.subr.mxu0 0.0
        %3259 = vmatpush1.msra.mxu0 0.0
        %3260 = vmatprep.subr.mxu0 0.0
        %3261 = vmatpush1.msra.mxu0 0.0
        %3262 = vmatprep.subr.mxu0 0.0
        %3263 = vmatpush1.msra.mxu0 0.0
        %3264 = vmatprep.subr.mxu0 0.0
        %3265 = vmatpush1.msra.mxu0 0.0
        %3266 = vmatprep.subr.mxu0 0.0
        %3267 = vmatpush1.msra.mxu0 0.0
        %3268 = vmatprep.subr.mxu0 0.0
        %3269 = vmatpush1.msra.mxu0 0.0
        %3270 = vmatprep.subr.mxu0 0.0
        %3271 = vmatpush1.msra.mxu0 0.0
        %3272 = vmatprep.subr.mxu0 0.0
        %3273 = vmatpush1.msra.mxu0 0.0
        %3274 = vmatprep.subr.mxu0 0.0
        %3275 = vmatpush1.msra.mxu0 0.0
        %3276 = vmatprep.subr.mxu0 0.0
        %3277 = vmatpush1.msra.mxu0 0.0
        %3278 = vmatprep.subr.mxu0 0.0
        %3279 = vmatpush1.msra.mxu0 0.0
        %3280 = vmatprep.subr.mxu0 0.0
        %3281 = vmatpush1.msra.mxu0 0.0
        %3282 = vmatprep.subr.mxu0 0.0
        %3283 = vmatpush1.msra.mxu0 0.0
        %3284 = vmatprep.subr.mxu0 0.0
        %3285 = vmatpush1.msra.mxu0 0.0
        %3286 = vmatprep.subr.mxu0 0.0
        %3287 = vmatpush1.msra.mxu0 0.0
        %3288 = vmatprep.subr.mxu0 0.0
        %3289 = vmatpush1.msra.mxu0 0.0
        %3290 = vmatprep.subr.mxu0 0.0
        %3291 = vmatpush1.msra.mxu0 0.0
        %3292 = vmatprep.subr.mxu0 0.0
        %3293 = vmatpush1.msra.mxu0 0.0
        %3294 = vmatprep.mubr.f32.mxu0 0.0
        %3295 = vmatmul.mubr.f32.gmra.mrb[0].mxu0 %v3228
        %v3296 = vpop.f32.mrb[0].mxu0
        %v3297 = vadd.f32 0.0, %v3296
        %v3298 = vpop.f32.mrb[0].mxu0
        %3299 = vdwg.mxu0
        %v3301 = vsel %vm2604, %v3226, 0
        %3303 = vmatprep.subr.mxu0 0.0
        %3304 = vmatpush1.msra.mxu0 %v3039
        %3305 = vmatprep.subr.mxu0 0.0
        %3306 = vmatpush1.msra.mxu0 %v3044
        %3307 = vmatprep.subr.mxu0 0.0
        %3308 = vmatpush1.msra.mxu0 0.0
        %3309 = vmatprep.subr.mxu0 0.0
        %3310 = vmatpush1.msra.mxu0 0.0
        %3311 = vmatprep.subr.mxu0 0.0
        %3312 = vmatpush1.msra.mxu0 0.0
        %3313 = vmatprep.subr.mxu0 0.0
        %3314 = vmatpush1.msra.mxu0 0.0
        %3315 = vmatprep.subr.mxu0 0.0
        %3316 = vmatpush1.msra.mxu0 0.0
        %3317 = vmatprep.subr.mxu0 0.0
        %3318 = vmatpush1.msra.mxu0 0.0
        %3319 = vmatprep.subr.mxu0 0.0
        %3320 = vmatpush1.msra.mxu0 0.0
        %3321 = vmatprep.subr.mxu0 0.0
        %3322 = vmatpush1.msra.mxu0 0.0
        %3323 = vmatprep.subr.mxu0 0.0
        %3324 = vmatpush1.msra.mxu0 0.0
        %3325 = vmatprep.subr.mxu0 0.0
        %3326 = vmatpush1.msra.mxu0 0.0
        %3327 = vmatprep.subr.mxu0 0.0
        %3328 = vmatpush1.msra.mxu0 0.0
        %3329 = vmatprep.subr.mxu0 0.0
        %3330 = vmatpush1.msra.mxu0 0.0
        %3331 = vmatprep.subr.mxu0 0.0
        %3332 = vmatpush1.msra.mxu0 0.0
        %3333 = vmatprep.subr.mxu0 0.0
        %3334 = vmatpush1.msra.mxu0 0.0
        %3335 = vmatprep.subr.mxu0 0.0
        %3336 = vmatpush1.msra.mxu0 0.0
        %3337 = vmatprep.subr.mxu0 0.0
        %3338 = vmatpush1.msra.mxu0 0.0
        %3339 = vmatprep.subr.mxu0 0.0
        %3340 = vmatpush1.msra.mxu0 0.0
        %3341 = vmatprep.subr.mxu0 0.0
        %3342 = vmatpush1.msra.mxu0 0.0
        %3343 = vmatprep.subr.mxu0 0.0
        %3344 = vmatpush1.msra.mxu0 0.0
        %3345 = vmatprep.subr.mxu0 0.0
        %3346 = vmatpush1.msra.mxu0 0.0
        %3347 = vmatprep.subr.mxu0 0.0
        %3348 = vmatpush1.msra.mxu0 0.0
        %3349 = vmatprep.subr.mxu0 0.0
        %3350 = vmatpush1.msra.mxu0 0.0
        %3351 = vmatprep.subr.mxu0 0.0
        %3352 = vmatpush1.msra.mxu0 0.0
        %3353 = vmatprep.subr.mxu0 0.0
        %3354 = vmatpush1.msra.mxu0 0.0
        %3355 = vmatprep.subr.mxu0 0.0
        %3356 = vmatpush1.msra.mxu0 0.0
        %3357 = vmatprep.subr.mxu0 0.0
        %3358 = vmatpush1.msra.mxu0 0.0
        %3359 = vmatprep.subr.mxu0 0.0
        %3360 = vmatpush1.msra.mxu0 0.0
        %3361 = vmatprep.subr.mxu0 0.0
        %3362 = vmatpush1.msra.mxu0 0.0
        %3363 = vmatprep.subr.mxu0 0.0
        %3364 = vmatpush1.msra.mxu0 0.0
        %3365 = vmatprep.subr.mxu0 0.0
        %3366 = vmatpush1.msra.mxu0 0.0
        %3367 = vmatprep.mubr.f32.mxu0 0.0
        %3368 = vmatmul.mubr.f32.gmra.mrb[0].mxu0 %v3301
        %v3369 = vpop.f32.mrb[0].mxu0
        %v3370 = vadd.f32 0.0, %v3369
        %v3371 = vpop.f32.mrb[0].mxu0
        %3372 = vdwg.mxu0
        %3373 = vrot.lane.b32.xlu0 %v2827, 120
        %v3374 = vpop.permute.xlu0 %3373
        %3375 = vrot.lane.b32.xlu0 %v2923, 120
        %v3376 = vpop.permute.xlu0 %3375
        %3377 = vrot.lane.b32.xlu0 %v2928, 120
        %v3378 = vpop.permute.xlu0 %3377
        %v3379 = vsel %vm1266, %v3374, 0
        %v3381 = vsel %vm1266, %v3376, 0
        %v3383 = vsel %vm1266, %v3378, 0
        %3385 = vmatprep.subr.mxu0 0.0
        %3386 = vmatpush1.xpose.msra.mxu0 %v3381
        %3387 = vmatprep.subr.mxu0 0.0
        %3388 = vmatpush1.xpose.msra.mxu0 %v3383
        %3389 = vmatprep.subr.mxu0 0.0
        %3390 = vmatpush1.xpose.msra.mxu0 0.0
        %3391 = vmatprep.subr.mxu0 0.0
        %3392 = vmatpush1.xpose.msra.mxu0 0.0
        %3393 = vmatprep.subr.mxu0 0.0
        %3394 = vmatpush1.xpose.msra.mxu0 0.0
        %3395 = vmatprep.subr.mxu0 0.0
        %3396 = vmatpush1.xpose.msra.mxu0 0.0
        %3397 = vmatprep.subr.mxu0 0.0
        %3398 = vmatpush1.xpose.msra.mxu0 0.0
        %3399 = vmatprep.subr.mxu0 0.0
        %3400 = vmatpush1.xpose.msra.mxu0 0.0
        %3401 = vmatprep.subr.mxu0 0.0
        %3402 = vmatpush1.xpose.msra.mxu0 0.0
        %3403 = vmatprep.subr.mxu0 0.0
        %3404 = vmatpush1.xpose.msra.mxu0 0.0
        %3405 = vmatprep.subr.mxu0 0.0
        %3406 = vmatpush1.xpose.msra.mxu0 0.0
        %3407 = vmatprep.subr.mxu0 0.0
        %3408 = vmatpush1.xpose.msra.mxu0 0.0
        %3409 = vmatprep.subr.mxu0 0.0
        %3410 = vmatpush1.xpose.msra.mxu0 0.0
        %3411 = vmatprep.subr.mxu0 0.0
        %3412 = vmatpush1.xpose.msra.mxu0 0.0
        %3413 = vmatprep.subr.mxu0 0.0
        %3414 = vmatpush1.xpose.msra.mxu0 0.0
        %3415 = vmatprep.subr.mxu0 0.0
        %3416 = vmatpush1.xpose.msra.mxu0 0.0
        %3417 = vmatprep.subr.mxu0 0.0
        %3418 = vmatpush1.xpose.msra.mxu0 0.0
        %3419 = vmatprep.subr.mxu0 0.0
        %3420 = vmatpush1.xpose.msra.mxu0 0.0
        %3421 = vmatprep.subr.mxu0 0.0
        %3422 = vmatpush1.xpose.msra.mxu0 0.0
        %3423 = vmatprep.subr.mxu0 0.0
        %3424 = vmatpush1.xpose.msra.mxu0 0.0
        %3425 = vmatprep.subr.mxu0 0.0
        %3426 = vmatpush1.xpose.msra.mxu0 0.0
        %3427 = vmatprep.subr.mxu0 0.0
        %3428 = vmatpush1.xpose.msra.mxu0 0.0
        %3429 = vmatprep.subr.mxu0 0.0
        %3430 = vmatpush1.xpose.msra.mxu0 0.0
        %3431 = vmatprep.subr.mxu0 0.0
        %3432 = vmatpush1.xpose.msra.mxu0 0.0
        %3433 = vmatprep.subr.mxu0 0.0
        %3434 = vmatpush1.xpose.msra.mxu0 0.0
        %3435 = vmatprep.subr.mxu0 0.0
        %3436 = vmatpush1.xpose.msra.mxu0 0.0
        %3437 = vmatprep.subr.mxu0 0.0
        %3438 = vmatpush1.xpose.msra.mxu0 0.0
        %3439 = vmatprep.subr.mxu0 0.0
        %3440 = vmatpush1.xpose.msra.mxu0 0.0
        %3441 = vmatprep.subr.mxu0 0.0
        %3442 = vmatpush1.xpose.msra.mxu0 0.0
        %3443 = vmatprep.subr.mxu0 0.0
        %3444 = vmatpush1.xpose.msra.mxu0 0.0
        %3445 = vmatprep.subr.mxu0 0.0
        %3446 = vmatpush1.xpose.msra.mxu0 0.0
        %3447 = vmatprep.subr.mxu0 0.0
        %3448 = vmatpush1.xpose.msra.mxu0 0.0
        %3449 = vmatprep.mubr.f32.mxu0 0.0
        %3450 = vmatmul.mubr.f32.gmra.mrb[0].mxu0 %v3379
        %v3451 = vpop.f32.mrb[0].mxu0
        %v3452 = vadd.f32 0.0, %v3451
        %v3453 = vpop.f32.mrb[0].mxu0
        %3454 = vdwg.mxu0
        %3455 = vrot.lane.b32.xlu0 %v2832, 120
        %v3456 = vpop.permute.xlu0 %3455
        %3457 = vrot.lane.b32.xlu0 %v2933, 120
        %v3458 = vpop.permute.xlu0 %3457
        %3459 = vrot.lane.b32.xlu0 %v2938, 120
        %v3460 = vpop.permute.xlu0 %3459
        %v3461 = vsel %vm1266, %v3456, 0
        %v3463 = vsel %vm1266, %v3458, 0
        %v3465 = vsel %vm1266, %v3460, 0
        %3467 = vmatprep.subr.mxu0 0.0
        %3468 = vmatpush1.xpose.msra.mxu0 %v3463
        %3469 = vmatprep.subr.mxu0 0.0
        %3470 = vmatpush1.xpose.msra.mxu0 %v3465
        %3471 = vmatprep.subr.mxu0 0.0
        %3472 = vmatpush1.xpose.msra.mxu0 0.0
        %3473 = vmatprep.subr.mxu0 0.0
        %3474 = vmatpush1.xpose.msra.mxu0 0.0
        %3475 = vmatprep.subr.mxu0 0.0
        %3476 = vmatpush1.xpose.msra.mxu0 0.0
        %3477 = vmatprep.subr.mxu0 0.0
        %3478 = vmatpush1.xpose.msra.mxu0 0.0
        %3479 = vmatprep.subr.mxu0 0.0
        %3480 = vmatpush1.xpose.msra.mxu0 0.0
        %3481 = vmatprep.subr.mxu0 0.0
        %3482 = vmatpush1.xpose.msra.mxu0 0.0
        %3483 = vmatprep.subr.mxu0 0.0
        %3484 = vmatpush1.xpose.msra.mxu0 0.0
        %3485 = vmatprep.subr.mxu0 0.0
        %3486 = vmatpush1.xpose.msra.mxu0 0.0
        %3487 = vmatprep.subr.mxu0 0.0
        %3488 = vmatpush1.xpose.msra.mxu0 0.0
        %3489 = vmatprep.subr.mxu0 0.0
        %3490 = vmatpush1.xpose.msra.mxu0 0.0
        %3491 = vmatprep.subr.mxu0 0.0
        %3492 = vmatpush1.xpose.msra.mxu0 0.0
        %3493 = vmatprep.subr.mxu0 0.0
        %3494 = vmatpush1.xpose.msra.mxu0 0.0
        %3495 = vmatprep.subr.mxu0 0.0
        %3496 = vmatpush1.xpose.msra.mxu0 0.0
        %3497 = vmatprep.subr.mxu0 0.0
        %3498 = vmatpush1.xpose.msra.mxu0 0.0
        %3499 = vmatprep.subr.mxu0 0.0
        %3500 = vmatpush1.xpose.msra.mxu0 0.0
        %3501 = vmatprep.subr.mxu0 0.0
        %3502 = vmatpush1.xpose.msra.mxu0 0.0
        %3503 = vmatprep.subr.mxu0 0.0
        %3504 = vmatpush1.xpose.msra.mxu0 0.0
        %3505 = vmatprep.subr.mxu0 0.0
        %3506 = vmatpush1.xpose.msra.mxu0 0.0
        %3507 = vmatprep.subr.mxu0 0.0
        %3508 = vmatpush1.xpose.msra.mxu0 0.0
        %3509 = vmatprep.subr.mxu0 0.0
        %3510 = vmatpush1.xpose.msra.mxu0 0.0
        %3511 = vmatprep.subr.mxu0 0.0
        %3512 = vmatpush1.xpose.msra.mxu0 0.0
        %3513 = vmatprep.subr.mxu0 0.0
        %3514 = vmatpush1.xpose.msra.mxu0 0.0
        %3515 = vmatprep.subr.mxu0 0.0
        %3516 = vmatpush1.xpose.msra.mxu0 0.0
        %3517 = vmatprep.subr.mxu0 0.0
        %3518 = vmatpush1.xpose.msra.mxu0 0.0
        %3519 = vmatprep.subr.mxu0 0.0
        %3520 = vmatpush1.xpose.msra.mxu0 0.0
        %3521 = vmatprep.subr.mxu0 0.0
        %3522 = vmatpush1.xpose.msra.mxu0 0.0
        %3523 = vmatprep.subr.mxu0 0.0
        %3524 = vmatpush1.xpose.msra.mxu0 0.0
        %3525 = vmatprep.subr.mxu0 0.0
        %3526 = vmatpush1.xpose.msra.mxu0 0.0
        %3527 = vmatprep.subr.mxu0 0.0
        %3528 = vmatpush1.xpose.msra.mxu0 0.0
        %3529 = vmatprep.subr.mxu0 0.0
        %3530 = vmatpush1.xpose.msra.mxu0 0.0
        %3531 = vmatprep.mubr.f32.mxu0 0.0
        %3532 = vmatmul.mubr.f32.gmra.mrb[0].mxu0 %v3461
        %v3533 = vpop.f32.mrb[0].mxu0
        %v3534 = vadd.f32 0.0, %v3533
        %v3535 = vpop.f32.mrb[0].mxu0
        %3536 = vdwg.mxu0
        %v3537 = vsel %vm2604, %v3452, -inf
        %3538 = vmax.xlane.f32.xlu0 %v3537
        %v3539 = vpop.xlane.xlu0 %3538
        %v3540 = vsel %vm2604, %v3534, -inf
        %3541 = vmax.xlane.f32.xlu0 %v3540
        %v3542 = vpop.xlane.xlu0 %3541
        %v3543 = vsub.f32 %v3452, %v3539
        %v3544 = vsub.f32 %v3534, %v3542
        %v3545 = vmul.f32 %v3543, 1.442695
        %v3546 = vpow.pop %v3545
        %v3547 = vmul.f32 %v3544, 1.442695
        %v3548 = vpow.pop %v3547
        %v3549 = vsel %vm2604, %v3546, 0.0
        %3550 = vadd.xlane.f32.xlu0 %v3549
        %v3551 = vpop.xlane.xlu0 %3550
        %v3552 = vsel %vm2604, %v3548, 0.0
        %3553 = vadd.xlane.f32.xlu0 %v3552
        %v3554 = vpop.xlane.xlu0 %3553
        %v3555 = vrcp.pop %v3551
        %v3556 = vrcp.pop %v3554
        %v3557 = vmul.f32 %v3546, %v3555
        %v3558 = vmul.f32 %v3548, %v3556
        %3561 = vrot.lane.b32.xlu0 %v3029, 120
        %v3562 = vpop.permute.xlu0 %3561
        %3563 = vrot.lane.b32.xlu0 %v3034, 120
        %v3564 = vpop.permute.xlu0 %3563
        %v3568 = vsel %vm2604, %v3557, 0
        %3570 = vmatprep.subr.mxu0 0.0
        %3571 = vmatpush1.msra.mxu0 %v3562
        %3572 = vmatprep.subr.mxu0 0.0
        %3573 = vmatpush1.msra.mxu0 %v3564
        %3574 = vmatprep.subr.mxu0 0.0
        %3575 = vmatpush1.msra.mxu0 0.0
        %3576 = vmatprep.subr.mxu0 0.0
        %3577 = vmatpush1.msra.mxu0 0.0
        %3578 = vmatprep.subr.mxu0 0.0
        %3579 = vmatpush1.msra.mxu0 0.0
        %3580 = vmatprep.subr.mxu0 0.0
        %3581 = vmatpush1.msra.mxu0 0.0
        %3582 = vmatprep.subr.mxu0 0.0
        %3583 = vmatpush1.msra.mxu0 0.0
        %3584 = vmatprep.subr.mxu0 0.0
        %3585 = vmatpush1.msra.mxu0 0.0
        %3586 = vmatprep.subr.mxu0 0.0
        %3587 = vmatpush1.msra.mxu0 0.0
        %3588 = vmatprep.subr.mxu0 0.0
        %3589 = vmatpush1.msra.mxu0 0.0
        %3590 = vmatprep.subr.mxu0 0.0
        %3591 = vmatpush1.msra.mxu0 0.0
        %3592 = vmatprep.subr.mxu0 0.0
        %3593 = vmatpush1.msra.mxu0 0.0
        %3594 = vmatprep.subr.mxu0 0.0
        %3595 = vmatpush1.msra.mxu0 0.0
        %3596 = vmatprep.subr.mxu0 0.0
        %3597 = vmatpush1.msra.mxu0 0.0
        %3598 = vmatprep.subr.mxu0 0.0
        %3599 = vmatpush1.msra.mxu0 0.0
        %3600 = vmatprep.subr.mxu0 0.0
        %3601 = vmatpush1.msra.mxu0 0.0
        %3602 = vmatprep.subr.mxu0 0.0
        %3603 = vmatpush1.msra.mxu0 0.0
        %3604 = vmatprep.subr.mxu0 0.0
        %3605 = vmatpush1.msra.mxu0 0.0
        %3606 = vmatprep.subr.mxu0 0.0
        %3607 = vmatpush1.msra.mxu0 0.0
        %3608 = vmatprep.subr.mxu0 0.0
        %3609 = vmatpush1.msra.mxu0 0.0
        %3610 = vmatprep.subr.mxu0 0.0
        %3611 = vmatpush1.msra.mxu0 0.0
        %3612 = vmatprep.subr.mxu0 0.0
        %3613 = vmatpush1.msra.mxu0 0.0
        %3614 = vmatprep.subr.mxu0 0.0
        %3615 = vmatpush1.msra.mxu0 0.0
        %3616 = vmatprep.subr.mxu0 0.0
        %3617 = vmatpush1.msra.mxu0 0.0
        %3618 = vmatprep.subr.mxu0 0.0
        %3619 = vmatpush1.msra.mxu0 0.0
        %3620 = vmatprep.subr.mxu0 0.0
        %3621 = vmatpush1.msra.mxu0 0.0
        %3622 = vmatprep.subr.mxu0 0.0
        %3623 = vmatpush1.msra.mxu0 0.0
        %3624 = vmatprep.subr.mxu0 0.0
        %3625 = vmatpush1.msra.mxu0 0.0
        %3626 = vmatprep.subr.mxu0 0.0
        %3627 = vmatpush1.msra.mxu0 0.0
        %3628 = vmatprep.subr.mxu0 0.0
        %3629 = vmatpush1.msra.mxu0 0.0
        %3630 = vmatprep.subr.mxu0 0.0
        %3631 = vmatpush1.msra.mxu0 0.0
        %3632 = vmatprep.subr.mxu0 0.0
        %3633 = vmatpush1.msra.mxu0 0.0
        %3634 = vmatprep.mubr.f32.mxu0 0.0
        %3635 = vmatmul.mubr.f32.gmra.mrb[0].mxu0 %v3568
        %v3636 = vpop.f32.mrb[0].mxu0
        %v3637 = vadd.f32 0.0, %v3636
        %v3638 = vpop.f32.mrb[0].mxu0
        %3639 = vdwg.mxu0
        %3642 = vrot.lane.b32.xlu0 %v3039, 120
        %v3643 = vpop.permute.xlu0 %3642
        %3644 = vrot.lane.b32.xlu0 %v3044, 120
        %v3645 = vpop.permute.xlu0 %3644
        %v3649 = vsel %vm2604, %v3558, 0
        %3651 = vmatprep.subr.mxu0 0.0
        %3652 = vmatpush1.msra.mxu0 %v3643
        %3653 = vmatprep.subr.mxu0 0.0
        %3654 = vmatpush1.msra.mxu0 %v3645
        %3655 = vmatprep.subr.mxu0 0.0
        %3656 = vmatpush1.msra.mxu0 0.0
        %3657 = vmatprep.subr.mxu0 0.0
        %3658 = vmatpush1.msra.mxu0 0.0
        %3659 = vmatprep.subr.mxu0 0.0
        %3660 = vmatpush1.msra.mxu0 0.0
        %3661 = vmatprep.subr.mxu0 0.0
        %3662 = vmatpush1.msra.mxu0 0.0
        %3663 = vmatprep.subr.mxu0 0.0
        %3664 = vmatpush1.msra.mxu0 0.0
        %3665 = vmatprep.subr.mxu0 0.0
        %3666 = vmatpush1.msra.mxu0 0.0
        %3667 = vmatprep.subr.mxu0 0.0
        %3668 = vmatpush1.msra.mxu0 0.0
        %3669 = vmatprep.subr.mxu0 0.0
        %3670 = vmatpush1.msra.mxu0 0.0
        %3671 = vmatprep.subr.mxu0 0.0
        %3672 = vmatpush1.msra.mxu0 0.0
        %3673 = vmatprep.subr.mxu0 0.0
        %3674 = vmatpush1.msra.mxu0 0.0
        %3675 = vmatprep.subr.mxu0 0.0
        %3676 = vmatpush1.msra.mxu0 0.0
        %3677 = vmatprep.subr.mxu0 0.0
        %3678 = vmatpush1.msra.mxu0 0.0
        %3679 = vmatprep.subr.mxu0 0.0
        %3680 = vmatpush1.msra.mxu0 0.0
        %3681 = vmatprep.subr.mxu0 0.0
        %3682 = vmatpush1.msra.mxu0 0.0
        %3683 = vmatprep.subr.mxu0 0.0
        %3684 = vmatpush1.msra.mxu0 0.0
        %3685 = vmatprep.subr.mxu0 0.0
        %3686 = vmatpush1.msra.mxu0 0.0
        %3687 = vmatprep.subr.mxu0 0.0
        %3688 = vmatpush1.msra.mxu0 0.0
        %3689 = vmatprep.subr.mxu0 0.0
        %3690 = vmatpush1.msra.mxu0 0.0
        %3691 = vmatprep.subr.mxu0 0.0
        %3692 = vmatpush1.msra.mxu0 0.0
        %3693 = vmatprep.subr.mxu0 0.0
        %3694 = vmatpush1.msra.mxu0 0.0
        %3695 = vmatprep.subr.mxu0 0.0
        %3696 = vmatpush1.msra.mxu0 0.0
        %3697 = vmatprep.subr.mxu0 0.0
        %3698 = vmatpush1.msra.mxu0 0.0
        %3699 = vmatprep.subr.mxu0 0.0
        %3700 = vmatpush1.msra.mxu0 0.0
        %3701 = vmatprep.subr.mxu0 0.0
        %3702 = vmatpush1.msra.mxu0 0.0
        %3703 = vmatprep.subr.mxu0 0.0
        %3704 = vmatpush1.msra.mxu0 0.0
        %3705 = vmatprep.subr.mxu0 0.0
        %3706 = vmatpush1.msra.mxu0 0.0
        %3707 = vmatprep.subr.mxu0 0.0
        %3708 = vmatpush1.msra.mxu0 0.0
        %3709 = vmatprep.subr.mxu0 0.0
        %3710 = vmatpush1.msra.mxu0 0.0
        %3711 = vmatprep.subr.mxu0 0.0
        %3712 = vmatpush1.msra.mxu0 0.0
        %3713 = vmatprep.subr.mxu0 0.0
        %3714 = vmatpush1.msra.mxu0 0.0
        %3715 = vmatprep.mubr.f32.mxu0 0.0
        %3716 = vmatmul.mubr.f32.gmra.mrb[0].mxu0 %v3649
        %v3717 = vpop.f32.mrb[0].mxu0
        %v3718 = vadd.f32 0.0, %v3717
        %v3719 = vpop.f32.mrb[0].mxu0
        %3720 = vdwg.mxu0
        %3721 = vrot.lane.b32.xlu0 %v2827, 112
        %v3722 = vpop.permute.xlu0 %3721
        %3723 = vrot.lane.b32.xlu0 %v2923, 112
        %v3724 = vpop.permute.xlu0 %3723
        %3725 = vrot.lane.b32.xlu0 %v2928, 112
        %v3726 = vpop.permute.xlu0 %3725
        %v3727 = vsel %vm1266, %v3722, 0
        %v3729 = vsel %vm1266, %v3724, 0
        %v3731 = vsel %vm1266, %v3726, 0
        %3733 = vmatprep.subr.mxu0 0.0
        %3734 = vmatpush1.xpose.msra.mxu0 %v3729
        %3735 = vmatprep.subr.mxu0 0.0
        %3736 = vmatpush1.xpose.msra.mxu0 %v3731
        %3737 = vmatprep.subr.mxu0 0.0
        %3738 = vmatpush1.xpose.msra.mxu0 0.0
        %3739 = vmatprep.subr.mxu0 0.0
        %3740 = vmatpush1.xpose.msra.mxu0 0.0
        %3741 = vmatprep.subr.mxu0 0.0
        %3742 = vmatpush1.xpose.msra.mxu0 0.0
        %3743 = vmatprep.subr.mxu0 0.0
        %3744 = vmatpush1.xpose.msra.mxu0 0.0
        %3745 = vmatprep.subr.mxu0 0.0
        %3746 = vmatpush1.xpose.msra.mxu0 0.0
        %3747 = vmatprep.subr.mxu0 0.0
        %3748 = vmatpush1.xpose.msra.mxu0 0.0
        %3749 = vmatprep.subr.mxu0 0.0
        %3750 = vmatpush1.xpose.msra.mxu0 0.0
        %3751 = vmatprep.subr.mxu0 0.0
        %3752 = vmatpush1.xpose.msra.mxu0 0.0
        %3753 = vmatprep.subr.mxu0 0.0
        %3754 = vmatpush1.xpose.msra.mxu0 0.0
        %3755 = vmatprep.subr.mxu0 0.0
        %3756 = vmatpush1.xpose.msra.mxu0 0.0
        %3757 = vmatprep.subr.mxu0 0.0
        %3758 = vmatpush1.xpose.msra.mxu0 0.0
        %3759 = vmatprep.subr.mxu0 0.0
        %3760 = vmatpush1.xpose.msra.mxu0 0.0
        %3761 = vmatprep.subr.mxu0 0.0
        %3762 = vmatpush1.xpose.msra.mxu0 0.0
        %3763 = vmatprep.subr.mxu0 0.0
        %3764 = vmatpush1.xpose.msra.mxu0 0.0
        %3765 = vmatprep.subr.mxu0 0.0
        %3766 = vmatpush1.xpose.msra.mxu0 0.0
        %3767 = vmatprep.subr.mxu0 0.0
        %3768 = vmatpush1.xpose.msra.mxu0 0.0
        %3769 = vmatprep.subr.mxu0 0.0
        %3770 = vmatpush1.xpose.msra.mxu0 0.0
        %3771 = vmatprep.subr.mxu0 0.0
        %3772 = vmatpush1.xpose.msra.mxu0 0.0
        %3773 = vmatprep.subr.mxu0 0.0
        %3774 = vmatpush1.xpose.msra.mxu0 0.0
        %3775 = vmatprep.subr.mxu0 0.0
        %3776 = vmatpush1.xpose.msra.mxu0 0.0
        %3777 = vmatprep.subr.mxu0 0.0
        %3778 = vmatpush1.xpose.msra.mxu0 0.0
        %3779 = vmatprep.subr.mxu0 0.0
        %3780 = vmatpush1.xpose.msra.mxu0 0.0
        %3781 = vmatprep.subr.mxu0 0.0
        %3782 = vmatpush1.xpose.msra.mxu0 0.0
        %3783 = vmatprep.subr.mxu0 0.0
        %3784 = vmatpush1.xpose.msra.mxu0 0.0
        %3785 = vmatprep.subr.mxu0 0.0
        %3786 = vmatpush1.xpose.msra.mxu0 0.0
        %3787 = vmatprep.subr.mxu0 0.0
        %3788 = vmatpush1.xpose.msra.mxu0 0.0
        %3789 = vmatprep.subr.mxu0 0.0
        %3790 = vmatpush1.xpose.msra.mxu0 0.0
        %3791 = vmatprep.subr.mxu0 0.0
        %3792 = vmatpush1.xpose.msra.mxu0 0.0
        %3793 = vmatprep.subr.mxu0 0.0
        %3794 = vmatpush1.xpose.msra.mxu0 0.0
        %3795 = vmatprep.subr.mxu0 0.0
        %3796 = vmatpush1.xpose.msra.mxu0 0.0
        %3797 = vmatprep.mubr.f32.mxu0 0.0
        %3798 = vmatmul.mubr.f32.gmra.mrb[0].mxu0 %v3727
        %v3799 = vpop.f32.mrb[0].mxu0
        %v3800 = vadd.f32 0.0, %v3799
        %v3801 = vpop.f32.mrb[0].mxu0
        %3802 = vdwg.mxu0
        %3803 = vrot.lane.b32.xlu0 %v2832, 112
        %v3804 = vpop.permute.xlu0 %3803
        %3805 = vrot.lane.b32.xlu0 %v2933, 112
        %v3806 = vpop.permute.xlu0 %3805
        %3807 = vrot.lane.b32.xlu0 %v2938, 112
        %v3808 = vpop.permute.xlu0 %3807
        %v3809 = vsel %vm1266, %v3804, 0
        %v3811 = vsel %vm1266, %v3806, 0
        %v3813 = vsel %vm1266, %v3808, 0
        %3815 = vmatprep.subr.mxu0 0.0
        %3816 = vmatpush1.xpose.msra.mxu0 %v3811
        %3817 = vmatprep.subr.mxu0 0.0
        %3818 = vmatpush1.xpose.msra.mxu0 %v3813
        %3819 = vmatprep.subr.mxu0 0.0
        %3820 = vmatpush1.xpose.msra.mxu0 0.0
        %3821 = vmatprep.subr.mxu0 0.0
        %3822 = vmatpush1.xpose.msra.mxu0 0.0
        %3823 = vmatprep.subr.mxu0 0.0
        %3824 = vmatpush1.xpose.msra.mxu0 0.0
        %3825 = vmatprep.subr.mxu0 0.0
        %3826 = vmatpush1.xpose.msra.mxu0 0.0
        %3827 = vmatprep.subr.mxu0 0.0
        %3828 = vmatpush1.xpose.msra.mxu0 0.0
        %3829 = vmatprep.subr.mxu0 0.0
        %3830 = vmatpush1.xpose.msra.mxu0 0.0
        %3831 = vmatprep.subr.mxu0 0.0
        %3832 = vmatpush1.xpose.msra.mxu0 0.0
        %3833 = vmatprep.subr.mxu0 0.0
        %3834 = vmatpush1.xpose.msra.mxu0 0.0
        %3835 = vmatprep.subr.mxu0 0.0
        %3836 = vmatpush1.xpose.msra.mxu0 0.0
        %3837 = vmatprep.subr.mxu0 0.0
        %3838 = vmatpush1.xpose.msra.mxu0 0.0
        %3839 = vmatprep.subr.mxu0 0.0
        %3840 = vmatpush1.xpose.msra.mxu0 0.0
        %3841 = vmatprep.subr.mxu0 0.0
        %3842 = vmatpush1.xpose.msra.mxu0 0.0
        %3843 = vmatprep.subr.mxu0 0.0
        %3844 = vmatpush1.xpose.msra.mxu0 0.0
        %3845 = vmatprep.subr.mxu0 0.0
        %3846 = vmatpush1.xpose.msra.mxu0 0.0
        %3847 = vmatprep.subr.mxu0 0.0
        %3848 = vmatpush1.xpose.msra.mxu0 0.0
        %3849 = vmatprep.subr.mxu0 0.0
        %3850 = vmatpush1.xpose.msra.mxu0 0.0
        %3851 = vmatprep.subr.mxu0 0.0
        %3852 = vmatpush1.xpose.msra.mxu0 0.0
        %3853 = vmatprep.subr.mxu0 0.0
        %3854 = vmatpush1.xpose.msra.mxu0 0.0
        %3855 = vmatprep.subr.mxu0 0.0
        %3856 = vmatpush1.xpose.msra.mxu0 0.0
        %3857 = vmatprep.subr.mxu0 0.0
        %3858 = vmatpush1.xpose.msra.mxu0 0.0
        %3859 = vmatprep.subr.mxu0 0.0
        %3860 = vmatpush1.xpose.msra.mxu0 0.0
        %3861 = vmatprep.subr.mxu0 0.0
        %3862 = vmatpush1.xpose.msra.mxu0 0.0
        %3863 = vmatprep.subr.mxu0 0.0
        %3864 = vmatpush1.xpose.msra.mxu0 0.0
        %3865 = vmatprep.subr.mxu0 0.0
        %3866 = vmatpush1.xpose.msra.mxu0 0.0
        %3867 = vmatprep.subr.mxu0 0.0
        %3868 = vmatpush1.xpose.msra.mxu0 0.0
        %3869 = vmatprep.subr.mxu0 0.0
        %3870 = vmatpush1.xpose.msra.mxu0 0.0
        %3871 = vmatprep.subr.mxu0 0.0
        %3872 = vmatpush1.xpose.msra.mxu0 0.0
        %3873 = vmatprep.subr.mxu0 0.0
        %3874 = vmatpush1.xpose.msra.mxu0 0.0
        %3875 = vmatprep.subr.mxu0 0.0
        %3876 = vmatpush1.xpose.msra.mxu0 0.0
        %3877 = vmatprep.subr.mxu0 0.0
        %3878 = vmatpush1.xpose.msra.mxu0 0.0
        %3879 = vmatprep.mubr.f32.mxu0 0.0
        %3880 = vmatmul.mubr.f32.gmra.mrb[0].mxu0 %v3809
        %v3881 = vpop.f32.mrb[0].mxu0
        %v3882 = vadd.f32 0.0, %v3881
        %v3883 = vpop.f32.mrb[0].mxu0
        %3884 = vdwg.mxu0
        %v3885 = vsel %vm2604, %v3800, -inf
        %3886 = vmax.xlane.f32.xlu0 %v3885
        %v3887 = vpop.xlane.xlu0 %3886
        %v3888 = vsel %vm2604, %v3882, -inf
        %3889 = vmax.xlane.f32.xlu0 %v3888
        %v3890 = vpop.xlane.xlu0 %3889
        %v3891 = vsub.f32 %v3800, %v3887
        %v3892 = vsub.f32 %v3882, %v3890
        %v3893 = vmul.f32 %v3891, 1.442695
        %v3894 = vpow.pop %v3893
        %v3895 = vmul.f32 %v3892, 1.442695
        %v3896 = vpow.pop %v3895
        %v3897 = vsel %vm2604, %v3894, 0.0
        %3898 = vadd.xlane.f32.xlu0 %v3897
        %v3899 = vpop.xlane.xlu0 %3898
        %v3900 = vsel %vm2604, %v3896, 0.0
        %3901 = vadd.xlane.f32.xlu0 %v3900
        %v3902 = vpop.xlane.xlu0 %3901
        %v3903 = vrcp.pop %v3899
        %v3904 = vrcp.pop %v3902
        %v3905 = vmul.f32 %v3894, %v3903
        %v3906 = vmul.f32 %v3896, %v3904
        %3907 = vrot.lane.b32.xlu0 %v3029, 112
        %v3908 = vpop.permute.xlu0 %3907
        %3909 = vrot.lane.b32.xlu0 %v3034, 112
        %v3910 = vpop.permute.xlu0 %3909
        %v3914 = vsel %vm2604, %v3905, 0
        %3916 = vmatprep.subr.mxu0 0.0
        %3917 = vmatpush1.msra.mxu0 %v3908
        %3918 = vmatprep.subr.mxu0 0.0
        %3919 = vmatpush1.msra.mxu0 %v3910
        %3920 = vmatprep.subr.mxu0 0.0
        %3921 = vmatpush1.msra.mxu0 0.0
        %3922 = vmatprep.subr.mxu0 0.0
        %3923 = vmatpush1.msra.mxu0 0.0
        %3924 = vmatprep.subr.mxu0 0.0
        %3925 = vmatpush1.msra.mxu0 0.0
        %3926 = vmatprep.subr.mxu0 0.0
        %3927 = vmatpush1.msra.mxu0 0.0
        %3928 = vmatprep.subr.mxu0 0.0
        %3929 = vmatpush1.msra.mxu0 0.0
        %3930 = vmatprep.subr.mxu0 0.0
        %3931 = vmatpush1.msra.mxu0 0.0
        %3932 = vmatprep.subr.mxu0 0.0
        %3933 = vmatpush1.msra.mxu0 0.0
        %3934 = vmatprep.subr.mxu0 0.0
        %3935 = vmatpush1.msra.mxu0 0.0
        %3936 = vmatprep.subr.mxu0 0.0
        %3937 = vmatpush1.msra.mxu0 0.0
        %3938 = vmatprep.subr.mxu0 0.0
        %3939 = vmatpush1.msra.mxu0 0.0
        %3940 = vmatprep.subr.mxu0 0.0
        %3941 = vmatpush1.msra.mxu0 0.0
        %3942 = vmatprep.subr.mxu0 0.0
        %3943 = vmatpush1.msra.mxu0 0.0
        %3944 = vmatprep.subr.mxu0 0.0
        %3945 = vmatpush1.msra.mxu0 0.0
        %3946 = vmatprep.subr.mxu0 0.0
        %3947 = vmatpush1.msra.mxu0 0.0
        %3948 = vmatprep.subr.mxu0 0.0
        %3949 = vmatpush1.msra.mxu0 0.0
        %3950 = vmatprep.subr.mxu0 0.0
        %3951 = vmatpush1.msra.mxu0 0.0
        %3952 = vmatprep.subr.mxu0 0.0
        %3953 = vmatpush1.msra.mxu0 0.0
        %3954 = vmatprep.subr.mxu0 0.0
        %3955 = vmatpush1.msra.mxu0 0.0
        %3956 = vmatprep.subr.mxu0 0.0
        %3957 = vmatpush1.msra.mxu0 0.0
        %3958 = vmatprep.subr.mxu0 0.0
        %3959 = vmatpush1.msra.mxu0 0.0
        %3960 = vmatprep.subr.mxu0 0.0
        %3961 = vmatpush1.msra.mxu0 0.0
        %3962 = vmatprep.subr.mxu0 0.0
        %3963 = vmatpush1.msra.mxu0 0.0
        %3964 = vmatprep.subr.mxu0 0.0
        %3965 = vmatpush1.msra.mxu0 0.0
        %3966 = vmatprep.subr.mxu0 0.0
        %3967 = vmatpush1.msra.mxu0 0.0
        %3968 = vmatprep.subr.mxu0 0.0
        %3969 = vmatpush1.msra.mxu0 0.0
        %3970 = vmatprep.subr.mxu0 0.0
        %3971 = vmatpush1.msra.mxu0 0.0
        %3972 = vmatprep.subr.mxu0 0.0
        %3973 = vmatpush1.msra.mxu0 0.0
        %3974 = vmatprep.subr.mxu0 0.0
        %3975 = vmatpush1.msra.mxu0 0.0
        %3976 = vmatprep.subr.mxu0 0.0
        %3977 = vmatpush1.msra.mxu0 0.0
        %3978 = vmatprep.subr.mxu0 0.0
        %3979 = vmatpush1.msra.mxu0 0.0
        %3980 = vmatprep.mubr.f32.mxu0 0.0
        %3981 = vmatmul.mubr.f32.gmra.mrb[0].mxu0 %v3914
        %v3982 = vpop.f32.mrb[0].mxu0
        %v3983 = vadd.f32 0.0, %v3982
        %v3984 = vpop.f32.mrb[0].mxu0
        %3985 = vdwg.mxu0
        %3986 = vrot.lane.b32.xlu0 %v3039, 112
        %v3987 = vpop.permute.xlu0 %3986
        %3988 = vrot.lane.b32.xlu0 %v3044, 112
        %v3989 = vpop.permute.xlu0 %3988
        %v3993 = vsel %vm2604, %v3906, 0
        %3995 = vmatprep.subr.mxu0 0.0
        %3996 = vmatpush1.msra.mxu0 %v3987
        %3997 = vmatprep.subr.mxu0 0.0
        %3998 = vmatpush1.msra.mxu0 %v3989
        %3999 = vmatprep.subr.mxu0 0.0
        %4000 = vmatpush1.msra.mxu0 0.0
        %4001 = vmatprep.subr.mxu0 0.0
        %4002 = vmatpush1.msra.mxu0 0.0
        %4003 = vmatprep.subr.mxu0 0.0
        %4004 = vmatpush1.msra.mxu0 0.0
        %4005 = vmatprep.subr.mxu0 0.0
        %4006 = vmatpush1.msra.mxu0 0.0
        %4007 = vmatprep.subr.mxu0 0.0
        %4008 = vmatpush1.msra.mxu0 0.0
        %4009 = vmatprep.subr.mxu0 0.0
        %4010 = vmatpush1.msra.mxu0 0.0
        %4011 = vmatprep.subr.mxu0 0.0
        %4012 = vmatpush1.msra.mxu0 0.0
        %4013 = vmatprep.subr.mxu0 0.0
        %4014 = vmatpush1.msra.mxu0 0.0
        %4015 = vmatprep.subr.mxu0 0.0
        %4016 = vmatpush1.msra.mxu0 0.0
        %4017 = vmatprep.subr.mxu0 0.0
        %4018 = vmatpush1.msra.mxu0 0.0
        %4019 = vmatprep.subr.mxu0 0.0
        %4020 = vmatpush1.msra.mxu0 0.0
        %4021 = vmatprep.subr.mxu0 0.0
        %4022 = vmatpush1.msra.mxu0 0.0
        %4023 = vmatprep.subr.mxu0 0.0
        %4024 = vmatpush1.msra.mxu0 0.0
        %4025 = vmatprep.subr.mxu0 0.0
        %4026 = vmatpush1.msra.mxu0 0.0
        %4027 = vmatprep.subr.mxu0 0.0
        %4028 = vmatpush1.msra.mxu0 0.0
        %4029 = vmatprep.subr.mxu0 0.0
        %4030 = vmatpush1.msra.mxu0 0.0
        %4031 = vmatprep.subr.mxu0 0.0
        %4032 = vmatpush1.msra.mxu0 0.0
        %4033 = vmatprep.subr.mxu0 0.0
        %4034 = vmatpush1.msra.mxu0 0.0
        %4035 = vmatprep.subr.mxu0 0.0
        %4036 = vmatpush1.msra.mxu0 0.0
        %4037 = vmatprep.subr.mxu0 0.0
        %4038 = vmatpush1.msra.mxu0 0.0
        %4039 = vmatprep.subr.mxu0 0.0
        %4040 = vmatpush1.msra.mxu0 0.0
        %4041 = vmatprep.subr.mxu0 0.0
        %4042 = vmatpush1.msra.mxu0 0.0
        %4043 = vmatprep.subr.mxu0 0.0
        %4044 = vmatpush1.msra.mxu0 0.0
        %4045 = vmatprep.subr.mxu0 0.0
        %4046 = vmatpush1.msra.mxu0 0.0
        %4047 = vmatprep.subr.mxu0 0.0
        %4048 = vmatpush1.msra.mxu0 0.0
        %4049 = vmatprep.subr.mxu0 0.0
        %4050 = vmatpush1.msra.mxu0 0.0
        %4051 = vmatprep.subr.mxu0 0.0
        %4052 = vmatpush1.msra.mxu0 0.0
        %4053 = vmatprep.subr.mxu0 0.0
        %4054 = vmatpush1.msra.mxu0 0.0
        %4055 = vmatprep.subr.mxu0 0.0
        %4056 = vmatpush1.msra.mxu0 0.0
        %4057 = vmatprep.subr.mxu0 0.0
        %4058 = vmatpush1.msra.mxu0 0.0
        %4059 = vmatprep.mubr.f32.mxu0 0.0
        %4060 = vmatmul.mubr.f32.gmra.mrb[0].mxu0 %v3993
        %v4061 = vpop.f32.mrb[0].mxu0
        %v4062 = vadd.f32 0.0, %v4061
        %v4063 = vpop.f32.mrb[0].mxu0
        %4064 = vdwg.mxu0
        %4065 = vrot.lane.b32.xlu0 %v2827, 104
        %v4066 = vpop.permute.xlu0 %4065
        %4067 = vrot.lane.b32.xlu0 %v2923, 104
        %v4068 = vpop.permute.xlu0 %4067
        %4069 = vrot.lane.b32.xlu0 %v2928, 104
        %v4070 = vpop.permute.xlu0 %4069
        %v4071 = vsel %vm1266, %v4066, 0
        %v4073 = vsel %vm1266, %v4068, 0
        %v4075 = vsel %vm1266, %v4070, 0
        %4077 = vmatprep.subr.mxu0 0.0
        %4078 = vmatpush1.xpose.msra.mxu0 %v4073
        %4079 = vmatprep.subr.mxu0 0.0
        %4080 = vmatpush1.xpose.msra.mxu0 %v4075
        %4081 = vmatprep.subr.mxu0 0.0
        %4082 = vmatpush1.xpose.msra.mxu0 0.0
        %4083 = vmatprep.subr.mxu0 0.0
        %4084 = vmatpush1.xpose.msra.mxu0 0.0
        %4085 = vmatprep.subr.mxu0 0.0
        %4086 = vmatpush1.xpose.msra.mxu0 0.0
        %4087 = vmatprep.subr.mxu0 0.0
        %4088 = vmatpush1.xpose.msra.mxu0 0.0
        %4089 = vmatprep.subr.mxu0 0.0
        %4090 = vmatpush1.xpose.msra.mxu0 0.0
        %4091 = vmatprep.subr.mxu0 0.0
        %4092 = vmatpush1.xpose.msra.mxu0 0.0
        %4093 = vmatprep.subr.mxu0 0.0
        %4094 = vmatpush1.xpose.msra.mxu0 0.0
        %4095 = vmatprep.subr.mxu0 0.0
        %4096 = vmatpush1.xpose.msra.mxu0 0.0
        %4097 = vmatprep.subr.mxu0 0.0
        %4098 = vmatpush1.xpose.msra.mxu0 0.0
        %4099 = vmatprep.subr.mxu0 0.0
        %4100 = vmatpush1.xpose.msra.mxu0 0.0
        %4101 = vmatprep.subr.mxu0 0.0
        %4102 = vmatpush1.xpose.msra.mxu0 0.0
        %4103 = vmatprep.subr.mxu0 0.0
        %4104 = vmatpush1.xpose.msra.mxu0 0.0
        %4105 = vmatprep.subr.mxu0 0.0
        %4106 = vmatpush1.xpose.msra.mxu0 0.0
        %4107 = vmatprep.subr.mxu0 0.0
        %4108 = vmatpush1.xpose.msra.mxu0 0.0
        %4109 = vmatprep.subr.mxu0 0.0
        %4110 = vmatpush1.xpose.msra.mxu0 0.0
        %4111 = vmatprep.subr.mxu0 0.0
        %4112 = vmatpush1.xpose.msra.mxu0 0.0
        %4113 = vmatprep.subr.mxu0 0.0
        %4114 = vmatpush1.xpose.msra.mxu0 0.0
        %4115 = vmatprep.subr.mxu0 0.0
        %4116 = vmatpush1.xpose.msra.mxu0 0.0
        %4117 = vmatprep.subr.mxu0 0.0
        %4118 = vmatpush1.xpose.msra.mxu0 0.0
        %4119 = vmatprep.subr.mxu0 0.0
        %4120 = vmatpush1.xpose.msra.mxu0 0.0
        %4121 = vmatprep.subr.mxu0 0.0
        %4122 = vmatpush1.xpose.msra.mxu0 0.0
        %4123 = vmatprep.subr.mxu0 0.0
        %4124 = vmatpush1.xpose.msra.mxu0 0.0
        %4125 = vmatprep.subr.mxu0 0.0
        %4126 = vmatpush1.xpose.msra.mxu0 0.0
        %4127 = vmatprep.subr.mxu0 0.0
        %4128 = vmatpush1.xpose.msra.mxu0 0.0
        %4129 = vmatprep.subr.mxu0 0.0
        %4130 = vmatpush1.xpose.msra.mxu0 0.0
        %4131 = vmatprep.subr.mxu0 0.0
        %4132 = vmatpush1.xpose.msra.mxu0 0.0
        %4133 = vmatprep.subr.mxu0 0.0
        %4134 = vmatpush1.xpose.msra.mxu0 0.0
        %4135 = vmatprep.subr.mxu0 0.0
        %4136 = vmatpush1.xpose.msra.mxu0 0.0
        %4137 = vmatprep.subr.mxu0 0.0
        %4138 = vmatpush1.xpose.msra.mxu0 0.0
        %4139 = vmatprep.subr.mxu0 0.0
        %4140 = vmatpush1.xpose.msra.mxu0 0.0
        %4141 = vmatprep.mubr.f32.mxu0 0.0
        %4142 = vmatmul.mubr.f32.gmra.mrb[0].mxu0 %v4071
        %v4143 = vpop.f32.mrb[0].mxu0
        %v4144 = vadd.f32 0.0, %v4143
        %v4145 = vpop.f32.mrb[0].mxu0
        %4146 = vdwg.mxu0
        %4147 = vrot.lane.b32.xlu0 %v2832, 104
        %v4148 = vpop.permute.xlu0 %4147
        %4149 = vrot.lane.b32.xlu0 %v2933, 104
        %v4150 = vpop.permute.xlu0 %4149
        %4151 = vrot.lane.b32.xlu0 %v2938, 104
        %v4152 = vpop.permute.xlu0 %4151
        %v4153 = vsel %vm1266, %v4148, 0
        %v4155 = vsel %vm1266, %v4150, 0
        %v4157 = vsel %vm1266, %v4152, 0
        %4159 = vmatprep.subr.mxu0 0.0
        %4160 = vmatpush1.xpose.msra.mxu0 %v4155
        %4161 = vmatprep.subr.mxu0 0.0
        %4162 = vmatpush1.xpose.msra.mxu0 %v4157
        %4163 = vmatprep.subr.mxu0 0.0
        %4164 = vmatpush1.xpose.msra.mxu0 0.0
        %4165 = vmatprep.subr.mxu0 0.0
        %4166 = vmatpush1.xpose.msra.mxu0 0.0
        %4167 = vmatprep.subr.mxu0 0.0
        %4168 = vmatpush1.xpose.msra.mxu0 0.0
        %4169 = vmatprep.subr.mxu0 0.0
        %4170 = vmatpush1.xpose.msra.mxu0 0.0
        %4171 = vmatprep.subr.mxu0 0.0
        %4172 = vmatpush1.xpose.msra.mxu0 0.0
        %4173 = vmatprep.subr.mxu0 0.0
        %4174 = vmatpush1.xpose.msra.mxu0 0.0
        %4175 = vmatprep.subr.mxu0 0.0
        %4176 = vmatpush1.xpose.msra.mxu0 0.0
        %4177 = vmatprep.subr.mxu0 0.0
        %4178 = vmatpush1.xpose.msra.mxu0 0.0
        %4179 = vmatprep.subr.mxu0 0.0
        %4180 = vmatpush1.xpose.msra.mxu0 0.0
        %4181 = vmatprep.subr.mxu0 0.0
        %4182 = vmatpush1.xpose.msra.mxu0 0.0
        %4183 = vmatprep.subr.mxu0 0.0
        %4184 = vmatpush1.xpose.msra.mxu0 0.0
        %4185 = vmatprep.subr.mxu0 0.0
        %4186 = vmatpush1.xpose.msra.mxu0 0.0
        %4187 = vmatprep.subr.mxu0 0.0
        %4188 = vmatpush1.xpose.msra.mxu0 0.0
        %4189 = vmatprep.subr.mxu0 0.0
        %4190 = vmatpush1.xpose.msra.mxu0 0.0
        %4191 = vmatprep.subr.mxu0 0.0
        %4192 = vmatpush1.xpose.msra.mxu0 0.0
        %4193 = vmatprep.subr.mxu0 0.0
        %4194 = vmatpush1.xpose.msra.mxu0 0.0
        %4195 = vmatprep.subr.mxu0 0.0
        %4196 = vmatpush1.xpose.msra.mxu0 0.0
        %4197 = vmatprep.subr.mxu0 0.0
        %4198 = vmatpush1.xpose.msra.mxu0 0.0
        %4199 = vmatprep.subr.mxu0 0.0
        %4200 = vmatpush1.xpose.msra.mxu0 0.0
        %4201 = vmatprep.subr.mxu0 0.0
        %4202 = vmatpush1.xpose.msra.mxu0 0.0
        %4203 = vmatprep.subr.mxu0 0.0
        %4204 = vmatpush1.xpose.msra.mxu0 0.0
        %4205 = vmatprep.subr.mxu0 0.0
        %4206 = vmatpush1.xpose.msra.mxu0 0.0
        %4207 = vmatprep.subr.mxu0 0.0
        %4208 = vmatpush1.xpose.msra.mxu0 0.0
        %4209 = vmatprep.subr.mxu0 0.0
        %4210 = vmatpush1.xpose.msra.mxu0 0.0
        %4211 = vmatprep.subr.mxu0 0.0
        %4212 = vmatpush1.xpose.msra.mxu0 0.0
        %4213 = vmatprep.subr.mxu0 0.0
        %4214 = vmatpush1.xpose.msra.mxu0 0.0
        %4215 = vmatprep.subr.mxu0 0.0
        %4216 = vmatpush1.xpose.msra.mxu0 0.0
        %4217 = vmatprep.subr.mxu0 0.0
        %4218 = vmatpush1.xpose.msra.mxu0 0.0
        %4219 = vmatprep.subr.mxu0 0.0
        %4220 = vmatpush1.xpose.msra.mxu0 0.0
        %4221 = vmatprep.subr.mxu0 0.0
        %4222 = vmatpush1.xpose.msra.mxu0 0.0
        %4223 = vmatprep.mubr.f32.mxu0 0.0
        %4224 = vmatmul.mubr.f32.gmra.mrb[0].mxu0 %v4153
        %v4225 = vpop.f32.mrb[0].mxu0
        %v4226 = vadd.f32 0.0, %v4225
        %v4227 = vpop.f32.mrb[0].mxu0
        %4228 = vdwg.mxu0
        %v4229 = vsel %vm2604, %v4144, -inf
        %4230 = vmax.xlane.f32.xlu0 %v4229
        %v4231 = vpop.xlane.xlu0 %4230
        %v4232 = vsel %vm2604, %v4226, -inf
        %4233 = vmax.xlane.f32.xlu0 %v4232
        %v4234 = vpop.xlane.xlu0 %4233
        %v4235 = vsub.f32 %v4144, %v4231
        %v4236 = vsub.f32 %v4226, %v4234
        %v4237 = vmul.f32 %v4235, 1.442695
        %v4238 = vpow.pop %v4237
        %v4239 = vmul.f32 %v4236, 1.442695
        %v4240 = vpow.pop %v4239
        %v4241 = vsel %vm2604, %v4238, 0.0
        %4242 = vadd.xlane.f32.xlu0 %v4241
        %v4243 = vpop.xlane.xlu0 %4242
        %v4244 = vsel %vm2604, %v4240, 0.0
        %4245 = vadd.xlane.f32.xlu0 %v4244
        %v4246 = vpop.xlane.xlu0 %4245
        %v4247 = vrcp.pop %v4243
        %v4248 = vrcp.pop %v4246
        %v4249 = vmul.f32 %v4238, %v4247
        %v4250 = vmul.f32 %v4240, %v4248
        %4251 = vrot.lane.b32.xlu0 %v3029, 104
        %v4252 = vpop.permute.xlu0 %4251
        %4253 = vrot.lane.b32.xlu0 %v3034, 104
        %v4254 = vpop.permute.xlu0 %4253
        %v4258 = vsel %vm2604, %v4249, 0
        %4260 = vmatprep.subr.mxu0 0.0
        %4261 = vmatpush1.msra.mxu0 %v4252
        %4262 = vmatprep.subr.mxu0 0.0
        %4263 = vmatpush1.msra.mxu0 %v4254
        %4264 = vmatprep.subr.mxu0 0.0
        %4265 = vmatpush1.msra.mxu0 0.0
        %4266 = vmatprep.subr.mxu0 0.0
        %4267 = vmatpush1.msra.mxu0 0.0
        %4268 = vmatprep.subr.mxu0 0.0
        %4269 = vmatpush1.msra.mxu0 0.0
        %4270 = vmatprep.subr.mxu0 0.0
        %4271 = vmatpush1.msra.mxu0 0.0
        %4272 = vmatprep.subr.mxu0 0.0
        %4273 = vmatpush1.msra.mxu0 0.0
        %4274 = vmatprep.subr.mxu0 0.0
        %4275 = vmatpush1.msra.mxu0 0.0
        %4276 = vmatprep.subr.mxu0 0.0
        %4277 = vmatpush1.msra.mxu0 0.0
        %4278 = vmatprep.subr.mxu0 0.0
        %4279 = vmatpush1.msra.mxu0 0.0
        %4280 = vmatprep.subr.mxu0 0.0
        %4281 = vmatpush1.msra.mxu0 0.0
        %4282 = vmatprep.subr.mxu0 0.0
        %4283 = vmatpush1.msra.mxu0 0.0
        %4284 = vmatprep.subr.mxu0 0.0
        %4285 = vmatpush1.msra.mxu0 0.0
        %4286 = vmatprep.subr.mxu0 0.0
        %4287 = vmatpush1.msra.mxu0 0.0
        %4288 = vmatprep.subr.mxu0 0.0
        %4289 = vmatpush1.msra.mxu0 0.0
        %4290 = vmatprep.subr.mxu0 0.0
        %4291 = vmatpush1.msra.mxu0 0.0
        %4292 = vmatprep.subr.mxu0 0.0
        %4293 = vmatpush1.msra.mxu0 0.0
        %4294 = vmatprep.subr.mxu0 0.0
        %4295 = vmatpush1.msra.mxu0 0.0
        %4296 = vmatprep.subr.mxu0 0.0
        %4297 = vmatpush1.msra.mxu0 0.0
        %4298 = vmatprep.subr.mxu0 0.0
        %4299 = vmatpush1.msra.mxu0 0.0
        %4300 = vmatprep.subr.mxu0 0.0
        %4301 = vmatpush1.msra.mxu0 0.0
        %4302 = vmatprep.subr.mxu0 0.0
        %4303 = vmatpush1.msra.mxu0 0.0
        %4304 = vmatprep.subr.mxu0 0.0
        %4305 = vmatpush1.msra.mxu0 0.0
        %4306 = vmatprep.subr.mxu0 0.0
        %4307 = vmatpush1.msra.mxu0 0.0
        %4308 = vmatprep.subr.mxu0 0.0
        %4309 = vmatpush1.msra.mxu0 0.0
        %4310 = vmatprep.subr.mxu0 0.0
        %4311 = vmatpush1.msra.mxu0 0.0
        %4312 = vmatprep.subr.mxu0 0.0
        %4313 = vmatpush1.msra.mxu0 0.0
        %4314 = vmatprep.subr.mxu0 0.0
        %4315 = vmatpush1.msra.mxu0 0.0
        %4316 = vmatprep.subr.mxu0 0.0
        %4317 = vmatpush1.msra.mxu0 0.0
        %4318 = vmatprep.subr.mxu0 0.0
        %4319 = vmatpush1.msra.mxu0 0.0
        %4320 = vmatprep.subr.mxu0 0.0
        %4321 = vmatpush1.msra.mxu0 0.0
        %4322 = vmatprep.subr.mxu0 0.0
        %4323 = vmatpush1.msra.mxu0 0.0
        %4324 = vmatprep.mubr.f32.mxu0 0.0
        %4325 = vmatmul.mubr.f32.gmra.mrb[0].mxu0 %v4258
        %v4326 = vpop.f32.mrb[0].mxu0
        %v4327 = vadd.f32 0.0, %v4326
        %v4328 = vpop.f32.mrb[0].mxu0
        %4329 = vdwg.mxu0
        %4330 = vrot.lane.b32.xlu0 %v3039, 104
        %v4331 = vpop.permute.xlu0 %4330
        %4332 = vrot.lane.b32.xlu0 %v3044, 104
        %v4333 = vpop.permute.xlu0 %4332
        %v4337 = vsel %vm2604, %v4250, 0
        %4339 = vmatprep.subr.mxu0 0.0
        %4340 = vmatpush1.msra.mxu0 %v4331
        %4341 = vmatprep.subr.mxu0 0.0
        %4342 = vmatpush1.msra.mxu0 %v4333
        %4343 = vmatprep.subr.mxu0 0.0
        %4344 = vmatpush1.msra.mxu0 0.0
        %4345 = vmatprep.subr.mxu0 0.0
        %4346 = vmatpush1.msra.mxu0 0.0
        %4347 = vmatprep.subr.mxu0 0.0
        %4348 = vmatpush1.msra.mxu0 0.0
        %4349 = vmatprep.subr.mxu0 0.0
        %4350 = vmatpush1.msra.mxu0 0.0
        %4351 = vmatprep.subr.mxu0 0.0
        %4352 = vmatpush1.msra.mxu0 0.0
        %4353 = vmatprep.subr.mxu0 0.0
        %4354 = vmatpush1.msra.mxu0 0.0
        %4355 = vmatprep.subr.mxu0 0.0
        %4356 = vmatpush1.msra.mxu0 0.0
        %4357 = vmatprep.subr.mxu0 0.0
        %4358 = vmatpush1.msra.mxu0 0.0
        %4359 = vmatprep.subr.mxu0 0.0
        %4360 = vmatpush1.msra.mxu0 0.0
        %4361 = vmatprep.subr.mxu0 0.0
        %4362 = vmatpush1.msra.mxu0 0.0
        %4363 = vmatprep.subr.mxu0 0.0
        %4364 = vmatpush1.msra.mxu0 0.0
        %4365 = vmatprep.subr.mxu0 0.0
        %4366 = vmatpush1.msra.mxu0 0.0
        %4367 = vmatprep.subr.mxu0 0.0
        %4368 = vmatpush1.msra.mxu0 0.0
        %4369 = vmatprep.subr.mxu0 0.0
        %4370 = vmatpush1.msra.mxu0 0.0
        %4371 = vmatprep.subr.mxu0 0.0
        %4372 = vmatpush1.msra.mxu0 0.0
        %4373 = vmatprep.subr.mxu0 0.0
        %4374 = vmatpush1.msra.mxu0 0.0
        %4375 = vmatprep.subr.mxu0 0.0
        %4376 = vmatpush1.msra.mxu0 0.0
        %4377 = vmatprep.subr.mxu0 0.0
        %4378 = vmatpush1.msra.mxu0 0.0
        %4379 = vmatprep.subr.mxu0 0.0
        %4380 = vmatpush1.msra.mxu0 0.0
        %4381 = vmatprep.subr.mxu0 0.0
        %4382 = vmatpush1.msra.mxu0 0.0
        %4383 = vmatprep.subr.mxu0 0.0
        %4384 = vmatpush1.msra.mxu0 0.0
        %4385 = vmatprep.subr.mxu0 0.0
        %4386 = vmatpush1.msra.mxu0 0.0
        %4387 = vmatprep.subr.mxu0 0.0
        %4388 = vmatpush1.msra.mxu0 0.0
        %4389 = vmatprep.subr.mxu0 0.0
        %4390 = vmatpush1.msra.mxu0 0.0
        %4391 = vmatprep.subr.mxu0 0.0
        %4392 = vmatpush1.msra.mxu0 0.0
        %4393 = vmatprep.subr.mxu0 0.0
        %4394 = vmatpush1.msra.mxu0 0.0
        %4395 = vmatprep.subr.mxu0 0.0
        %4396 = vmatpush1.msra.mxu0 0.0
        %4397 = vmatprep.subr.mxu0 0.0
        %4398 = vmatpush1.msra.mxu0 0.0
        %4399 = vmatprep.subr.mxu0 0.0
        %4400 = vmatpush1.msra.mxu0 0.0
        %4401 = vmatprep.subr.mxu0 0.0
        %4402 = vmatpush1.msra.mxu0 0.0
        %4403 = vmatprep.mubr.f32.mxu0 0.0
        %4404 = vmatmul.mubr.f32.gmra.mrb[0].mxu0 %v4337
        %v4405 = vpop.f32.mrb[0].mxu0
        %v4406 = vadd.f32 0.0, %v4405
        %v4407 = vpop.f32.mrb[0].mxu0
        %4408 = vdwg.mxu0
        %4411 = vrot.lane.b32.xlu0 %v3637, 8
        %v4412 = vpop.permute.xlu0 %4411
        %4413 = vrot.lane.b32.xlu0 %v3718, 8
        %v4414 = vpop.permute.xlu0 %4413
        %4419 = vrot.lane.b32.xlu0 %v3983, 16
        %v4420 = vpop.permute.xlu0 %4419
        %4421 = vrot.lane.b32.xlu0 %v4062, 16
        %v4422 = vpop.permute.xlu0 %4421
        %4427 = vrot.lane.b32.xlu0 %v4327, 24
        %v4428 = vpop.permute.xlu0 %4427
        %4429 = vrot.lane.b32.xlu0 %v4406, 24
        %v4430 = vpop.permute.xlu0 %4429
        %v4433 = vsel %vm1266, %v3297, %v4412
        %v4434 = vsel %vm1266, %v3370, %v4414
        %v4435 = vsel %vm2604, %v4433, %v4420
        %v4436 = vsel %vm2604, %v4434, %v4422
        %v4437 = vsel %vm2607, %v4435, %v4428
        %v4438 = vsel %vm2607, %v4436, %v4430
        %s4439 = scalar_lea.vmem %s1032, 96
        %v4440 = vld [vmem:[%s4439] sm:$0xff]
        %v4441 = vld [vmem:[%s4439 + $0x8] sm:$0xff]
        %v4442 = vld [vmem:[%s4439 + $0x10] sm:$0xff]
        %v4443 = vld [vmem:[%s4439 + $0x18] sm:$0xff]
        %v4444 = vlaneseq
        %v4445 = vshrl.u32 %v4444, 7
        %v4446 = vsub.s32 3, %v4445
        %v4447 = vrot.slane %v2743, %v4446
        %v4449 = vsel %vm1089, %v4437, 0
        %v4452 = vsel %vm1089, %v4438, 0
        %4454 = vmatprep.subr.mxu0 0.0
        %4455 = vmatpush1.msra.mxu0 %v4440
        %4456 = vmatprep.subr.mxu0 0.0
        %4457 = vmatpush1.msra.mxu0 %v4441
        %4458 = vmatprep.subr.mxu0 0.0
        %4459 = vmatpush1.msra.mxu0 %v4442
        %4460 = vmatprep.subr.mxu0 0.0
        %4461 = vmatpush1.msra.mxu0 %v4443
        %4462 = vmatprep.subr.mxu0 0.0
        %4463 = vmatpush1.msra.mxu0 0.0
        %4464 = vmatprep.subr.mxu0 0.0
        %4465 = vmatpush1.msra.mxu0 0.0
        %4466 = vmatprep.subr.mxu0 0.0
        %4467 = vmatpush1.msra.mxu0 0.0
        %4468 = vmatprep.subr.mxu0 0.0
        %4469 = vmatpush1.msra.mxu0 0.0
        %4470 = vmatprep.subr.mxu0 0.0
        %4471 = vmatpush1.msra.mxu0 0.0
        %4472 = vmatprep.subr.mxu0 0.0
        %4473 = vmatpush1.msra.mxu0 0.0
        %4474 = vmatprep.subr.mxu0 0.0
        %4475 = vmatpush1.msra.mxu0 0.0
        %4476 = vmatprep.subr.mxu0 0.0
        %4477 = vmatpush1.msra.mxu0 0.0
        %4478 = vmatprep.subr.mxu0 0.0
        %4479 = vmatpush1.msra.mxu0 0.0
        %4480 = vmatprep.subr.mxu0 0.0
        %4481 = vmatpush1.msra.mxu0 0.0
        %4482 = vmatprep.subr.mxu0 0.0
        %4483 = vmatpush1.msra.mxu0 0.0
        %4484 = vmatprep.subr.mxu0 0.0
        %4485 = vmatpush1.msra.mxu0 0.0
        %4486 = vmatprep.subr.mxu0 0.0
        %4487 = vmatpush1.msra.mxu0 0.0
        %4488 = vmatprep.subr.mxu0 0.0
        %4489 = vmatpush1.msra.mxu0 0.0
        %4490 = vmatprep.subr.mxu0 0.0
        %4491 = vmatpush1.msra.mxu0 0.0
        %4492 = vmatprep.subr.mxu0 0.0
        %4493 = vmatpush1.msra.mxu0 0.0
        %4494 = vmatprep.subr.mxu0 0.0
        %4495 = vmatpush1.msra.mxu0 0.0
        %4496 = vmatprep.subr.mxu0 0.0
        %4497 = vmatpush1.msra.mxu0 0.0
        %4498 = vmatprep.subr.mxu0 0.0
        %4499 = vmatpush1.msra.mxu0 0.0
        %4500 = vmatprep.subr.mxu0 0.0
        %4501 = vmatpush1.msra.mxu0 0.0
        %4502 = vmatprep.subr.mxu0 0.0
        %4503 = vmatpush1.msra.mxu0 0.0
        %4504 = vmatprep.subr.mxu0 0.0
        %4505 = vmatpush1.msra.mxu0 0.0
        %4506 = vmatprep.subr.mxu0 0.0
        %4507 = vmatpush1.msra.mxu0 0.0
        %4508 = vmatprep.subr.mxu0 0.0
        %4509 = vmatpush1.msra.mxu0 0.0
        %4510 = vmatprep.subr.mxu0 0.0
        %4511 = vmatpush1.msra.mxu0 0.0
        %4512 = vmatprep.subr.mxu0 0.0
        %4513 = vmatpush1.msra.mxu0 0.0
        %4514 = vmatprep.subr.mxu0 0.0
        %4515 = vmatpush1.msra.mxu0 0.0
        %4516 = vmatprep.subr.mxu0 0.0
        %4517 = vmatpush1.msra.mxu0 0.0
        %4518 = vmatprep.mubr.f32.mxu0 0.0
        %4519 = vmatmul.mubr.f32.gmra.mrb[0].mxu0 %v4449
        %v4520 = vpop.f32.mrb[0].mxu0
        %v4521 = vadd.f32 %v4447, %v4520
        %v4522 = vpop.f32.mrb[0].mxu0
        %4523 = vmatprep.mubr.f32.mxu0 0.0
        %4524 = vmatmul.mubr.f32.gmra.mrb[0].mxu0 %v4452
        %v4525 = vpop.f32.mrb[0].mxu0
        %v4526 = vadd.f32 %v4447, %v4525
        %v4527 = vpop.f32.mrb[0].mxu0
        %4528 = vdwg.mxu0
        %v4529 = vadd.f32 %v2741, %v4521
        %v4530 = vadd.f32 %v2742, %v4526
        %v4531 = vsel %vm1089, %v4529, 0.0
        %4532 = vadd.xlane.f32.xlu0 %v4531
        %v4533 = vpop.xlane.xlu0 %4532
        %v4534 = vsel %vm1089, %v4530, 0.0
        %4535 = vadd.xlane.f32.xlu0 %v4534
        %v4536 = vpop.xlane.xlu0 %4535
        %v4537 = vmul.f32 %v4533, %v2710
        %v4538 = vmul.f32 %v4536, %v2710
        %v4539 = vsub.f32 %v4529, %v4537
        %v4540 = vsub.f32 %v4530, %v4538
        %v4541 = vmul.f32 %v4539, %v4539
        %v4542 = vmul.f32 %v4540, %v4540
        %v4543 = vsel %vm1089, %v4541, 0.0
        %4544 = vadd.xlane.f32.xlu0 %v4543
        %v4545 = vpop.xlane.xlu0 %4544
        %v4546 = vsel %vm1089, %v4542, 0.0
        %4547 = vadd.xlane.f32.xlu0 %v4546
        %v4548 = vpop.xlane.xlu0 %4547
        %v4549 = vmul.f32 %v4545, %v2710
        %v4550 = vmul.f32 %v4548, %v2710
        %v4551 = vadd.f32 %v4549, 1e-05
        %v4552 = vadd.f32 %v4550, 1e-05
        %v4553 = vrsqrt.pop %v4551
        %v4554 = vrsqrt.pop %v4552
        %v4555 = vmul.f32 %v4539, %v4553
        %v4556 = vmul.f32 %v4540, %v4554
        %v4557 = vlaneseq
        %v4558 = vshrl.u32 %v4557, 7
        %v4559 = vsub.s32 1, %v4558
        %v4560 = vrot.slane %v1074, %v4559
        %v4561 = vmul.f32 %v4555, %v4560
        %v4562 = vmul.f32 %v4556, %v4560
        %v4563 = vlaneseq
        %v4564 = vshrl.u32 %v4563, 7
        %v4565 = vsub.s32 1, %v4564
        %v4566 = vrot.slane %v1075, %v4565
        %v4567 = vadd.f32 %v4561, %v4566
        %v4568 = vadd.f32 %v4562, %v4566
        %v4569 = vld [vmem:[%s911] sm:$0xff]
        %v4570 = vld [vmem:[%s911 + $0x8] sm:$0xff]
        %v4571 = vld [vmem:[%s911 + $0x10] sm:$0xff]
        %v4572 = vld [vmem:[%s911 + $0x18] sm:$0xff]
        %v4573 = vld [vmem:[%s919] sm:$0x1]
        %v4575 = vlaneseq
        %v4576 = vshrl.u32 %v4575, 7
        %v4577 = vsub.s32 0, %v4576
        %v4578 = vrot.slane %v4573, %v4577
        %v4581 = vsel %vm1089, %v4567, 0
        %v4584 = vsel %vm1089, %v4568, 0
        %4586 = vmatprep.subr.mxu0 0.0
        %4587 = vmatpush1.msra.mxu0 %v4569
        %4588 = vmatprep.subr.mxu0 0.0
        %4589 = vmatpush1.msra.mxu0 %v4570
        %4590 = vmatprep.subr.mxu0 0.0
        %4591 = vmatpush1.msra.mxu0 %v4571
        %4592 = vmatprep.subr.mxu0 0.0
        %4593 = vmatpush1.msra.mxu0 %v4572
        %4594 = vmatprep.subr.mxu0 0.0
        %4595 = vmatpush1.msra.mxu0 0.0
        %4596 = vmatprep.subr.mxu0 0.0
        %4597 = vmatpush1.msra.mxu0 0.0
        %4598 = vmatprep.subr.mxu0 0.0
        %4599 = vmatpush1.msra.mxu0 0.0
        %4600 = vmatprep.subr.mxu0 0.0
        %4601 = vmatpush1.msra.mxu0 0.0
        %4602 = vmatprep.subr.mxu0 0.0
        %4603 = vmatpush1.msra.mxu0 0.0
        %4604 = vmatprep.subr.mxu0 0.0
        %4605 = vmatpush1.msra.mxu0 0.0
        %4606 = vmatprep.subr.mxu0 0.0
        %4607 = vmatpush1.msra.mxu0 0.0
        %4608 = vmatprep.subr.mxu0 0.0
        %4609 = vmatpush1.msra.mxu0 0.0
        %4610 = vmatprep.subr.mxu0 0.0
        %4611 = vmatpush1.msra.mxu0 0.0
        %4612 = vmatprep.subr.mxu0 0.0
        %4613 = vmatpush1.msra.mxu0 0.0
        %4614 = vmatprep.subr.mxu0 0.0
        %4615 = vmatpush1.msra.mxu0 0.0
        %4616 = vmatprep.subr.mxu0 0.0
        %4617 = vmatpush1.msra.mxu0 0.0
        %4618 = vmatprep.subr.mxu0 0.0
        %4619 = vmatpush1.msra.mxu0 0.0
        %4620 = vmatprep.subr.mxu0 0.0
        %4621 = vmatpush1.msra.mxu0 0.0
        %4622 = vmatprep.subr.mxu0 0.0
        %4623 = vmatpush1.msra.mxu0 0.0
        %4624 = vmatprep.subr.mxu0 0.0
        %4625 = vmatpush1.msra.mxu0 0.0
        %4626 = vmatprep.subr.mxu0 0.0
        %4627 = vmatpush1.msra.mxu0 0.0
        %4628 = vmatprep.subr.mxu0 0.0
        %4629 = vmatpush1.msra.mxu0 0.0
        %4630 = vmatprep.subr.mxu0 0.0
        %4631 = vmatpush1.msra.mxu0 0.0
        %4632 = vmatprep.subr.mxu0 0.0
        %4633 = vmatpush1.msra.mxu0 0.0
        %4634 = vmatprep.subr.mxu0 0.0
        %4635 = vmatpush1.msra.mxu0 0.0
        %4636 = vmatprep.subr.mxu0 0.0
        %4637 = vmatpush1.msra.mxu0 0.0
        %4638 = vmatprep.subr.mxu0 0.0
        %4639 = vmatpush1.msra.mxu0 0.0
        %4640 = vmatprep.subr.mxu0 0.0
        %4641 = vmatpush1.msra.mxu0 0.0
        %4642 = vmatprep.subr.mxu0 0.0
        %4643 = vmatpush1.msra.mxu0 0.0
        %4644 = vmatprep.subr.mxu0 0.0
        %4645 = vmatpush1.msra.mxu0 0.0
        %4646 = vmatprep.subr.mxu0 0.0
        %4647 = vmatpush1.msra.mxu0 0.0
        %4648 = vmatprep.subr.mxu0 0.0
        %4649 = vmatpush1.msra.mxu0 0.0
        %4650 = vmatprep.mubr.f32.mxu0 0.0
        %4651 = vmatmul.mubr.f32.gmra.mrb[0].mxu0 %v4581
        %v4652 = vpop.f32.mrb[0].mxu0
        %v4653 = vadd.f32 %v4578, %v4652
        %v4654 = vpop.f32.mrb[0].mxu0
        %4655 = vmatprep.mubr.f32.mxu0 0.0
        %4656 = vmatmul.mubr.f32.gmra.mrb[0].mxu0 %v4584
        %v4657 = vpop.f32.mrb[0].mxu0
        %v4658 = vadd.f32 %v4578, %v4657
        %v4659 = vpop.f32.mrb[0].mxu0
        %4660 = vdwg.mxu0
        %v4661 = vmax.f32 %v4653, 0.0
        %v4662 = vmax.f32 %v4658, 0.0
        %v4663 = vld [vmem:[%s1037] sm:$0xff]
        %v4664 = vld [vmem:[%s1037 + $0x8] sm:$0xff]
        %v4665 = vld [vmem:[%s1037 + $0x10] sm:$0xff]
        %v4666 = vld [vmem:[%s1037 + $0x18] sm:$0xff]
        %v4667 = vld [vmem:[%s1037 + $0x20] sm:$0xff]
        %v4668 = vld [vmem:[%s1037 + $0x28] sm:$0xff]
        %v4669 = vld [vmem:[%s1037 + $0x30] sm:$0xff]
        %v4670 = vld [vmem:[%s1037 + $0x38] sm:$0xff]
        %v4671 = vld [vmem:[%s1040] sm:$0x1]
        %v4673 = vlaneseq
        %v4674 = vshrl.u32 %v4673, 7
        %v4675 = vsub.s32 0, %v4674
        %v4676 = vrot.slane %v4671, %v4675
        %vm4678 = vcmask 523264
        %v4680 = vsel %vm4678, %v4661, 0
        %v4683 = vsel %vm4678, %v4662, 0
        %4685 = vmatprep.subr.mxu0 0.0
        %4686 = vmatpush1.msra.mxu0 %v4663
        %4687 = vmatprep.subr.mxu0 0.0
        %4688 = vmatpush1.msra.mxu0 %v4664
        %4689 = vmatprep.subr.mxu0 0.0
        %4690 = vmatpush1.msra.mxu0 %v4665
        %4691 = vmatprep.subr.mxu0 0.0
        %4692 = vmatpush1.msra.mxu0 %v4666
        %4693 = vmatprep.subr.mxu0 0.0
        %4694 = vmatpush1.msra.mxu0 %v4667
        %4695 = vmatprep.subr.mxu0 0.0
        %4696 = vmatpush1.msra.mxu0 %v4668
        %4697 = vmatprep.subr.mxu0 0.0
        %4698 = vmatpush1.msra.mxu0 %v4669
        %4699 = vmatprep.subr.mxu0 0.0
        %4700 = vmatpush1.msra.mxu0 %v4670
        %4701 = vmatprep.subr.mxu0 0.0
        %4702 = vmatpush1.msra.mxu0 0.0
        %4703 = vmatprep.subr.mxu0 0.0
        %4704 = vmatpush1.msra.mxu0 0.0
        %4705 = vmatprep.subr.mxu0 0.0
        %4706 = vmatpush1.msra.mxu0 0.0
        %4707 = vmatprep.subr.mxu0 0.0
        %4708 = vmatpush1.msra.mxu0 0.0
        %4709 = vmatprep.subr.mxu0 0.0
        %4710 = vmatpush1.msra.mxu0 0.0
        %4711 = vmatprep.subr.mxu0 0.0
        %4712 = vmatpush1.msra.mxu0 0.0
        %4713 = vmatprep.subr.mxu0 0.0
        %4714 = vmatpush1.msra.mxu0 0.0
        %4715 = vmatprep.subr.mxu0 0.0
        %4716 = vmatpush1.msra.mxu0 0.0
        %4717 = vmatprep.subr.mxu0 0.0
        %4718 = vmatpush1.msra.mxu0 0.0
        %4719 = vmatprep.subr.mxu0 0.0
        %4720 = vmatpush1.msra.mxu0 0.0
        %4721 = vmatprep.subr.mxu0 0.0
        %4722 = vmatpush1.msra.mxu0 0.0
        %4723 = vmatprep.subr.mxu0 0.0
        %4724 = vmatpush1.msra.mxu0 0.0
        %4725 = vmatprep.subr.mxu0 0.0
        %4726 = vmatpush1.msra.mxu0 0.0
        %4727 = vmatprep.subr.mxu0 0.0
        %4728 = vmatpush1.msra.mxu0 0.0
        %4729 = vmatprep.subr.mxu0 0.0
        %4730 = vmatpush1.msra.mxu0 0.0
        %4731 = vmatprep.subr.mxu0 0.0
        %4732 = vmatpush1.msra.mxu0 0.0
        %4733 = vmatprep.subr.mxu0 0.0
        %4734 = vmatpush1.msra.mxu0 0.0
        %4735 = vmatprep.subr.mxu0 0.0
        %4736 = vmatpush1.msra.mxu0 0.0
        %4737 = vmatprep.subr.mxu0 0.0
        %4738 = vmatpush1.msra.mxu0 0.0
        %4739 = vmatprep.subr.mxu0 0.0
        %4740 = vmatpush1.msra.mxu0 0.0
        %4741 = vmatprep.subr.mxu0 0.0
        %4742 = vmatpush1.msra.mxu0 0.0
        %4743 = vmatprep.subr.mxu0 0.0
        %4744 = vmatpush1.msra.mxu0 0.0
        %4745 = vmatprep.subr.mxu0 0.0
        %4746 = vmatpush1.msra.mxu0 0.0
        %4747 = vmatprep.subr.mxu0 0.0
        %4748 = vmatpush1.msra.mxu0 0.0
        %4749 = vmatprep.mubr.f32.mxu0 0.0
        %4750 = vmatmul.mubr.f32.gmra.mrb[0].mxu0 %v4680
        %v4751 = vpop.f32.mrb[0].mxu0
        %v4752 = vadd.f32 %v4676, %v4751
        %v4753 = vpop.f32.mrb[0].mxu0
        %4754 = vmatprep.mubr.f32.mxu0 0.0
        %4755 = vmatmul.mubr.f32.gmra.mrb[0].mxu0 %v4683
        %v4756 = vpop.f32.mrb[0].mxu0
        %v4757 = vadd.f32 %v4676, %v4756
        %v4758 = vpop.f32.mrb[0].mxu0
        %4759 = vdwg.mxu0
        %v4760 = vadd.f32 %v4567, %v4752
        %v4761 = vadd.f32 %v4568, %v4757
        %v4762 = vsel %vm1089, %v4760, 0.0
        %4763 = vadd.xlane.f32.xlu0 %v4762
        %v4764 = vpop.xlane.xlu0 %4763
        %v4765 = vsel %vm1089, %v4761, 0.0
        %4766 = vadd.xlane.f32.xlu0 %v4765
        %v4767 = vpop.xlane.xlu0 %4766
        %v4768 = vmul.f32 %v4764, %v2710
        %v4769 = vmul.f32 %v4767, %v2710
        %v4770 = vsub.f32 %v4760, %v4768
        %v4771 = vsub.f32 %v4761, %v4769
        %v4772 = vmul.f32 %v4770, %v4770
        %v4773 = vmul.f32 %v4771, %v4771
        %v4774 = vsel %vm1089, %v4772, 0.0
        %4775 = vadd.xlane.f32.xlu0 %v4774
        %v4776 = vpop.xlane.xlu0 %4775
        %v4777 = vsel %vm1089, %v4773, 0.0
        %4778 = vadd.xlane.f32.xlu0 %v4777
        %v4779 = vpop.xlane.xlu0 %4778
        %v4780 = vmul.f32 %v4776, %v2710
        %v4781 = vmul.f32 %v4779, %v2710
        %v4782 = vadd.f32 %v4780, 1e-05
        %v4783 = vadd.f32 %v4781, 1e-05
        %v4784 = vrsqrt.pop %v4782
        %v4785 = vrsqrt.pop %v4783
        %v4786 = vmul.f32 %v4770, %v4784
        %v4787 = vmul.f32 %v4771, %v4785
        %v4788 = vlaneseq
        %v4789 = vshrl.u32 %v4788, 7
        %v4790 = vsub.s32 2, %v4789
        %v4791 = vrot.slane %v1074, %v4790
        %v4792 = vmul.f32 %v4786, %v4791
        %v4793 = vmul.f32 %v4787, %v4791
        %v4794 = vlaneseq
        %v4795 = vshrl.u32 %v4794, 7
        %v4796 = vsub.s32 2, %v4795
        %v4797 = vrot.slane %v1075, %v4796
        %v4798 = vadd.f32 %v4792, %v4797
        %v4799 = vadd.f32 %v4793, %v4797
        %4800 = vst.msk [vmem:[#allocation2] sm:$0xff] %vm1089, %v4798
        %4801 = vst.msk [vmem:[#allocation2 + $0x8] sm:$0xff] %vm1089, %v4799
        %p4802 = scmp.eq.s32.totalorder %s35, 1
        // Predicated region
        $region157: #{tpu_custom_call.1} parent=99 // pred_check
          %p4803 = pneg %p4802
        $region158: #{tpu_custom_call.1} parent=99 // pred_check_branch
          %4805 = sbr.rel (%p4803) target = $region160
        $region159: #{tpu_custom_call.1} parent=99 // pred_region
          %v4806 = vld [vmem:[%s18] sm:$0x1]
          %v4807 = vld [vmem:[%s19] sm:$0x1]
          %v4808 = vsel %vm1089, %v4798, 0.0
          %4809 = vadd.xlane.f32.xlu0 %v4808
          %v4810 = vpop.xlane.xlu0 %4809
          %v4811 = vsel %vm1089, %v4799, 0.0
          %4812 = vadd.xlane.f32.xlu0 %v4811
          %v4813 = vpop.xlane.xlu0 %4812
          %v4814 = vmul.f32 %v4810, %v2710
          %v4815 = vmul.f32 %v4813, %v2710
          %v4816 = vsub.f32 %v4798, %v4814
          %v4817 = vsub.f32 %v4799, %v4815
          %v4818 = vmul.f32 %v4816, %v4816
          %v4819 = vmul.f32 %v4817, %v4817
          %v4820 = vsel %vm1089, %v4818, 0.0
          %4821 = vadd.xlane.f32.xlu0 %v4820
          %v4822 = vpop.xlane.xlu0 %4821
          %v4823 = vsel %vm1089, %v4819, 0.0
          %4824 = vadd.xlane.f32.xlu0 %v4823
          %v4825 = vpop.xlane.xlu0 %4824
          %v4826 = vmul.f32 %v4822, %v2710
          %v4827 = vmul.f32 %v4825, %v2710
          %v4828 = vadd.f32 %v4826, 1e-05
          %v4829 = vadd.f32 %v4827, 1e-05
          %v4830 = vrsqrt.pop %v4828
          %v4831 = vrsqrt.pop %v4829
          %v4832 = vmul.f32 %v4816, %v4830
          %v4833 = vmul.f32 %v4817, %v4831
          %v4835 = vlaneseq
          %v4836 = vshrl.u32 %v4835, 7
          %v4837 = vsub.s32 0, %v4836
          %v4838 = vrot.slane %v4806, %v4837
          %v4840 = vmul.f32 %v4832, %v4838
          %v4841 = vmul.f32 %v4833, %v4838
          %v4843 = vlaneseq
          %v4844 = vshrl.u32 %v4843, 7
          %v4845 = vsub.s32 0, %v4844
          %v4846 = vrot.slane %v4807, %v4845
          %v4848 = vadd.f32 %v4840, %v4846
          %v4849 = vadd.f32 %v4841, %v4846
          %4850 = vst.msk [vmem:[#allocation20] sm:$0xff] %vm1089, %v4848
          %4851 = vst.msk [vmem:[#allocation20 + $0x8] sm:$0xff] %vm1089, %v4849
        $region160: #{tpu_custom_call.1} parent=99 // pred_fallthru
          _
        // Predicated region
        $region161: #{tpu_custom_call.1} parent=99 // pred_check
          %p4852 = pneg %p538
        $region162: #{tpu_custom_call.1} parent=99 // pred_check_branch
          %4854 = sbr.rel (%p4852) target = $region164
        $region163: #{tpu_custom_call.1} parent=99 // pred_region
          %s4856 = ssub.s32 256, 256
          %4857 = vsyncadd [#allocation5], %s4856
          %s4858 = sshll.u32 [#allocation20], 4
          %s4859 = int_to_ptr.vmem [resolvable:$true] %s4858
          %4864 = dma.vmem_to_hbm [thread:$0]  %s4859, 256, %s20, [#allocation5], 128, 128, 8
        $region164: #{tpu_custom_call.1} parent=99 // pred_fallthru
          _
        // Predicated region
        $region165: #{tpu_custom_call.1} parent=99 // pred_check
          %p4865 = pneg %p538
        $region166: #{tpu_custom_call.1} parent=99 // pred_check_branch
          %4867 = sbr.rel (%p4865) target = $region168
        $region167: #{tpu_custom_call.1} parent=99 // pred_region
          %4868 = dma.done [#allocation5], 256
        $region168: #{tpu_custom_call.1} parent=99 // pred_fallthru
          _
      $region100: #{tpu_custom_call.1} parent=5 // pred_fallthru
        _
      %p4869 = scmp.le.s32.totalorder 2, %s30
      // Predicated region
      $region169: #{tpu_custom_call.1} parent=5 // pred_check
        %p4870 = pneg %p4869
      $region170: #{tpu_custom_call.1} parent=5 // pred_check_branch
        %4872 = sbr.rel (%p4870) target = $region172
      $region171: #{tpu_custom_call.1} parent=5 // pred_region
        %s4873 = ssub.s32 %s30, 2
      $region172: #{tpu_custom_call.1} parent=5 // pred_fallthru
        _
    $region6: #{tpu_custom_call.1} parent=1 // loop_footer
      %s34 = sadd.s32 1, %s30
    $region7: #{tpu_custom_call.1} parent=1 // loop_footer_branch
      %29 = sbr.rel target = $region3
    $region8: #{tpu_custom_call.1} parent=1 // loop_exit
      _
    %4874 = vsyncpa [#allocation4], 1
    %s4875 = scalar_lea.sflag [#allocation4], 1
    %4876 = vsyncpa %s4875, 1
    %4877 = vsyncpa [#allocation7], 1
    %4878 = vsyncpa [#allocation10], 1
    %4879 = vsyncpa [#allocation5], 1
    %s4880 = scalar_lea.sflag [#allocation5], 1
    %4881 = vsyncpa %s4880, 1

</llo_original>
